<compile_context>
chip_gen: v7x
topology: tpu7x:2x2x1
jax: 0.10.0
libtpu: 0.0.40
codegen_flags: <defaults>
</compile_context>

<pallas_src>
import jax
import jax.numpy as jnp
from jax.experimental import pallas as pl
from jax.experimental.pallas import tpu as pltpu

LANE = 128


def _round_up(v, m):
    return (v + m - 1) // m * m


def _conv3x3_merged(src, w_ref, Ho, Wo, stride):
    """3x3 conv as 3 deep matmuls (one per kernel row).

    src:   (Hs, Ws, C) bf16 value, already zero-padded by 1 px on each border.
    w_ref: (3, 3*C, Cout) bf16 ref with w_ref[ky][kx*C + c, o] == W[o, c, ky, kx].
    Returns (Ho*Wo, Cout) float32.
    """
    C = src.shape[-1]
    acc = None
    for ky in range(3):
        cols = []
        for kx in range(3):
            sl = jax.lax.slice(
                src,
                (ky, kx, 0),
                (ky + (Ho - 1) * stride + 1, kx + (Wo - 1) * stride + 1, C),
                (stride, stride, 1),
            )                                           # (Ho, Wo, C)
            cols.append(sl)
        patch = jnp.concatenate(cols, axis=-1)          # (Ho, Wo, 3*C), lane concat
        patch = patch.reshape(Ho * Wo, 3 * C)
        term = jnp.dot(patch, w_ref[ky], preferred_element_type=jnp.float32)
        acc = term if acc is None else acc + term
    return acc


def _make_kernel(has_ds, stride, Ho, Wo, Cin_p, P_p):
    def kernel(*refs):
        if has_ds:
            (x_ref, w1_ref, s1_ref, b1_ref, w2_ref, s2_ref, b2_ref,
             wd_ref, sd_ref, bd_ref, o_ref, hp_ref) = refs
        else:
            (x_ref, w1_ref, s1_ref, b1_ref, w2_ref, s2_ref, b2_ref,
             o_ref, hp_ref) = refs

        xp = x_ref[0]                       # (H+2, W+2, Cin_p) bf16, pre-padded in HBM

        # ---- conv1 (3x3, stride) + folded BN1 + ReLU (f32 epilogue) ----
        h = _conv3x3_merged(xp, w1_ref, Ho, Wo, stride)            # (Ho*Wo, P_p) f32
        h = jnp.maximum(h * s1_ref[...] + b1_ref[...], 0.0)

        # Stage conv1 output (bf16) into the persistent padded VMEM scratch.
        # Interior is fully overwritten every step; only the 1-px halo is
        # zeroed (re-zeroed each step: safe under megacore grid sharding,
        # and the halo is tiny compared to the conv work).
        zrow = jnp.zeros((1, Wo + 2, P_p), jnp.bfloat16)
        zcol = jnp.zeros((Ho, 1, P_p), jnp.bfloat16)
        hp_ref[0:1, :, :] = zrow
        hp_ref[Ho + 1:Ho + 2, :, :] = zrow
        hp_ref[1:Ho + 1, 0:1, :] = zcol
        hp_ref[1:Ho + 1, Wo + 1:Wo + 2, :] = zcol
        hp_ref[1:Ho + 1, 1:Wo + 1, :] = h.reshape(Ho, Wo, P_p).astype(jnp.bfloat16)

        # ---- conv2 (3x3, stride 1) + folded BN2 ----
        hp = hp_ref[...]
        h2 = _conv3x3_merged(hp, w2_ref, Ho, Wo, 1)                # (Ho*Wo, P_p) f32
        h2 = h2 * s2_ref[...] + b2_ref[...]

        # ---- residual branch ----
        if has_ds:
            xs = jax.lax.slice(
                xp, (1, 1, 0),
                (1 + (Ho - 1) * stride + 1, 1 + (Wo - 1) * stride + 1, Cin_p),
                (stride, stride, 1))
            sc = jnp.dot(xs.reshape(Ho * Wo, Cin_p), wd_ref[...],
                         preferred_element_type=jnp.float32)
            sc = sc * sd_ref[...] + bd_ref[...]
        else:
            # Identity shortcut straight from the pre-padded input block.
            xs = jax.lax.slice(xp, (1, 1, 0), (1 + Ho, 1 + Wo, Cin_p))
            sc = xs.reshape(Ho * Wo, Cin_p).astype(jnp.float32)

        out = jnp.maximum(h2 + sc, 0.0)
        o_ref[0] = out.reshape(Ho, Wo, P_p).astype(o_ref.dtype)

    return kernel


# ----------------------------- parameter prep ------------------------------

def _fold_bn(bn, eps):
    gamma, beta, mean, var = bn
    scale = gamma / jnp.sqrt(var + eps)
    bias = beta - mean * scale
    return scale, bias


def _prep_kernel_params(raw, eps):
    """Fold BN, zero-pad channels to LANE multiples, merge 3x3 taps per kernel
    row (kx folded into the contraction axis), cast matmul weights to bf16."""
    w1_oihw = raw["conv1"]                               # (P, Cin, 3, 3)
    P, Cin = w1_oihw.shape[0], w1_oihw.shape[1]
    Cin_p, P_p = _round_up(Cin, LANE), _round_up(P, LANE)

    def merge3x3(w_oihw, ci, ci_p, co, co_p):
        w = jnp.transpose(w_oihw, (2, 3, 1, 0))                           # (3,3,ci,co)
        w = jnp.pad(w, ((0, 0), (0, 0), (0, ci_p - ci), (0, co_p - co)))
        return w.reshape(3, 3 * ci_p, co_p).astype(jnp.bfloat16)          # (3,3*ci_p,co_p)

    def pad_vec(v, co, co_p):
        return jnp.pad(v, (0, co_p - co)).reshape(1, co_p).astype(jnp.float32)

    s1, b1 = _fold_bn(raw["bn1"], eps)
    s2, b2 = _fold_bn(raw["bn2"], eps)
    kp = dict(
        w1=merge3x3(w1_oihw, Cin, Cin_p, P, P_p),
        s1=pad_vec(s1, P, P_p), b1=pad_vec(b1, P, P_p),
        w2=merge3x3(raw["conv2"], P, P_p, P, P_p),
        s2=pad_vec(s2, P, P_p), b2=pad_vec(b2, P, P_p),
    )
    if "convd" in raw:
        wd = jnp.transpose(raw["convd"][:, :, 0, 0], (1, 0))              # (Cin, P)
        wd = jnp.pad(wd, ((0, Cin_p - Cin), (0, P_p - P))).astype(jnp.bfloat16)
        sd, bd = _fold_bn(raw["bnd"], eps)
        kp.update(wd=wd, sd=pad_vec(sd, P, P_p), bd=pad_vec(bd, P, P_p))
    return kp, Cin_p, P_p


# --------------------------------- wrapper ----------------------------------

def basic_block_pallas(x, raw_params, stride, eps=1e-5):
    """x: (N, H, W, Cin) float32 NHWC. Returns (N, Ho, Wo, planes) float32."""
    N, H, W, Cin = x.shape
    P = raw_params["conv1"].shape[0]
    assert raw_params["conv1"].shape[1] == Cin
    has_ds = (stride != 1) or (Cin != P)
    Ho = (H + 2 - 3) // stride + 1
    Wo = (W + 2 - 3) // stride + 1
    Hp, Wp = H + 2, W + 2

    kp, Cin_p, P_p = _prep_kernel_params(raw_params, eps)

    # Pre-pad once in HBM: +1 spatial halo, lane-dense channels, bf16 matmul dtype.
    xp = jnp.pad(x, ((0, 0), (1, 1), (1, 1), (0, Cin_p - Cin))).astype(jnp.bfloat16)

    in_arrays = [xp, kp["w1"], kp["s1"], kp["b1"], kp["w2"], kp["s2"], kp["b2"]]
    if has_ds:
        in_arrays += [kp["wd"], kp["sd"], kp["bd"]]

    def const_spec(a):
        # Constant block index across the grid -> Pallas DMAs the block once
        # and reuses it for every step.
        return pl.BlockSpec(a.shape, lambda n, _nd=a.ndim: (0,) * _nd)

    in_specs = [pl.BlockSpec((1, Hp, Wp, Cin_p), lambda n: (n, 0, 0, 0))]
    in_specs += [const_spec(a) for a in in_arrays[1:]]

    # Rough per-step VMEM footprint: double-buffered I/O + weights + scratch +
    # transient patches/accumulators; raise scoped VMEM limit if blocks grow.
    bytes_weights = sum(int(a.size) * a.dtype.itemsize for a in in_arrays[1:])
    bytes_est = (
        2 * (Hp * Wp * Cin_p * 2 + Ho * Wo * P_p * 4)
        + 2 * bytes_weights
        + (Ho + 2) * (Wo + 2) * P_p * 2
        + Ho * Wo * (3 * Cin_p * 2 + 3 * P_p * 2 + 4 * P_p * 4))
    vmem_limit = int(min(64 * 2**20, max(32 * 2**20, 2 * bytes_est)))

    # Advisory cost estimate for XLA's scheduler around the custom call.
    flops_per_sample = 2 * Ho * Wo * (9 * Cin_p * P_p + 9 * P_p * P_p)
    if has_ds:
        flops_per_sample += 2 * Ho * Wo * Cin_p * P_p
    flops_per_sample += 6 * Ho * Wo * P_p            # BN scale/bias, add, ReLU
    cost = pl.CostEstimate(
        flops=N * flops_per_sample,
        transcendentals=0,
        bytes_accessed=N * (Hp * Wp * Cin_p * 2 + Ho * Wo * P_p * 4) + bytes_weights)

    kernel = _make_kernel(has_ds, stride, Ho, Wo, Cin_p, P_p)

    out_padded = pl.pallas_call(
        kernel,
        out_shape=jax.ShapeDtypeStruct((N, Ho, Wo, P_p), jnp.float32),
        grid=(N,),
        in_specs=in_specs,
        out_specs=pl.BlockSpec((1, Ho, Wo, P_p), lambda n: (n, 0, 0, 0)),
        scratch_shapes=[pltpu.VMEM((Ho + 2, Wo + 2, P_p), jnp.bfloat16)],
        compiler_params=pltpu.CompilerParams(
            dimension_semantics=("parallel",),
            vmem_limit_bytes=vmem_limit),
        cost_estimate=cost,
    )(*in_arrays)

    return out_padded[..., :P]


# ------------------------- reference & test harness -------------------------

def init_basic_block_params(key, in_planes, planes, stride):
    """Random parameters matching BasicBlock.__init__ (inference-mode BN stats)."""
    keys = jax.random.split(key, 6)

    def bn_params(k, c):
        kg, kb, km, kv = jax.random.split(k, 4)
        gamma = 1.0 + 0.1 * jax.random.normal(kg, (c,), jnp.float32)
        beta = 0.1 * jax.random.normal(kb, (c,), jnp.float32)
        mean = 0.1 * jax.random.normal(km, (c,), jnp.float32)
        var = 0.5 + 0.1 * jnp.abs(jax.random.normal(kv, (c,), jnp.float32))
        return (gamma, beta, mean, var)

    raw = {
        "conv1": 0.1 * jax.random.normal(keys[0], (planes, in_planes, 3, 3), jnp.float32),
        "bn1": bn_params(keys[1], planes),
        "conv2": 0.1 * jax.random.normal(keys[2], (planes, planes, 3, 3), jnp.float32),
        "bn2": bn_params(keys[3], planes),
    }
    if stride != 1 or in_planes != planes:
        raw["convd"] = 0.1 * jax.random.normal(
            keys[4], (planes, in_planes, 1, 1), jnp.float32)
        raw["bnd"] = bn_params(keys[5], planes)
    return raw


def basic_block_reference(x, raw, stride, eps=1e-5, matmul_dtype=jnp.float32):
    """Pure-JAX (lax conv) reference. matmul_dtype=bf16 mirrors the kernel's
    mixed-precision matmul inputs (f32 accumulation, f32 BN/ReLU epilogue)."""
    dn = ("NHWC", "HWIO", "NHWC")

    def conv(inp, w_oihw, s, pad):
        w_hwio = jnp.transpose(w_oihw, (2, 3, 1, 0))
        return jax.lax.conv_general_dilated(
            inp.astype(matmul_dtype), w_hwio.astype(matmul_dtype),
            (s, s), pad, dimension_numbers=dn,
            preferred_element_type=jnp.float32)

    def bn(h, p):
        gamma, beta, mean, var = p
        scale = gamma / jnp.sqrt(var + eps)
        return h * scale + (beta - mean * scale)

    h = jax.nn.relu(bn(conv(x, raw["conv1"], stride, [(1, 1), (1, 1)]), raw["bn1"]))
    h = bn(conv(h, raw["conv2"], 1, [(1, 1), (1, 1)]), raw["bn2"])
    if "convd" in raw:
        sc = bn(conv(x, raw["convd"], stride, [(0, 0), (0, 0)]), raw["bnd"])
    else:
        sc = x.astype(matmul_dtype).astype(jnp.float32)
    return jax.nn.relu(h + sc)


if __name__ == "__main__":
    key = jax.random.PRNGKey(0)
    N, H, W = 2, 16, 16
    # (in_planes, planes, stride): exercises both the 1x1-downsample shortcut
    # and the identity shortcut. (Strided blocks use the same code path.)
    configs = [(4, 8, 1), (8, 8, 1)]

    for idx, (cin, planes, stride) in enumerate(configs):
        kcfg = jax.random.fold_in(key, idx)
        kx, kparams = jax.random.split(kcfg)
        x = jax.random.normal(kx, (N, H, W, cin), jnp.float32)     # NHWC
        raw = init_basic_block_params(kparams, cin, planes, stride)

        out = jax.block_until_ready(basic_block_pallas(x, raw, stride))

        ref_mixed = basic_block_reference(x, raw, stride, matmul_dtype=jnp.bfloat16)
        ref_f32 = basic_block_reference(x, raw, stride, matmul_dtype=jnp.float32)
        assert out.shape == ref_mixed.shape, (out.shape, ref_mixed.shape)
        err_mixed = float(jnp.max(jnp.abs(out - ref_mixed)))
        err_f32 = float(jnp.max(jnp.abs(out - ref_f32)))
        # Tight check vs. a reference using the same bf16 matmul inputs.
        assert jnp.allclose(out, ref_mixed, atol=2e-3, rtol=2e-3), \
            (cin, planes, stride, err_mixed)
        # Loose check vs. the pure-f32 module semantics.
        assert jnp.allclose(out, ref_f32, atol=5e-2, rtol=5e-2), \
            (cin, planes, stride, err_f32)

    print("KERNEL_OK")
</pallas_src>

<mosaic_0001>
module attributes {stable_mosaic.version = 11 : i64} {
  func.func @kernel(%arg0: i32, %arg1: memref<1x18x18x128xbf16, #tpu.memory_space<vmem>>, %arg2: memref<3x384x128xbf16, #tpu.memory_space<vmem>>, %arg3: memref<1x128xf32, #tpu.memory_space<vmem>>, %arg4: memref<1x128xf32, #tpu.memory_space<vmem>>, %arg5: memref<3x384x128xbf16, #tpu.memory_space<vmem>>, %arg6: memref<1x128xf32, #tpu.memory_space<vmem>>, %arg7: memref<1x128xf32, #tpu.memory_space<vmem>>, %arg8: memref<128x128xbf16, #tpu.memory_space<vmem>>, %arg9: memref<1x128xf32, #tpu.memory_space<vmem>>, %arg10: memref<1x128xf32, #tpu.memory_space<vmem>>, %arg11: memref<1x16x16x128xf32, #tpu.memory_space<vmem>>, %arg12: memref<18x18x128xbf16, #tpu.memory_space<vmem>>) attributes {dimension_semantics = [#tpu.dimension_semantics<parallel>], iteration_bounds = array<i64: 2>, scalar_prefetch = 0 : i64, scratch_operands = 1 : i64, tpu.core_type = #tpu.core_type<tc>, window_params = [{transform_indices = @transform_0, window_bounds = array<i64: 1, 18, 18, 128>}, {pipeline_mode = #tpu.pipeline_mode<synchronous>, transform_indices = @transform_1, window_bounds = array<i64: 3, 384, 128>}, {pipeline_mode = #tpu.pipeline_mode<synchronous>, transform_indices = @transform_2, window_bounds = array<i64: 1, 128>}, {pipeline_mode = #tpu.pipeline_mode<synchronous>, transform_indices = @transform_3, window_bounds = array<i64: 1, 128>}, {pipeline_mode = #tpu.pipeline_mode<synchronous>, transform_indices = @transform_4, window_bounds = array<i64: 3, 384, 128>}, {pipeline_mode = #tpu.pipeline_mode<synchronous>, transform_indices = @transform_5, window_bounds = array<i64: 1, 128>}, {pipeline_mode = #tpu.pipeline_mode<synchronous>, transform_indices = @transform_6, window_bounds = array<i64: 1, 128>}, {pipeline_mode = #tpu.pipeline_mode<synchronous>, transform_indices = @transform_7, window_bounds = array<i64: 128, 128>}, {pipeline_mode = #tpu.pipeline_mode<synchronous>, transform_indices = @transform_8, window_bounds = array<i64: 1, 128>}, {pipeline_mode = #tpu.pipeline_mode<synchronous>, transform_indices = @transform_9, window_bounds = array<i64: 1, 128>}, {transform_indices = @transform_10, window_bounds = array<i64: 1, 16, 16, 128>}]} {
    %c0 = arith.constant 0 : index
    %c0_0 = arith.constant 0 : index
    %c0_1 = arith.constant 0 : index
    %c0_2 = arith.constant 0 : index
    %0 = vector.load %arg1[%c0, %c0_0, %c0_1, %c0_2] : memref<1x18x18x128xbf16, #tpu.memory_space<vmem>>, vector<1x18x18x128xbf16>
    %1 = vector.shape_cast %0 : vector<1x18x18x128xbf16> to vector<18x18x128xbf16>
    %2 = vector.extract_strided_slice %1 {offsets = [0, 0, 0], sizes = [16, 16, 128], strides = [1, 1, 1]} : vector<18x18x128xbf16> to vector<16x16x128xbf16>
    %3 = vector.extract_strided_slice %1 {offsets = [0, 1, 0], sizes = [16, 16, 128], strides = [1, 1, 1]} : vector<18x18x128xbf16> to vector<16x16x128xbf16>
    %4 = vector.extract_strided_slice %1 {offsets = [0, 2, 0], sizes = [16, 16, 128], strides = [1, 1, 1]} : vector<18x18x128xbf16> to vector<16x16x128xbf16>
    %5 = tpu.concatenate %2, %3, %4 in 2 : vector<16x16x128xbf16>, vector<16x16x128xbf16>, vector<16x16x128xbf16> -> vector<16x16x384xbf16>
    %6 = vector.shape_cast %5 : vector<16x16x384xbf16> to vector<256x384xbf16>
    %c0_3 = arith.constant 0 : index
    %c0_4 = arith.constant 0 : index
    %c0_5 = arith.constant 0 : index
    %7 = vector.load %arg2[%c0_3, %c0_4, %c0_5] : memref<3x384x128xbf16, #tpu.memory_space<vmem>>, vector<1x384x128xbf16>
    %8 = vector.shape_cast %7 : vector<1x384x128xbf16> to vector<384x128xbf16>
    %cst = arith.constant dense<0.000000e+00> : vector<256x128xf32>
    %9 = tpu.matmul %6, %8, %cst {dimension_numbers = #tpu.dot_dimension_numbers<[1], [0], [0], [1], [0, 0, 1, 1], [], []>} : vector<256x384xbf16>, vector<384x128xbf16>, vector<256x128xf32> -> vector<256x128xf32>
    %10 = vector.extract_strided_slice %1 {offsets = [1, 0, 0], sizes = [16, 16, 128], strides = [1, 1, 1]} : vector<18x18x128xbf16> to vector<16x16x128xbf16>
    %11 = vector.extract_strided_slice %1 {offsets = [1, 1, 0], sizes = [16, 16, 128], strides = [1, 1, 1]} : vector<18x18x128xbf16> to vector<16x16x128xbf16>
    %12 = vector.extract_strided_slice %1 {offsets = [1, 2, 0], sizes = [16, 16, 128], strides = [1, 1, 1]} : vector<18x18x128xbf16> to vector<16x16x128xbf16>
    %13 = tpu.concatenate %10, %11, %12 in 2 : vector<16x16x128xbf16>, vector<16x16x128xbf16>, vector<16x16x128xbf16> -> vector<16x16x384xbf16>
    %14 = vector.shape_cast %13 : vector<16x16x384xbf16> to vector<256x384xbf16>
    %c1 = arith.constant 1 : index
    %c0_6 = arith.constant 0 : index
    %c0_7 = arith.constant 0 : index
    %15 = vector.load %arg2[%c1, %c0_6, %c0_7] : memref<3x384x128xbf16, #tpu.memory_space<vmem>>, vector<1x384x128xbf16>
    %16 = vector.shape_cast %15 : vector<1x384x128xbf16> to vector<384x128xbf16>
    %cst_8 = arith.constant dense<0.000000e+00> : vector<256x128xf32>
    %17 = tpu.matmul %14, %16, %cst_8 {dimension_numbers = #tpu.dot_dimension_numbers<[1], [0], [0], [1], [0, 0, 1, 1], [], []>} : vector<256x384xbf16>, vector<384x128xbf16>, vector<256x128xf32> -> vector<256x128xf32>
    %18 = arith.addf %9, %17 : vector<256x128xf32>
    %19 = vector.extract_strided_slice %1 {offsets = [2, 0, 0], sizes = [16, 16, 128], strides = [1, 1, 1]} : vector<18x18x128xbf16> to vector<16x16x128xbf16>
    %20 = vector.extract_strided_slice %1 {offsets = [2, 1, 0], sizes = [16, 16, 128], strides = [1, 1, 1]} : vector<18x18x128xbf16> to vector<16x16x128xbf16>
    %21 = vector.extract_strided_slice %1 {offsets = [2, 2, 0], sizes = [16, 16, 128], strides = [1, 1, 1]} : vector<18x18x128xbf16> to vector<16x16x128xbf16>
    %22 = tpu.concatenate %19, %20, %21 in 2 : vector<16x16x128xbf16>, vector<16x16x128xbf16>, vector<16x16x128xbf16> -> vector<16x16x384xbf16>
    %23 = vector.shape_cast %22 : vector<16x16x384xbf16> to vector<256x384xbf16>
    %c2 = arith.constant 2 : index
    %c0_9 = arith.constant 0 : index
    %c0_10 = arith.constant 0 : index
    %24 = vector.load %arg2[%c2, %c0_9, %c0_10] : memref<3x384x128xbf16, #tpu.memory_space<vmem>>, vector<1x384x128xbf16>
    %25 = vector.shape_cast %24 : vector<1x384x128xbf16> to vector<384x128xbf16>
    %cst_11 = arith.constant dense<0.000000e+00> : vector<256x128xf32>
    %26 = tpu.matmul %23, %25, %cst_11 {dimension_numbers = #tpu.dot_dimension_numbers<[1], [0], [0], [1], [0, 0, 1, 1], [], []>} : vector<256x384xbf16>, vector<384x128xbf16>, vector<256x128xf32> -> vector<256x128xf32>
    %27 = arith.addf %18, %26 : vector<256x128xf32>
    %c0_12 = arith.constant 0 : index
    %c0_13 = arith.constant 0 : index
    %28 = vector.load %arg3[%c0_12, %c0_13] : memref<1x128xf32, #tpu.memory_space<vmem>>, vector<1x128xf32>
    %29 = vector.broadcast %28 : vector<1x128xf32> to vector<256x128xf32>
    %30 = arith.mulf %27, %29 : vector<256x128xf32>
    %c0_14 = arith.constant 0 : index
    %c0_15 = arith.constant 0 : index
    %31 = vector.load %arg4[%c0_14, %c0_15] : memref<1x128xf32, #tpu.memory_space<vmem>>, vector<1x128xf32>
    %32 = vector.broadcast %31 : vector<1x128xf32> to vector<256x128xf32>
    %33 = arith.addf %30, %32 : vector<256x128xf32>
    %cst_16 = arith.constant 0.000000e+00 : f32
    %34 = vector.broadcast %cst_16 : f32 to vector<256x128xf32>
    %35 = arith.maximumf %33, %34 : vector<256x128xf32>
    %cst_17 = arith.constant 0.000000e+00 : bf16
    %36 = vector.broadcast %cst_17 : bf16 to vector<1x18x128xbf16>
    %cst_18 = arith.constant 0.000000e+00 : bf16
    %37 = vector.broadcast %cst_18 : bf16 to vector<16x1x128xbf16>
    %c0_19 = arith.constant 0 : index
    %c0_20 = arith.constant 0 : index
    %c0_21 = arith.constant 0 : index
    %38 = vector.load %arg12[%c0_19, %c0_20, %c0_21] : memref<18x18x128xbf16, #tpu.memory_space<vmem>>, vector<1x18x128xbf16>
    tpu.vector_store %arg12[%c0_19, %c0_20, %c0_21], %36 {strides = array<i32>} : memref<18x18x128xbf16, #tpu.memory_space<vmem>>, vector<1x18x128xbf16>,
    %c17 = arith.constant 17 : index
    %c0_22 = arith.constant 0 : index
    %c0_23 = arith.constant 0 : index
    %39 = vector.load %arg12[%c17, %c0_22, %c0_23] : memref<18x18x128xbf16, #tpu.memory_space<vmem>>, vector<1x18x128xbf16>
    tpu.vector_store %arg12[%c17, %c0_22, %c0_23], %36 {strides = array<i32>} : memref<18x18x128xbf16, #tpu.memory_space<vmem>>, vector<1x18x128xbf16>,
    %c1_24 = arith.constant 1 : index
    %c0_25 = arith.constant 0 : index
    %c0_26 = arith.constant 0 : index
    %40 = vector.load %arg12[%c1_24, %c0_25, %c0_26] : memref<18x18x128xbf16, #tpu.memory_space<vmem>>, vector<16x1x128xbf16>
    tpu.vector_store %arg12[%c1_24, %c0_25, %c0_26], %37 {strides = array<i32>} : memref<18x18x128xbf16, #tpu.memory_space<vmem>>, vector<16x1x128xbf16>,
    %c1_27 = arith.constant 1 : index
    %c17_28 = arith.constant 17 : index
    %c0_29 = arith.constant 0 : index
    %41 = vector.load %arg12[%c1_27, %c17_28, %c0_29] : memref<18x18x128xbf16, #tpu.memory_space<vmem>>, vector<16x1x128xbf16>
    tpu.vector_store %arg12[%c1_27, %c17_28, %c0_29], %37 {strides = array<i32>} : memref<18x18x128xbf16, #tpu.memory_space<vmem>>, vector<16x1x128xbf16>,
    %42 = vector.shape_cast %35 : vector<256x128xf32> to vector<16x16x128xf32>
    %43 = arith.truncf %42 : vector<16x16x128xf32> to vector<16x16x128xbf16>
    %c1_30 = arith.constant 1 : index
    %c1_31 = arith.constant 1 : index
    %c0_32 = arith.constant 0 : index
    %44 = vector.load %arg12[%c1_30, %c1_31, %c0_32] : memref<18x18x128xbf16, #tpu.memory_space<vmem>>, vector<16x16x128xbf16>
    tpu.vector_store %arg12[%c1_30, %c1_31, %c0_32], %43 {strides = array<i32>} : memref<18x18x128xbf16, #tpu.memory_space<vmem>>, vector<16x16x128xbf16>,
    %c0_33 = arith.constant 0 : index
    %c0_34 = arith.constant 0 : index
    %c0_35 = arith.constant 0 : index
    %45 = vector.load %arg12[%c0_33, %c0_34, %c0_35] : memref<18x18x128xbf16, #tpu.memory_space<vmem>>, vector<18x18x128xbf16>
    %46 = vector.extract_strided_slice %45 {offsets = [0, 0, 0], sizes = [16, 16, 128], strides = [1, 1, 1]} : vector<18x18x128xbf16> to vector<16x16x128xbf16>
    %47 = vector.extract_strided_slice %45 {offsets = [0, 1, 0], sizes = [16, 16, 128], strides = [1, 1, 1]} : vector<18x18x128xbf16> to vector<16x16x128xbf16>
    %48 = vector.extract_strided_slice %45 {offsets = [0, 2, 0], sizes = [16, 16, 128], strides = [1, 1, 1]} : vector<18x18x128xbf16> to vector<16x16x128xbf16>
    %49 = tpu.concatenate %46, %47, %48 in 2 : vector<16x16x128xbf16>, vector<16x16x128xbf16>, vector<16x16x128xbf16> -> vector<16x16x384xbf16>
    %50 = vector.shape_cast %49 : vector<16x16x384xbf16> to vector<256x384xbf16>
    %c0_36 = arith.constant 0 : index
    %c0_37 = arith.constant 0 : index
    %c0_38 = arith.constant 0 : index
    %51 = vector.load %arg5[%c0_36, %c0_37, %c0_38] : memref<3x384x128xbf16, #tpu.memory_space<vmem>>, vector<1x384x128xbf16>
    %52 = vector.shape_cast %51 : vector<1x384x128xbf16> to vector<384x128xbf16>
    %cst_39 = arith.constant dense<0.000000e+00> : vector<256x128xf32>
    %53 = tpu.matmul %50, %52, %cst_39 {dimension_numbers = #tpu.dot_dimension_numbers<[1], [0], [0], [1], [0, 0, 1, 1], [], []>} : vector<256x384xbf16>, vector<384x128xbf16>, vector<256x128xf32> -> vector<256x128xf32>
    %54 = vector.extract_strided_slice %45 {offsets = [1, 0, 0], sizes = [16, 16, 128], strides = [1, 1, 1]} : vector<18x18x128xbf16> to vector<16x16x128xbf16>
    %55 = vector.extract_strided_slice %45 {offsets = [1, 1, 0], sizes = [16, 16, 128], strides = [1, 1, 1]} : vector<18x18x128xbf16> to vector<16x16x128xbf16>
    %56 = vector.extract_strided_slice %45 {offsets = [1, 2, 0], sizes = [16, 16, 128], strides = [1, 1, 1]} : vector<18x18x128xbf16> to vector<16x16x128xbf16>
    %57 = tpu.concatenate %54, %55, %56 in 2 : vector<16x16x128xbf16>, vector<16x16x128xbf16>, vector<16x16x128xbf16> -> vector<16x16x384xbf16>
    %58 = vector.shape_cast %57 : vector<16x16x384xbf16> to vector<256x384xbf16>
    %c1_40 = arith.constant 1 : index
    %c0_41 = arith.constant 0 : index
    %c0_42 = arith.constant 0 : index
    %59 = vector.load %arg5[%c1_40, %c0_41, %c0_42] : memref<3x384x128xbf16, #tpu.memory_space<vmem>>, vector<1x384x128xbf16>
    %60 = vector.shape_cast %59 : vector<1x384x128xbf16> to vector<384x128xbf16>
    %cst_43 = arith.constant dense<0.000000e+00> : vector<256x128xf32>
    %61 = tpu.matmul %58, %60, %cst_43 {dimension_numbers = #tpu.dot_dimension_numbers<[1], [0], [0], [1], [0, 0, 1, 1], [], []>} : vector<256x384xbf16>, vector<384x128xbf16>, vector<256x128xf32> -> vector<256x128xf32>
    %62 = arith.addf %53, %61 : vector<256x128xf32>
    %63 = vector.extract_strided_slice %45 {offsets = [2, 0, 0], sizes = [16, 16, 128], strides = [1, 1, 1]} : vector<18x18x128xbf16> to vector<16x16x128xbf16>
    %64 = vector.extract_strided_slice %45 {offsets = [2, 1, 0], sizes = [16, 16, 128], strides = [1, 1, 1]} : vector<18x18x128xbf16> to vector<16x16x128xbf16>
    %65 = vector.extract_strided_slice %45 {offsets = [2, 2, 0], sizes = [16, 16, 128], strides = [1, 1, 1]} : vector<18x18x128xbf16> to vector<16x16x128xbf16>
    %66 = tpu.concatenate %63, %64, %65 in 2 : vector<16x16x128xbf16>, vector<16x16x128xbf16>, vector<16x16x128xbf16> -> vector<16x16x384xbf16>
    %67 = vector.shape_cast %66 : vector<16x16x384xbf16> to vector<256x384xbf16>
    %c2_44 = arith.constant 2 : index
    %c0_45 = arith.constant 0 : index
    %c0_46 = arith.constant 0 : index
    %68 = vector.load %arg5[%c2_44, %c0_45, %c0_46] : memref<3x384x128xbf16, #tpu.memory_space<vmem>>, vector<1x384x128xbf16>
    %69 = vector.shape_cast %68 : vector<1x384x128xbf16> to vector<384x128xbf16>
    %cst_47 = arith.constant dense<0.000000e+00> : vector<256x128xf32>
    %70 = tpu.matmul %67, %69, %cst_47 {dimension_numbers = #tpu.dot_dimension_numbers<[1], [0], [0], [1], [0, 0, 1, 1], [], []>} : vector<256x384xbf16>, vector<384x128xbf16>, vector<256x128xf32> -> vector<256x128xf32>
    %71 = arith.addf %62, %70 : vector<256x128xf32>
    %c0_48 = arith.constant 0 : index
    %c0_49 = arith.constant 0 : index
    %72 = vector.load %arg6[%c0_48, %c0_49] : memref<1x128xf32, #tpu.memory_space<vmem>>, vector<1x128xf32>
    %73 = vector.broadcast %72 : vector<1x128xf32> to vector<256x128xf32>
    %74 = arith.mulf %71, %73 : vector<256x128xf32>
    %c0_50 = arith.constant 0 : index
    %c0_51 = arith.constant 0 : index
    %75 = vector.load %arg7[%c0_50, %c0_51] : memref<1x128xf32, #tpu.memory_space<vmem>>, vector<1x128xf32>
    %76 = vector.broadcast %75 : vector<1x128xf32> to vector<256x128xf32>
    %77 = arith.addf %74, %76 : vector<256x128xf32>
    %78 = vector.extract_strided_slice %1 {offsets = [1, 1, 0], sizes = [16, 16, 128], strides = [1, 1, 1]} : vector<18x18x128xbf16> to vector<16x16x128xbf16>
    %79 = vector.shape_cast %78 : vector<16x16x128xbf16> to vector<256x128xbf16>
    %c0_52 = arith.constant 0 : index
    %c0_53 = arith.constant 0 : index
    %80 = vector.load %arg8[%c0_52, %c0_53] : memref<128x128xbf16, #tpu.memory_space<vmem>>, vector<128x128xbf16>
    %cst_54 = arith.constant dense<0.000000e+00> : vector<256x128xf32>
    %81 = tpu.matmul %79, %80, %cst_54 {dimension_numbers = #tpu.dot_dimension_numbers<[1], [0], [0], [1], [0, 0, 1, 1], [], []>} : vector<256x128xbf16>, vector<128x128xbf16>, vector<256x128xf32> -> vector<256x128xf32>
    %c0_55 = arith.constant 0 : index
    %c0_56 = arith.constant 0 : index
    %82 = vector.load %arg9[%c0_55, %c0_56] : memref<1x128xf32, #tpu.memory_space<vmem>>, vector<1x128xf32>
    %83 = vector.broadcast %82 : vector<1x128xf32> to vector<256x128xf32>
    %84 = arith.mulf %81, %83 : vector<256x128xf32>
    %c0_57 = arith.constant 0 : index
    %c0_58 = arith.constant 0 : index
    %85 = vector.load %arg10[%c0_57, %c0_58] : memref<1x128xf32, #tpu.memory_space<vmem>>, vector<1x128xf32>
    %86 = vector.broadcast %85 : vector<1x128xf32> to vector<256x128xf32>
    %87 = arith.addf %84, %86 : vector<256x128xf32>
    %88 = arith.addf %77, %87 : vector<256x128xf32>
    %cst_59 = arith.constant 0.000000e+00 : f32
    %89 = vector.broadcast %cst_59 : f32 to vector<256x128xf32>
    %90 = arith.maximumf %88, %89 : vector<256x128xf32>
    %91 = vector.shape_cast %90 : vector<256x128xf32> to vector<16x16x128xf32>
    %c0_60 = arith.constant 0 : index
    %c0_61 = arith.constant 0 : index
    %c0_62 = arith.constant 0 : index
    %c0_63 = arith.constant 0 : index
    %92 = vector.load %arg11[%c0_60, %c0_61, %c0_62, %c0_63] : memref<1x16x16x128xf32, #tpu.memory_space<vmem>>, vector<1x16x16x128xf32>
    %93 = vector.shape_cast %92 : vector<1x16x16x128xf32> to vector<16x16x128xf32>
    %94 = vector.shape_cast %91 : vector<16x16x128xf32> to vector<1x16x16x128xf32>
    tpu.vector_store %arg11[%c0_60, %c0_61, %c0_62, %c0_63], %94 {strides = array<i32>} : memref<1x16x16x128xf32, #tpu.memory_space<vmem>>, vector<1x16x16x128xf32>,
    return
  }
  func.func @transform_0(%arg0: i32) -> (i32, i32, i32, i32) {
    %c0_i32 = arith.constant 0 : i32
    %c0_i32_0 = arith.constant 0 : i32
    %c0_i32_1 = arith.constant 0 : i32
    %c0_i32_2 = arith.constant 0 : i32
    return %arg0, %c0_i32, %c0_i32_0, %c0_i32_1 : i32, i32, i32, i32
  }
  func.func @transform_1(%arg0: i32) -> (i32, i32, i32) {
    %c0_i32 = arith.constant 0 : i32
    %c0_i32_0 = arith.constant 0 : i32
    %c0_i32_1 = arith.constant 0 : i32
    %c0_i32_2 = arith.constant 0 : i32
    return %c0_i32, %c0_i32_0, %c0_i32_1 : i32, i32, i32
  }
  func.func @transform_2(%arg0: i32) -> (i32, i32) {
    %c0_i32 = arith.constant 0 : i32
    %c0_i32_0 = arith.constant 0 : i32
    %c0_i32_1 = arith.constant 0 : i32
    return %c0_i32, %c0_i32_0 : i32, i32
  }
  func.func @transform_3(%arg0: i32) -> (i32, i32) {
    %c0_i32 = arith.constant 0 : i32
    %c0_i32_0 = arith.constant 0 : i32
    %c0_i32_1 = arith.constant 0 : i32
    return %c0_i32, %c0_i32_0 : i32, i32
  }
  func.func @transform_4(%arg0: i32) -> (i32, i32, i32) {
    %c0_i32 = arith.constant 0 : i32
    %c0_i32_0 = arith.constant 0 : i32
    %c0_i32_1 = arith.constant 0 : i32
    %c0_i32_2 = arith.constant 0 : i32
    return %c0_i32, %c0_i32_0, %c0_i32_1 : i32, i32, i32
  }
  func.func @transform_5(%arg0: i32) -> (i32, i32) {
    %c0_i32 = arith.constant 0 : i32
    %c0_i32_0 = arith.constant 0 : i32
    %c0_i32_1 = arith.constant 0 : i32
    return %c0_i32, %c0_i32_0 : i32, i32
  }
  func.func @transform_6(%arg0: i32) -> (i32, i32) {
    %c0_i32 = arith.constant 0 : i32
    %c0_i32_0 = arith.constant 0 : i32
    %c0_i32_1 = arith.constant 0 : i32
    return %c0_i32, %c0_i32_0 : i32, i32
  }
  func.func @transform_7(%arg0: i32) -> (i32, i32) {
    %c0_i32 = arith.constant 0 : i32
    %c0_i32_0 = arith.constant 0 : i32
    %c0_i32_1 = arith.constant 0 : i32
    return %c0_i32, %c0_i32_0 : i32, i32
  }
  func.func @transform_8(%arg0: i32) -> (i32, i32) {
    %c0_i32 = arith.constant 0 : i32
    %c0_i32_0 = arith.constant 0 : i32
    %c0_i32_1 = arith.constant 0 : i32
    return %c0_i32, %c0_i32_0 : i32, i32
  }
  func.func @transform_9(%arg0: i32) -> (i32, i32) {
    %c0_i32 = arith.constant 0 : i32
    %c0_i32_0 = arith.constant 0 : i32
    %c0_i32_1 = arith.constant 0 : i32
    return %c0_i32, %c0_i32_0 : i32, i32
  }
  func.func @transform_10(%arg0: i32) -> (i32, i32, i32, i32) {
    %c0_i32 = arith.constant 0 : i32
    %c0_i32_0 = arith.constant 0 : i32
    %c0_i32_1 = arith.constant 0 : i32
    %c0_i32_2 = arith.constant 0 : i32
    return %arg0, %c0_i32, %c0_i32_0, %c0_i32_1 : i32, i32, i32, i32
  }
}

</mosaic_0001>

<llo_original>
// kernel: tpu_custom_call.1
$region0: #{tpu_custom_call.1}
  #allocation0 [shape = 'u32[]', space=smem, size = 0x4, offset = 0x4, fixed_abs, tag = 'smem constant byte address 0x4 - core index']
  #allocation1 [shape = 'u32[144,128]{1,0:T(1,128)}', space=vmem, size = 0x12000, scoped, tag = 'internal scratch']
  #allocation2 [shape = 'bf16[18,18,128]{2,1,0:T(8,128)(2,1)}', space=vmem, size = 0x1b000, scoped, tag = 'scratch operand']
  %s0 = inlined_call_operand.vmem [shape: bf16[2,18,18,128], index: 0, kind: input, shape index: {}]
  %s1 = inlined_call_operand.vmem [shape: bf16[3,384,128], index: 1, kind: input, shape index: {}]
  %s2 = inlined_call_operand.vmem [shape: f32[1,128], index: 2, kind: input, shape index: {}]
  %s3 = inlined_call_operand.vmem [shape: f32[1,128], index: 3, kind: input, shape index: {}]
  %s4 = inlined_call_operand.hbm [shape: bf16[3,384,128], index: 4, kind: input, shape index: {}]
  %s5 = inlined_call_operand.vmem [shape: f32[1,128], index: 5, kind: input, shape index: {}]
  %s6 = inlined_call_operand.vmem [shape: f32[1,128], index: 6, kind: input, shape index: {}]
  %s7 = inlined_call_operand.vmem [shape: bf16[128,128], index: 7, kind: input, shape index: {}]
  %s8 = inlined_call_operand.vmem [shape: f32[1,128], index: 8, kind: input, shape index: {}]
  %s9 = inlined_call_operand.vmem [shape: f32[1,128], index: 9, kind: input, shape index: {}]
  %s10 = inlined_call_operand.hbm [shape: f32[2,16,16,128], index: 10, kind: output, shape index: {}]
  %s11 = sld [smem:[#allocation0]]
  $region77: #{tpu_custom_call.1} parent=0
    _
  %s13 = ssub.s32 1, %s11
  %s14 = scalar_select 0, %s13, %s11
  $region1: #{tpu_custom_call.1} parent=0
    #allocation3 [shape = 'u8[294912]{0}', space=vmem, size = 0x48000, scoped, tag = 'input window, operand 4, single buffered']
    #allocation4 [shape = 's32[2]{0}', space=sflag, size = 0x8, scoped, tag = 'scoped memory for tpu_custom_call.1']
    #allocation5 [shape = 's32[2]{0}', space=sflag, size = 0x8, scoped, tag = 'scoped memory for tpu_custom_call.1']
    #allocation6 [shape = 'u8[262144]{0}', space=vmem, size = 0x40000, scoped, tag = 'output window, operand 0']
    %15 = vsyncpa [#allocation4], 0
    %16 = vsyncpa [#allocation5], 0
    %s17 = scalar_lea.sflag [#allocation5], 1
    %18 = vsyncpa %s17, 0
    loop: start=0, step=1, limit=4
    $region2: #{tpu_custom_call.1} parent=1 // loop_pre_header
      _
    $region3: #{tpu_custom_call.1} parent=1 // loop_header
      %s20 = sphi 0, %s24
      %p21 = scmp.ge.s32.totalorder %s20, 4
      %s30 = sphi 0, %s32
      %s33 = sphi 0, %s30
      %s34 = sphi 0, %s33
      %s50 = sphi 0, %s34
      %s54 = sphi 0, %s54
      %s56 = sphi 0, %s54
      %s57 = sphi 0, %s56
      %s71 = sphi 0, %s57
      %s75 = sphi 0, %s75
      %s77 = sphi 0, %s75
      %s78 = sphi 0, %s77
      %s92 = sphi 0, %s78
      %s96 = sphi 0, %s96
      %s98 = sphi 0, %s96
      %s99 = sphi 0, %s98
      %s113 = sphi 0, %s99
      %s117 = sphi 0, %s117
      %s119 = sphi 0, %s117
      %s120 = sphi 0, %s119
      %s134 = sphi 0, %s120
      %s138 = sphi 0, %s138
      %s140 = sphi 0, %s138
      %s141 = sphi 0, %s140
      %s155 = sphi 0, %s141
      %s159 = sphi 0, %s159
      %s161 = sphi 0, %s159
      %s162 = sphi 0, %s161
      %s176 = sphi 0, %s162
      %s180 = sphi 0, %s180
      %s182 = sphi 0, %s180
      %s183 = sphi 0, %s182
      %s197 = sphi 0, %s183
      %s201 = sphi 0, %s201
      %s203 = sphi 0, %s201
      %s204 = sphi 0, %s203
      %s218 = sphi 0, %s204
      %s222 = sphi 0, %s222
      %s224 = sphi 0, %s222
      %s225 = sphi 0, %s224
      %s239 = sphi 0, %s225
      %s245 = sphi 0, %s247
      %s248 = sphi 0, %s245
      %s249 = sphi 0, %s248
      %s265 = sphi 0, %s249
    $region4: #{tpu_custom_call.1} parent=1 // loop_header_branch
      %23 = sbr.rel (%p21) target = $region8
    $region5: #{tpu_custom_call.1} parent=1 // loop_body
      %s25 = ssub.s32 %s20, 1
      %s26 = ssub.s32 %s20, 2
      %s27 = sadd.s32 %s20, 1
      %s28 = ssub.s32 %s20, %s27
      %p29 = scmp.eq.s32.totalorder %s28, 0
      %s31 = sadd.s32 %s30, 1
      %s32 = scalar_select %p29, %s30, %s31
      %p35 = pneg %p29
      %p36 = scmp.eq.s32.totalorder %s20, 1
      %p37 = por %p35, %p36
      %p38 = scmp.ne.s32.totalorder %s30, %s33
      %p39 = scmp.eq.s32.totalorder %s20, 0
      %p40 = por %p38, %p39
      %p41 = scmp.ne.s32.totalorder %s30, %s33
      %p42 = scmp.eq.s32.totalorder %s25, 1
      %p43 = por %p41, %p42
      %p44 = scmp.ne.s32.totalorder %s33, %s34
      %p45 = scmp.eq.s32.totalorder %s25, 0
      %p46 = por %p44, %p45
      %p47 = scmp.ne.s32.totalorder %s33, %s34
      %p48 = scmp.eq.s32.totalorder %s26, 1
      %p49 = por %p47, %p48
      %p51 = scmp.ne.s32.totalorder %s34, %s50
      %p52 = scmp.eq.s32.totalorder %s26, 0
      %p53 = por %p51, %p52
      %s55 = sadd.s32 %s54, 1
      %p58 = scmp.eq.s32.totalorder %s20, 1
      %p59 = scmp.ne.s32.totalorder %s54, %s56
      %p60 = scmp.eq.s32.totalorder %s20, 0
      %p61 = por %p59, %p60
      %p62 = scmp.ne.s32.totalorder %s54, %s56
      %p63 = scmp.eq.s32.totalorder %s25, 1
      %p64 = por %p62, %p63
      %p65 = scmp.ne.s32.totalorder %s56, %s57
      %p66 = scmp.eq.s32.totalorder %s25, 0
      %p67 = por %p65, %p66
      %p68 = scmp.ne.s32.totalorder %s56, %s57
      %p69 = scmp.eq.s32.totalorder %s26, 1
      %p70 = por %p68, %p69
      %p72 = scmp.ne.s32.totalorder %s57, %s71
      %p73 = scmp.eq.s32.totalorder %s26, 0
      %p74 = por %p72, %p73
      %s76 = sadd.s32 %s75, 1
      %p79 = scmp.eq.s32.totalorder %s20, 1
      %p80 = scmp.ne.s32.totalorder %s75, %s77
      %p81 = scmp.eq.s32.totalorder %s20, 0
      %p82 = por %p80, %p81
      %p83 = scmp.ne.s32.totalorder %s75, %s77
      %p84 = scmp.eq.s32.totalorder %s25, 1
      %p85 = por %p83, %p84
      %p86 = scmp.ne.s32.totalorder %s77, %s78
      %p87 = scmp.eq.s32.totalorder %s25, 0
      %p88 = por %p86, %p87
      %p89 = scmp.ne.s32.totalorder %s77, %s78
      %p90 = scmp.eq.s32.totalorder %s26, 1
      %p91 = por %p89, %p90
      %p93 = scmp.ne.s32.totalorder %s78, %s92
      %p94 = scmp.eq.s32.totalorder %s26, 0
      %p95 = por %p93, %p94
      %s97 = sadd.s32 %s96, 1
      %p100 = scmp.eq.s32.totalorder %s20, 1
      %p101 = scmp.ne.s32.totalorder %s96, %s98
      %p102 = scmp.eq.s32.totalorder %s20, 0
      %p103 = por %p101, %p102
      %p104 = scmp.ne.s32.totalorder %s96, %s98
      %p105 = scmp.eq.s32.totalorder %s25, 1
      %p106 = por %p104, %p105
      %p107 = scmp.ne.s32.totalorder %s98, %s99
      %p108 = scmp.eq.s32.totalorder %s25, 0
      %p109 = por %p107, %p108
      %p110 = scmp.ne.s32.totalorder %s98, %s99
      %p111 = scmp.eq.s32.totalorder %s26, 1
      %p112 = por %p110, %p111
      %p114 = scmp.ne.s32.totalorder %s99, %s113
      %p115 = scmp.eq.s32.totalorder %s26, 0
      %p116 = por %p114, %p115
      %s118 = sadd.s32 %s117, 1
      %p121 = scmp.eq.s32.totalorder %s20, 1
      %p122 = scmp.ne.s32.totalorder %s117, %s119
      %p123 = scmp.eq.s32.totalorder %s20, 0
      %p124 = por %p122, %p123
      %p125 = scmp.ne.s32.totalorder %s117, %s119
      %p126 = scmp.eq.s32.totalorder %s25, 1
      %p127 = por %p125, %p126
      %p128 = scmp.ne.s32.totalorder %s119, %s120
      %p129 = scmp.eq.s32.totalorder %s25, 0
      %p130 = por %p128, %p129
      %p131 = scmp.ne.s32.totalorder %s119, %s120
      %p132 = scmp.eq.s32.totalorder %s26, 1
      %p133 = por %p131, %p132
      %p135 = scmp.ne.s32.totalorder %s120, %s134
      %p136 = scmp.eq.s32.totalorder %s26, 0
      %p137 = por %p135, %p136
      %s139 = sadd.s32 %s138, 1
      %p142 = scmp.eq.s32.totalorder %s20, 1
      %p143 = scmp.ne.s32.totalorder %s138, %s140
      %p144 = scmp.eq.s32.totalorder %s20, 0
      %p145 = por %p143, %p144
      %p146 = scmp.ne.s32.totalorder %s138, %s140
      %p147 = scmp.eq.s32.totalorder %s25, 1
      %p148 = por %p146, %p147
      %p149 = scmp.ne.s32.totalorder %s140, %s141
      %p150 = scmp.eq.s32.totalorder %s25, 0
      %p151 = por %p149, %p150
      %p152 = scmp.ne.s32.totalorder %s140, %s141
      %p153 = scmp.eq.s32.totalorder %s26, 1
      %p154 = por %p152, %p153
      %p156 = scmp.ne.s32.totalorder %s141, %s155
      %p157 = scmp.eq.s32.totalorder %s26, 0
      %p158 = por %p156, %p157
      %s160 = sadd.s32 %s159, 1
      %p163 = scmp.eq.s32.totalorder %s20, 1
      %p164 = scmp.ne.s32.totalorder %s159, %s161
      %p165 = scmp.eq.s32.totalorder %s20, 0
      %p166 = por %p164, %p165
      %p167 = scmp.ne.s32.totalorder %s159, %s161
      %p168 = scmp.eq.s32.totalorder %s25, 1
      %p169 = por %p167, %p168
      %p170 = scmp.ne.s32.totalorder %s161, %s162
      %p171 = scmp.eq.s32.totalorder %s25, 0
      %p172 = por %p170, %p171
      %p173 = scmp.ne.s32.totalorder %s161, %s162
      %p174 = scmp.eq.s32.totalorder %s26, 1
      %p175 = por %p173, %p174
      %p177 = scmp.ne.s32.totalorder %s162, %s176
      %p178 = scmp.eq.s32.totalorder %s26, 0
      %p179 = por %p177, %p178
      %s181 = sadd.s32 %s180, 1
      %p184 = scmp.eq.s32.totalorder %s20, 1
      %p185 = scmp.ne.s32.totalorder %s180, %s182
      %p186 = scmp.eq.s32.totalorder %s20, 0
      %p187 = por %p185, %p186
      %p188 = scmp.ne.s32.totalorder %s180, %s182
      %p189 = scmp.eq.s32.totalorder %s25, 1
      %p190 = por %p188, %p189
      %p191 = scmp.ne.s32.totalorder %s182, %s183
      %p192 = scmp.eq.s32.totalorder %s25, 0
      %p193 = por %p191, %p192
      %p194 = scmp.ne.s32.totalorder %s182, %s183
      %p195 = scmp.eq.s32.totalorder %s26, 1
      %p196 = por %p194, %p195
      %p198 = scmp.ne.s32.totalorder %s183, %s197
      %p199 = scmp.eq.s32.totalorder %s26, 0
      %p200 = por %p198, %p199
      %s202 = sadd.s32 %s201, 1
      %p205 = scmp.eq.s32.totalorder %s20, 1
      %p206 = scmp.ne.s32.totalorder %s201, %s203
      %p207 = scmp.eq.s32.totalorder %s20, 0
      %p208 = por %p206, %p207
      %p209 = scmp.ne.s32.totalorder %s201, %s203
      %p210 = scmp.eq.s32.totalorder %s25, 1
      %p211 = por %p209, %p210
      %p212 = scmp.ne.s32.totalorder %s203, %s204
      %p213 = scmp.eq.s32.totalorder %s25, 0
      %p214 = por %p212, %p213
      %p215 = scmp.ne.s32.totalorder %s203, %s204
      %p216 = scmp.eq.s32.totalorder %s26, 1
      %p217 = por %p215, %p216
      %p219 = scmp.ne.s32.totalorder %s204, %s218
      %p220 = scmp.eq.s32.totalorder %s26, 0
      %p221 = por %p219, %p220
      %s223 = sadd.s32 %s222, 1
      %p226 = scmp.eq.s32.totalorder %s20, 1
      %p227 = scmp.ne.s32.totalorder %s222, %s224
      %p228 = scmp.eq.s32.totalorder %s20, 0
      %p229 = por %p227, %p228
      %p230 = scmp.ne.s32.totalorder %s222, %s224
      %p231 = scmp.eq.s32.totalorder %s25, 1
      %p232 = por %p230, %p231
      %p233 = scmp.ne.s32.totalorder %s224, %s225
      %p234 = scmp.eq.s32.totalorder %s25, 0
      %p235 = por %p233, %p234
      %p236 = scmp.ne.s32.totalorder %s224, %s225
      %p237 = scmp.eq.s32.totalorder %s26, 1
      %p238 = por %p236, %p237
      %p240 = scmp.ne.s32.totalorder %s225, %s239
      %p241 = scmp.eq.s32.totalorder %s26, 0
      %p242 = por %p240, %p241
      %s243 = ssub.s32 %s20, %s27
      %p244 = scmp.eq.s32.totalorder %s243, 0
      %s246 = sadd.s32 %s245, 1
      %s247 = scalar_select %p244, %s245, %s246
      %p250 = pneg %p244
      %p251 = scmp.eq.s32.totalorder %s20, 1
      %p252 = por %p250, %p251
      %p253 = scmp.ne.s32.totalorder %s245, %s248
      %p254 = scmp.eq.s32.totalorder %s20, 0
      %p255 = por %p253, %p254
      %p256 = scmp.ne.s32.totalorder %s245, %s248
      %p257 = scmp.eq.s32.totalorder %s25, 1
      %p258 = por %p256, %p257
      %p259 = scmp.ne.s32.totalorder %s248, %s249
      %p260 = scmp.eq.s32.totalorder %s25, 0
      %p261 = por %p259, %p260
      %p262 = scmp.ne.s32.totalorder %s248, %s249
      %p263 = scmp.eq.s32.totalorder %s26, 1
      %p264 = por %p262, %p263
      %p266 = scmp.ne.s32.totalorder %s249, %s265
      %p267 = scmp.eq.s32.totalorder %s26, 0
      %p268 = por %p266, %p267
      %p269 = scmp.le.s32.totalorder 1, %s20
      %p270 = scmp.lt.s32.totalorder %s20, 3
      %p271 = pnand %p269, %p270
      %p272 = pneg %p271
      // Predicated region
      $region9: #{tpu_custom_call.1} parent=5 // pred_check
        _
      $region10: #{tpu_custom_call.1} parent=5 // pred_check_branch
        %274 = sbr.rel (%p271) target = $region12
      $region11: #{tpu_custom_call.1} parent=5 // pred_region
        %s275 = ssub.s32 %s20, 1
        // Predicated region
        $region13: #{tpu_custom_call.1} parent=11 // pred_check
          %p276 = pneg %p67
        $region14: #{tpu_custom_call.1} parent=11 // pred_check_branch
          %278 = sbr.rel (%p276) target = $region16
        $region15: #{tpu_custom_call.1} parent=11 // pred_region
          _
        $region16: #{tpu_custom_call.1} parent=11 // pred_fallthru
          _
        // Predicated region
        $region17: #{tpu_custom_call.1} parent=11 // pred_check
          %p279 = pneg %p88
        $region18: #{tpu_custom_call.1} parent=11 // pred_check_branch
          %281 = sbr.rel (%p279) target = $region20
        $region19: #{tpu_custom_call.1} parent=11 // pred_region
          _
        $region20: #{tpu_custom_call.1} parent=11 // pred_fallthru
          _
        // Predicated region
        $region21: #{tpu_custom_call.1} parent=11 // pred_check
          %p282 = pneg %p109
        $region22: #{tpu_custom_call.1} parent=11 // pred_check_branch
          %284 = sbr.rel (%p282) target = $region24
        $region23: #{tpu_custom_call.1} parent=11 // pred_region
          _
        $region24: #{tpu_custom_call.1} parent=11 // pred_fallthru
          _
        // Predicated region
        $region25: #{tpu_custom_call.1} parent=11 // pred_check
          %p285 = pneg %p130
        $region26: #{tpu_custom_call.1} parent=11 // pred_check_branch
          %287 = sbr.rel (%p285) target = $region28
        $region27: #{tpu_custom_call.1} parent=11 // pred_region
          %s289 = ssub.s32 9216, 9216
          %290 = vsyncadd [#allocation4], %s289
          %s291 = sshll.u32 [#allocation3], 4
          %s292 = int_to_ptr.vmem [resolvable:$true] %s291
          %297 = dma.hbm_to_vmem [thread:$0]  %s4, 9216, %s292, [#allocation4], 64, 64, 4
        $region28: #{tpu_custom_call.1} parent=11 // pred_fallthru
          _
        // Predicated region
        $region29: #{tpu_custom_call.1} parent=11 // pred_check
          %p298 = pneg %p151
        $region30: #{tpu_custom_call.1} parent=11 // pred_check_branch
          %300 = sbr.rel (%p298) target = $region32
        $region31: #{tpu_custom_call.1} parent=11 // pred_region
          _
        $region32: #{tpu_custom_call.1} parent=11 // pred_fallthru
          _
        // Predicated region
        $region33: #{tpu_custom_call.1} parent=11 // pred_check
          %p301 = pneg %p172
        $region34: #{tpu_custom_call.1} parent=11 // pred_check_branch
          %303 = sbr.rel (%p301) target = $region36
        $region35: #{tpu_custom_call.1} parent=11 // pred_region
          _
        $region36: #{tpu_custom_call.1} parent=11 // pred_fallthru
          _
        // Predicated region
        $region37: #{tpu_custom_call.1} parent=11 // pred_check
          %p304 = pneg %p193
        $region38: #{tpu_custom_call.1} parent=11 // pred_check_branch
          %306 = sbr.rel (%p304) target = $region40
        $region39: #{tpu_custom_call.1} parent=11 // pred_region
          _
        $region40: #{tpu_custom_call.1} parent=11 // pred_fallthru
          _
        // Predicated region
        $region41: #{tpu_custom_call.1} parent=11 // pred_check
          %p307 = pneg %p214
        $region42: #{tpu_custom_call.1} parent=11 // pred_check_branch
          %309 = sbr.rel (%p307) target = $region44
        $region43: #{tpu_custom_call.1} parent=11 // pred_region
          _
        $region44: #{tpu_custom_call.1} parent=11 // pred_fallthru
          _
        // Predicated region
        $region45: #{tpu_custom_call.1} parent=11 // pred_check
          %p310 = pneg %p235
        $region46: #{tpu_custom_call.1} parent=11 // pred_check_branch
          %312 = sbr.rel (%p310) target = $region48
        $region47: #{tpu_custom_call.1} parent=11 // pred_region
          _
        $region48: #{tpu_custom_call.1} parent=11 // pred_fallthru
          _
      $region12: #{tpu_custom_call.1} parent=5 // pred_fallthru
        _
      %p313 = scmp.lt.s32.totalorder %s20, 2
      // Predicated region
      $region49: #{tpu_custom_call.1} parent=5 // pred_check
        %p314 = pneg %p313
      $region50: #{tpu_custom_call.1} parent=5 // pred_check_branch
        %316 = sbr.rel (%p314) target = $region52
      $region51: #{tpu_custom_call.1} parent=5 // pred_region
        // Predicated region
        $region53: #{tpu_custom_call.1} parent=51 // pred_check
          %p317 = pneg %p40
        $region54: #{tpu_custom_call.1} parent=51 // pred_check_branch
          %319 = sbr.rel (%p317) target = $region56
        $region55: #{tpu_custom_call.1} parent=51 // pred_region
          %p320 = scmp.lt.s32.totalorder %s20, 1
          %s321 = scalar_select %p320, %s20, 1
          %s322 = smul.addr %s321, 54
          %s323 = smul.addr %s322, 4
          %s324 = scalar_lea.vmem %s0, %s323
        $region56: #{tpu_custom_call.1} parent=51 // pred_fallthru
          _
      $region52: #{tpu_custom_call.1} parent=5 // pred_fallthru
        _
      %p325 = scmp.le.s32.totalorder 1, %s20
      %p326 = scmp.lt.s32.totalorder %s20, 3
      %p327 = pnand %p325, %p326
      %p328 = pneg %p327
      // Predicated region
      $region57: #{tpu_custom_call.1} parent=5 // pred_check
        _
      $region58: #{tpu_custom_call.1} parent=5 // pred_check_branch
        %330 = sbr.rel (%p327) target = $region60
      $region59: #{tpu_custom_call.1} parent=5 // pred_region
        %s331 = ssub.s32 %s20, 1
        // Predicated region
        $region61: #{tpu_custom_call.1} parent=59 // pred_check
          %p332 = pneg %p130
        $region62: #{tpu_custom_call.1} parent=59 // pred_check_branch
          %334 = sbr.rel (%p332) target = $region64
        $region63: #{tpu_custom_call.1} parent=59 // pred_region
          %335 = dma.done [#allocation4], 9216
        $region64: #{tpu_custom_call.1} parent=59 // pred_fallthru
          _
        %p336 = scmp.lt.s32.totalorder %s25, 1
        %s337 = scalar_select %p336, %s25, 1
        %s338 = smul.addr %s337, 54
        %s339 = smul.addr %s338, 4
        %s340 = scalar_lea.vmem %s0, %s339
        %p341 = pneg %p46
        %p342 = pneg %p43
        %p343 = pneg %p67
        %p344 = pneg %p64
        %p345 = pneg %p88
        %p346 = pneg %p85
        %p347 = pneg %p109
        %p348 = pneg %p106
        %p349 = pneg %p130
        %p350 = pneg %p127
        %p351 = pneg %p151
        %p352 = pneg %p148
        %p353 = pneg %p172
        %p354 = pneg %p169
        %p355 = pneg %p193
        %p356 = pneg %p190
        %p357 = pneg %p214
        %p358 = pneg %p211
        %p359 = pneg %p235
        %p360 = pneg %p232
        %p361 = pneg %p261
        %p362 = pneg %p258
        %s363 = sand.u32 %s248, 1
        %s364 = scalar_lea.sflag [#allocation5], %s363
        %s365 = sand.u32 %s248, 1
        %s366 = smul.addr %s365, 256
        %s367 = scalar_lea.vmem [#allocation6], %s366
        %p368 = scmp.lt.s32.totalorder %s25, 1
        %s369 = scalar_select %p368, %s25, 1
        %s370 = smul.addr %s369, 54
        %s371 = smul.addr %s370, 4
        %s372 = scalar_lea.vmem %s0, %s371
        %v374 = vld [vmem:[%s372] sm:$0xf]
        %v375 = vld [vmem:[%s372 + $0x4] sm:$0xf]
        %v376 = vld [vmem:[%s372 + $0x8] sm:$0x1]
        %v377 = vld [vmem:[%s372 + $0xc] sm:$0xf]
        %v378 = vld [vmem:[%s372 + $0x10] sm:$0xf]
        %v379 = vld [vmem:[%s372 + $0x14] sm:$0x1]
        %v380 = vld [vmem:[%s372 + $0x18] sm:$0xf]
        %v381 = vld [vmem:[%s372 + $0x1c] sm:$0xf]
        %v382 = vld [vmem:[%s372 + $0x20] sm:$0x1]
        %v383 = vld [vmem:[%s372 + $0x24] sm:$0xf]
        %v384 = vld [vmem:[%s372 + $0x28] sm:$0xf]
        %v385 = vld [vmem:[%s372 + $0x2c] sm:$0x1]
        %v386 = vld [vmem:[%s372 + $0x30] sm:$0xf]
        %v387 = vld [vmem:[%s372 + $0x34] sm:$0xf]
        %v388 = vld [vmem:[%s372 + $0x38] sm:$0x1]
        %v389 = vld [vmem:[%s372 + $0x3c] sm:$0xf]
        %v390 = vld [vmem:[%s372 + $0x40] sm:$0xf]
        %v391 = vld [vmem:[%s372 + $0x44] sm:$0x1]
        %v392 = vld [vmem:[%s372 + $0x48] sm:$0xf]
        %v393 = vld [vmem:[%s372 + $0x4c] sm:$0xf]
        %v394 = vld [vmem:[%s372 + $0x50] sm:$0x1]
        %v395 = vld [vmem:[%s372 + $0x54] sm:$0xf]
        %v396 = vld [vmem:[%s372 + $0x58] sm:$0xf]
        %v397 = vld [vmem:[%s372 + $0x5c] sm:$0x1]
        %v398 = vld [vmem:[%s372 + $0x60] sm:$0xf]
        %v399 = vld [vmem:[%s372 + $0x64] sm:$0xf]
        %v400 = vld [vmem:[%s372 + $0x68] sm:$0x1]
        %v401 = vld [vmem:[%s372 + $0x6c] sm:$0xf]
        %v402 = vld [vmem:[%s372 + $0x70] sm:$0xf]
        %v403 = vld [vmem:[%s372 + $0x74] sm:$0x1]
        %v404 = vld [vmem:[%s372 + $0x78] sm:$0xf]
        %v405 = vld [vmem:[%s372 + $0x7c] sm:$0xf]
        %v406 = vld [vmem:[%s372 + $0x80] sm:$0x1]
        %v407 = vld [vmem:[%s372 + $0x84] sm:$0xf]
        %v408 = vld [vmem:[%s372 + $0x88] sm:$0xf]
        %v409 = vld [vmem:[%s372 + $0x8c] sm:$0x1]
        %v410 = vld [vmem:[%s372 + $0x90] sm:$0xf]
        %v411 = vld [vmem:[%s372 + $0x94] sm:$0xf]
        %v412 = vld [vmem:[%s372 + $0x98] sm:$0x1]
        %v413 = vld [vmem:[%s372 + $0x9c] sm:$0xf]
        %v414 = vld [vmem:[%s372 + $0xa0] sm:$0xf]
        %v415 = vld [vmem:[%s372 + $0xa4] sm:$0x1]
        %v416 = vld [vmem:[%s372 + $0xa8] sm:$0xf]
        %v417 = vld [vmem:[%s372 + $0xac] sm:$0xf]
        %v418 = vld [vmem:[%s372 + $0xb0] sm:$0x1]
        %v419 = vld [vmem:[%s372 + $0xb4] sm:$0xf]
        %v420 = vld [vmem:[%s372 + $0xb8] sm:$0xf]
        %v421 = vld [vmem:[%s372 + $0xbc] sm:$0x1]
        %v422 = vld [vmem:[%s372 + $0xc0] sm:$0xf]
        %v423 = vld [vmem:[%s372 + $0xc4] sm:$0xf]
        %v424 = vld [vmem:[%s372 + $0xc8] sm:$0x1]
        %v425 = vld [vmem:[%s372 + $0xcc] sm:$0xf]
        %v426 = vld [vmem:[%s372 + $0xd0] sm:$0xf]
        %v427 = vld [vmem:[%s372 + $0xd4] sm:$0x1]
        %v460 = vunpack.c.l.b16 %v374
        %v461 = vunpack.c.l.b16 %v375
        %v462 = vunpack.c.l.b16 %v377
        %v463 = vunpack.c.l.b16 %v378
        %v464 = vunpack.c.l.b16 %v380
        %v465 = vunpack.c.l.b16 %v381
        %v466 = vunpack.c.l.b16 %v383
        %v467 = vunpack.c.l.b16 %v384
        %v468 = vunpack.c.l.b16 %v386
        %v469 = vunpack.c.l.b16 %v387
        %v470 = vunpack.c.l.b16 %v389
        %v471 = vunpack.c.l.b16 %v390
        %v472 = vunpack.c.l.b16 %v392
        %v473 = vunpack.c.l.b16 %v393
        %v474 = vunpack.c.l.b16 %v395
        %v475 = vunpack.c.l.b16 %v396
        %v476 = vunpack.c.l.b16 %v398
        %v477 = vunpack.c.l.b16 %v399
        %v478 = vunpack.c.l.b16 %v401
        %v479 = vunpack.c.l.b16 %v402
        %v480 = vunpack.c.l.b16 %v404
        %v481 = vunpack.c.l.b16 %v405
        %v482 = vunpack.c.l.b16 %v407
        %v483 = vunpack.c.l.b16 %v408
        %v484 = vunpack.c.l.b16 %v410
        %v485 = vunpack.c.l.b16 %v411
        %v486 = vunpack.c.l.b16 %v413
        %v487 = vunpack.c.l.b16 %v414
        %v488 = vunpack.c.l.b16 %v416
        %v489 = vunpack.c.l.b16 %v417
        %v490 = vunpack.c.l.b16 %v419
        %v491 = vunpack.c.l.b16 %v420
        %v492 = vpack.c.b16 %v461, %v460
        %v493 = vpack.c.b16 %v463, %v462
        %v494 = vpack.c.b16 %v465, %v464
        %v495 = vpack.c.b16 %v467, %v466
        %v496 = vpack.c.b16 %v469, %v468
        %v497 = vpack.c.b16 %v471, %v470
        %v498 = vpack.c.b16 %v473, %v472
        %v499 = vpack.c.b16 %v475, %v474
        %v500 = vpack.c.b16 %v477, %v476
        %v501 = vpack.c.b16 %v479, %v478
        %v502 = vpack.c.b16 %v481, %v480
        %v503 = vpack.c.b16 %v483, %v482
        %v504 = vpack.c.b16 %v485, %v484
        %v505 = vpack.c.b16 %v487, %v486
        %v506 = vpack.c.b16 %v489, %v488
        %v507 = vpack.c.b16 %v491, %v490
        %v540 = vunpack.c.l.b16 %v376
        %v541 = vunpack.c.l.b16 %v379
        %v542 = vunpack.c.l.b16 %v382
        %v543 = vunpack.c.l.b16 %v385
        %v544 = vunpack.c.l.b16 %v388
        %v545 = vunpack.c.l.b16 %v391
        %v546 = vunpack.c.l.b16 %v394
        %v547 = vunpack.c.l.b16 %v397
        %v548 = vunpack.c.l.b16 %v400
        %v549 = vunpack.c.l.b16 %v403
        %v550 = vunpack.c.l.b16 %v406
        %v551 = vunpack.c.l.b16 %v409
        %v552 = vunpack.c.l.b16 %v412
        %v553 = vunpack.c.l.b16 %v415
        %v554 = vunpack.c.l.b16 %v418
        %v555 = vunpack.c.l.b16 %v421
        %v556 = vpack.c.b16 %v540, %v540
        %v557 = vpack.c.b16 %v541, %v541
        %v558 = vpack.c.b16 %v542, %v542
        %v559 = vpack.c.b16 %v543, %v543
        %v560 = vpack.c.b16 %v544, %v544
        %v561 = vpack.c.b16 %v545, %v545
        %v562 = vpack.c.b16 %v546, %v546
        %v563 = vpack.c.b16 %v547, %v547
        %v564 = vpack.c.b16 %v548, %v548
        %v565 = vpack.c.b16 %v549, %v549
        %v566 = vpack.c.b16 %v550, %v550
        %v567 = vpack.c.b16 %v551, %v551
        %v568 = vpack.c.b16 %v552, %v552
        %v569 = vpack.c.b16 %v553, %v553
        %v570 = vpack.c.b16 %v554, %v554
        %v571 = vpack.c.b16 %v555, %v555
        %vm572 = vsmask.f32 7424
        %v574 = vshrl.u32 %v492, 16
        %v576 = vshll.u32 %v492, 16
        %v578 = vrot.slane %v576, 1
        %v579 = vor.u32 %v574, %v578
        %v581 = vshll.u32 %v556, 16
        %v583 = vrot.slane %v581, 1
        %v584 = vsel %vm572, %v579, %v583
        %v586 = vshrl.u32 %v493, 16
        %v588 = vshll.u32 %v493, 16
        %v590 = vrot.slane %v588, 1
        %v591 = vor.u32 %v586, %v590
        %v593 = vshll.u32 %v557, 16
        %v595 = vrot.slane %v593, 1
        %v596 = vsel %vm572, %v591, %v595
        %v598 = vshrl.u32 %v494, 16
        %v600 = vshll.u32 %v494, 16
        %v602 = vrot.slane %v600, 1
        %v603 = vor.u32 %v598, %v602
        %v605 = vshll.u32 %v558, 16
        %v607 = vrot.slane %v605, 1
        %v608 = vsel %vm572, %v603, %v607
        %v610 = vshrl.u32 %v495, 16
        %v612 = vshll.u32 %v495, 16
        %v614 = vrot.slane %v612, 1
        %v615 = vor.u32 %v610, %v614
        %v617 = vshll.u32 %v559, 16
        %v619 = vrot.slane %v617, 1
        %v620 = vsel %vm572, %v615, %v619
        %v622 = vshrl.u32 %v496, 16
        %v624 = vshll.u32 %v496, 16
        %v626 = vrot.slane %v624, 1
        %v627 = vor.u32 %v622, %v626
        %v629 = vshll.u32 %v560, 16
        %v631 = vrot.slane %v629, 1
        %v632 = vsel %vm572, %v627, %v631
        %v634 = vshrl.u32 %v497, 16
        %v636 = vshll.u32 %v497, 16
        %v638 = vrot.slane %v636, 1
        %v639 = vor.u32 %v634, %v638
        %v641 = vshll.u32 %v561, 16
        %v643 = vrot.slane %v641, 1
        %v644 = vsel %vm572, %v639, %v643
        %v646 = vshrl.u32 %v498, 16
        %v648 = vshll.u32 %v498, 16
        %v650 = vrot.slane %v648, 1
        %v651 = vor.u32 %v646, %v650
        %v653 = vshll.u32 %v562, 16
        %v655 = vrot.slane %v653, 1
        %v656 = vsel %vm572, %v651, %v655
        %v658 = vshrl.u32 %v499, 16
        %v660 = vshll.u32 %v499, 16
        %v662 = vrot.slane %v660, 1
        %v663 = vor.u32 %v658, %v662
        %v665 = vshll.u32 %v563, 16
        %v667 = vrot.slane %v665, 1
        %v668 = vsel %vm572, %v663, %v667
        %v670 = vshrl.u32 %v500, 16
        %v672 = vshll.u32 %v500, 16
        %v674 = vrot.slane %v672, 1
        %v675 = vor.u32 %v670, %v674
        %v677 = vshll.u32 %v564, 16
        %v679 = vrot.slane %v677, 1
        %v680 = vsel %vm572, %v675, %v679
        %v682 = vshrl.u32 %v501, 16
        %v684 = vshll.u32 %v501, 16
        %v686 = vrot.slane %v684, 1
        %v687 = vor.u32 %v682, %v686
        %v689 = vshll.u32 %v565, 16
        %v691 = vrot.slane %v689, 1
        %v692 = vsel %vm572, %v687, %v691
        %v694 = vshrl.u32 %v502, 16
        %v696 = vshll.u32 %v502, 16
        %v698 = vrot.slane %v696, 1
        %v699 = vor.u32 %v694, %v698
        %v701 = vshll.u32 %v566, 16
        %v703 = vrot.slane %v701, 1
        %v704 = vsel %vm572, %v699, %v703
        %v706 = vshrl.u32 %v503, 16
        %v708 = vshll.u32 %v503, 16
        %v710 = vrot.slane %v708, 1
        %v711 = vor.u32 %v706, %v710
        %v713 = vshll.u32 %v567, 16
        %v715 = vrot.slane %v713, 1
        %v716 = vsel %vm572, %v711, %v715
        %v718 = vshrl.u32 %v504, 16
        %v720 = vshll.u32 %v504, 16
        %v722 = vrot.slane %v720, 1
        %v723 = vor.u32 %v718, %v722
        %v725 = vshll.u32 %v568, 16
        %v727 = vrot.slane %v725, 1
        %v728 = vsel %vm572, %v723, %v727
        %v730 = vshrl.u32 %v505, 16
        %v732 = vshll.u32 %v505, 16
        %v734 = vrot.slane %v732, 1
        %v735 = vor.u32 %v730, %v734
        %v737 = vshll.u32 %v569, 16
        %v739 = vrot.slane %v737, 1
        %v740 = vsel %vm572, %v735, %v739
        %v742 = vshrl.u32 %v506, 16
        %v744 = vshll.u32 %v506, 16
        %v746 = vrot.slane %v744, 1
        %v747 = vor.u32 %v742, %v746
        %v749 = vshll.u32 %v570, 16
        %v751 = vrot.slane %v749, 1
        %v752 = vsel %vm572, %v747, %v751
        %v754 = vshrl.u32 %v507, 16
        %v756 = vshll.u32 %v507, 16
        %v758 = vrot.slane %v756, 1
        %v759 = vor.u32 %v754, %v758
        %v761 = vshll.u32 %v571, 16
        %v763 = vrot.slane %v761, 1
        %v764 = vsel %vm572, %v759, %v763
        %vm781 = vcmask 1046528
        %v782 = vrot.slane %v492, 1
        %v783 = vrot.slane %v556, 1
        %v784 = vsel %vm781, %v782, %v783
        %v785 = vrot.slane %v493, 1
        %v786 = vrot.slane %v557, 1
        %v787 = vsel %vm781, %v785, %v786
        %v788 = vrot.slane %v494, 1
        %v789 = vrot.slane %v558, 1
        %v790 = vsel %vm781, %v788, %v789
        %v791 = vrot.slane %v495, 1
        %v792 = vrot.slane %v559, 1
        %v793 = vsel %vm781, %v791, %v792
        %v794 = vrot.slane %v496, 1
        %v795 = vrot.slane %v560, 1
        %v796 = vsel %vm781, %v794, %v795
        %v797 = vrot.slane %v497, 1
        %v798 = vrot.slane %v561, 1
        %v799 = vsel %vm781, %v797, %v798
        %v800 = vrot.slane %v498, 1
        %v801 = vrot.slane %v562, 1
        %v802 = vsel %vm781, %v800, %v801
        %v803 = vrot.slane %v499, 1
        %v804 = vrot.slane %v563, 1
        %v805 = vsel %vm781, %v803, %v804
        %v806 = vrot.slane %v500, 1
        %v807 = vrot.slane %v564, 1
        %v808 = vsel %vm781, %v806, %v807
        %v809 = vrot.slane %v501, 1
        %v810 = vrot.slane %v565, 1
        %v811 = vsel %vm781, %v809, %v810
        %v812 = vrot.slane %v502, 1
        %v813 = vrot.slane %v566, 1
        %v814 = vsel %vm781, %v812, %v813
        %v815 = vrot.slane %v503, 1
        %v816 = vrot.slane %v567, 1
        %v817 = vsel %vm781, %v815, %v816
        %v818 = vrot.slane %v504, 1
        %v819 = vrot.slane %v568, 1
        %v820 = vsel %vm781, %v818, %v819
        %v821 = vrot.slane %v505, 1
        %v822 = vrot.slane %v569, 1
        %v823 = vsel %vm781, %v821, %v822
        %v824 = vrot.slane %v506, 1
        %v825 = vrot.slane %v570, 1
        %v826 = vsel %vm781, %v824, %v825
        %v827 = vrot.slane %v507, 1
        %v828 = vrot.slane %v571, 1
        %v829 = vsel %vm781, %v827, %v828
        %v846 = vld [vmem:[%s1] sm:$0xf]
        %v847 = vld [vmem:[%s1 + $0x4] sm:$0xf]
        %v848 = vld [vmem:[%s1 + $0x8] sm:$0xf]
        %v849 = vld [vmem:[%s1 + $0xc] sm:$0xf]
        %v850 = vld [vmem:[%s1 + $0x10] sm:$0xf]
        %v851 = vld [vmem:[%s1 + $0x14] sm:$0xf]
        %v852 = vld [vmem:[%s1 + $0x18] sm:$0xf]
        %v853 = vld [vmem:[%s1 + $0x1c] sm:$0xf]
        %v854 = vld [vmem:[%s1 + $0x20] sm:$0xf]
        %v855 = vld [vmem:[%s1 + $0x24] sm:$0xf]
        %v856 = vld [vmem:[%s1 + $0x28] sm:$0xf]
        %v857 = vld [vmem:[%s1 + $0x2c] sm:$0xf]
        %v858 = vld [vmem:[%s1 + $0x30] sm:$0xf]
        %v859 = vld [vmem:[%s1 + $0x34] sm:$0xf]
        %v860 = vld [vmem:[%s1 + $0x38] sm:$0xf]
        %v861 = vld [vmem:[%s1 + $0x3c] sm:$0xf]
        %v862 = vld [vmem:[%s1 + $0x40] sm:$0xf]
        %v863 = vld [vmem:[%s1 + $0x44] sm:$0xf]
        %v864 = vld [vmem:[%s1 + $0x48] sm:$0xf]
        %v865 = vld [vmem:[%s1 + $0x4c] sm:$0xf]
        %v866 = vld [vmem:[%s1 + $0x50] sm:$0xf]
        %v867 = vld [vmem:[%s1 + $0x54] sm:$0xf]
        %v868 = vld [vmem:[%s1 + $0x58] sm:$0xf]
        %v869 = vld [vmem:[%s1 + $0x5c] sm:$0xf]
        %v870 = vld [vmem:[%s1 + $0x60] sm:$0xf]
        %v871 = vld [vmem:[%s1 + $0x64] sm:$0xf]
        %v872 = vld [vmem:[%s1 + $0x68] sm:$0xf]
        %v873 = vld [vmem:[%s1 + $0x6c] sm:$0xf]
        %v874 = vld [vmem:[%s1 + $0x70] sm:$0xf]
        %v875 = vld [vmem:[%s1 + $0x74] sm:$0xf]
        %v876 = vld [vmem:[%s1 + $0x78] sm:$0xf]
        %v877 = vld [vmem:[%s1 + $0x7c] sm:$0xf]
        %v878 = vld [vmem:[%s1 + $0x80] sm:$0xf]
        %v879 = vld [vmem:[%s1 + $0x84] sm:$0xf]
        %v880 = vld [vmem:[%s1 + $0x88] sm:$0xf]
        %v881 = vld [vmem:[%s1 + $0x8c] sm:$0xf]
        %v882 = vld [vmem:[%s1 + $0x90] sm:$0xf]
        %v883 = vld [vmem:[%s1 + $0x94] sm:$0xf]
        %v884 = vld [vmem:[%s1 + $0x98] sm:$0xf]
        %v885 = vld [vmem:[%s1 + $0x9c] sm:$0xf]
        %v886 = vld [vmem:[%s1 + $0xa0] sm:$0xf]
        %v887 = vld [vmem:[%s1 + $0xa4] sm:$0xf]
        %v888 = vld [vmem:[%s1 + $0xa8] sm:$0xf]
        %v889 = vld [vmem:[%s1 + $0xac] sm:$0xf]
        %v890 = vld [vmem:[%s1 + $0xb0] sm:$0xf]
        %v891 = vld [vmem:[%s1 + $0xb4] sm:$0xf]
        %v892 = vld [vmem:[%s1 + $0xb8] sm:$0xf]
        %v893 = vld [vmem:[%s1 + $0xbc] sm:$0xf]
        %v896 = vunpack.c.l.b16 %v422
        %v897 = vunpack.c.l.b16 %v423
        %v898 = vpack.c.b16 %v897, %v896
        %v901 = vunpack.c.l.b16 %v424
        %v902 = vpack.c.b16 %v901, %v901
        %v904 = vshrl.u32 %v898, 16
        %v906 = vshll.u32 %v898, 16
        %v908 = vrot.slane %v906, 1
        %v909 = vor.u32 %v904, %v908
        %v911 = vshll.u32 %v902, 16
        %v913 = vrot.slane %v911, 1
        %v914 = vsel %vm572, %v909, %v913
        %v916 = vrot.slane %v898, 1
        %v917 = vrot.slane %v902, 1
        %v918 = vsel %vm781, %v916, %v917
        %s920 = scalar_lea.vmem %s1, 192
        %v921 = vld [vmem:[%s920] sm:$0xf]
        %v922 = vld [vmem:[%s920 + $0x4] sm:$0xf]
        %v923 = vld [vmem:[%s920 + $0x8] sm:$0xf]
        %v924 = vld [vmem:[%s920 + $0xc] sm:$0xf]
        %v925 = vld [vmem:[%s920 + $0x10] sm:$0xf]
        %v926 = vld [vmem:[%s920 + $0x14] sm:$0xf]
        %v927 = vld [vmem:[%s920 + $0x18] sm:$0xf]
        %v928 = vld [vmem:[%s920 + $0x1c] sm:$0xf]
        %v929 = vld [vmem:[%s920 + $0x20] sm:$0xf]
        %v930 = vld [vmem:[%s920 + $0x24] sm:$0xf]
        %v931 = vld [vmem:[%s920 + $0x28] sm:$0xf]
        %v932 = vld [vmem:[%s920 + $0x2c] sm:$0xf]
        %v933 = vld [vmem:[%s920 + $0x30] sm:$0xf]
        %v934 = vld [vmem:[%s920 + $0x34] sm:$0xf]
        %v935 = vld [vmem:[%s920 + $0x38] sm:$0xf]
        %v936 = vld [vmem:[%s920 + $0x3c] sm:$0xf]
        %v937 = vld [vmem:[%s920 + $0x40] sm:$0xf]
        %v938 = vld [vmem:[%s920 + $0x44] sm:$0xf]
        %v939 = vld [vmem:[%s920 + $0x48] sm:$0xf]
        %v940 = vld [vmem:[%s920 + $0x4c] sm:$0xf]
        %v941 = vld [vmem:[%s920 + $0x50] sm:$0xf]
        %v942 = vld [vmem:[%s920 + $0x54] sm:$0xf]
        %v943 = vld [vmem:[%s920 + $0x58] sm:$0xf]
        %v944 = vld [vmem:[%s920 + $0x5c] sm:$0xf]
        %v945 = vld [vmem:[%s920 + $0x60] sm:$0xf]
        %v946 = vld [vmem:[%s920 + $0x64] sm:$0xf]
        %v947 = vld [vmem:[%s920 + $0x68] sm:$0xf]
        %v948 = vld [vmem:[%s920 + $0x6c] sm:$0xf]
        %v949 = vld [vmem:[%s920 + $0x70] sm:$0xf]
        %v950 = vld [vmem:[%s920 + $0x74] sm:$0xf]
        %v951 = vld [vmem:[%s920 + $0x78] sm:$0xf]
        %v952 = vld [vmem:[%s920 + $0x7c] sm:$0xf]
        %v953 = vld [vmem:[%s920 + $0x80] sm:$0xf]
        %v954 = vld [vmem:[%s920 + $0x84] sm:$0xf]
        %v955 = vld [vmem:[%s920 + $0x88] sm:$0xf]
        %v956 = vld [vmem:[%s920 + $0x8c] sm:$0xf]
        %v957 = vld [vmem:[%s920 + $0x90] sm:$0xf]
        %v958 = vld [vmem:[%s920 + $0x94] sm:$0xf]
        %v959 = vld [vmem:[%s920 + $0x98] sm:$0xf]
        %v960 = vld [vmem:[%s920 + $0x9c] sm:$0xf]
        %v961 = vld [vmem:[%s920 + $0xa0] sm:$0xf]
        %v962 = vld [vmem:[%s920 + $0xa4] sm:$0xf]
        %v963 = vld [vmem:[%s920 + $0xa8] sm:$0xf]
        %v964 = vld [vmem:[%s920 + $0xac] sm:$0xf]
        %v965 = vld [vmem:[%s920 + $0xb0] sm:$0xf]
        %v966 = vld [vmem:[%s920 + $0xb4] sm:$0xf]
        %v967 = vld [vmem:[%s920 + $0xb8] sm:$0xf]
        %v968 = vld [vmem:[%s920 + $0xbc] sm:$0xf]
        %v1017 = vunpack.c.l.b16 %v921
        %v1018 = vunpack.c.l.b16 %v922
        %v1019 = vunpack.c.l.b16 %v923
        %v1020 = vunpack.c.l.b16 %v924
        %v1021 = vunpack.c.l.b16 %v925
        %v1022 = vunpack.c.l.b16 %v926
        %v1023 = vunpack.c.l.b16 %v927
        %v1024 = vunpack.c.l.b16 %v928
        %v1025 = vunpack.c.l.b16 %v929
        %v1026 = vunpack.c.l.b16 %v930
        %v1027 = vunpack.c.l.b16 %v931
        %v1028 = vunpack.c.l.b16 %v932
        %v1029 = vunpack.c.l.b16 %v933
        %v1030 = vunpack.c.l.b16 %v934
        %v1031 = vunpack.c.l.b16 %v935
        %v1032 = vunpack.c.l.b16 %v936
        %v1033 = vunpack.c.l.b16 %v937
        %v1034 = vunpack.c.l.b16 %v938
        %v1035 = vunpack.c.l.b16 %v939
        %v1036 = vunpack.c.l.b16 %v940
        %v1037 = vunpack.c.l.b16 %v941
        %v1038 = vunpack.c.l.b16 %v942
        %v1039 = vunpack.c.l.b16 %v943
        %v1040 = vunpack.c.l.b16 %v944
        %v1041 = vunpack.c.l.b16 %v945
        %v1042 = vunpack.c.l.b16 %v946
        %v1043 = vunpack.c.l.b16 %v947
        %v1044 = vunpack.c.l.b16 %v948
        %v1045 = vunpack.c.l.b16 %v949
        %v1046 = vunpack.c.l.b16 %v950
        %v1047 = vunpack.c.l.b16 %v951
        %v1048 = vunpack.c.l.b16 %v952
        %v1049 = vunpack.c.l.b16 %v953
        %v1050 = vunpack.c.l.b16 %v954
        %v1051 = vunpack.c.l.b16 %v955
        %v1052 = vunpack.c.l.b16 %v956
        %v1053 = vunpack.c.l.b16 %v957
        %v1054 = vunpack.c.l.b16 %v958
        %v1055 = vunpack.c.l.b16 %v959
        %v1056 = vunpack.c.l.b16 %v960
        %v1057 = vunpack.c.l.b16 %v961
        %v1058 = vunpack.c.l.b16 %v962
        %v1059 = vunpack.c.l.b16 %v963
        %v1060 = vunpack.c.l.b16 %v964
        %v1061 = vunpack.c.l.b16 %v965
        %v1062 = vunpack.c.l.b16 %v966
        %v1063 = vunpack.c.l.b16 %v967
        %v1064 = vunpack.c.l.b16 %v968
        %v1065 = vpack.c.b16 %v1018, %v1017
        %v1066 = vpack.c.b16 %v1020, %v1019
        %v1067 = vpack.c.b16 %v1022, %v1021
        %v1068 = vpack.c.b16 %v1024, %v1023
        %v1069 = vpack.c.b16 %v1026, %v1025
        %v1070 = vpack.c.b16 %v1028, %v1027
        %v1071 = vpack.c.b16 %v1030, %v1029
        %v1072 = vpack.c.b16 %v1032, %v1031
        %v1073 = vpack.c.b16 %v1034, %v1033
        %v1074 = vpack.c.b16 %v1036, %v1035
        %v1075 = vpack.c.b16 %v1038, %v1037
        %v1076 = vpack.c.b16 %v1040, %v1039
        %v1077 = vpack.c.b16 %v1042, %v1041
        %v1078 = vpack.c.b16 %v1044, %v1043
        %v1079 = vpack.c.b16 %v1046, %v1045
        %v1080 = vpack.c.b16 %v1048, %v1047
        %v1081 = vpack.c.b16 %v1050, %v1049
        %v1082 = vpack.c.b16 %v1052, %v1051
        %v1083 = vpack.c.b16 %v1054, %v1053
        %v1084 = vpack.c.b16 %v1056, %v1055
        %v1085 = vpack.c.b16 %v1058, %v1057
        %v1086 = vpack.c.b16 %v1060, %v1059
        %v1087 = vpack.c.b16 %v1062, %v1061
        %v1088 = vpack.c.b16 %v1064, %v1063
        %1113 = vmatprep.subr.bf16.mxu0 0
        %1114 = vmatpush1.bf16.msra.mxu0 %v1065
        %1115 = vmatprep.subr.bf16.mxu0 0
        %1116 = vmatpush1.bf16.msra.mxu0 %v1066
        %1117 = vmatprep.subr.bf16.mxu0 0
        %1118 = vmatpush1.bf16.msra.mxu0 %v1067
        %1119 = vmatprep.subr.bf16.mxu0 0
        %1120 = vmatpush1.bf16.msra.mxu0 %v1068
        %1121 = vmatprep.subr.bf16.mxu0 0
        %1122 = vmatpush1.bf16.msra.mxu0 %v1069
        %1123 = vmatprep.subr.bf16.mxu0 0
        %1124 = vmatpush1.bf16.msra.mxu0 %v1070
        %1125 = vmatprep.subr.bf16.mxu0 0
        %1126 = vmatpush1.bf16.msra.mxu0 %v1071
        %1127 = vmatprep.subr.bf16.mxu0 0
        %1128 = vmatpush1.bf16.msra.mxu0 %v1072
        %1129 = vmatprep.subr.bf16.mxu0 0
        %1130 = vmatpush1.bf16.msra.mxu0 %v1073
        %1131 = vmatprep.subr.bf16.mxu0 0
        %1132 = vmatpush1.bf16.msra.mxu0 %v1074
        %1133 = vmatprep.subr.bf16.mxu0 0
        %1134 = vmatpush1.bf16.msra.mxu0 %v1075
        %1135 = vmatprep.subr.bf16.mxu0 0
        %1136 = vmatpush1.bf16.msra.mxu0 %v1076
        %1137 = vmatprep.subr.bf16.mxu0 0
        %1138 = vmatpush1.bf16.msra.mxu0 %v1077
        %1139 = vmatprep.subr.bf16.mxu0 0
        %1140 = vmatpush1.bf16.msra.mxu0 %v1078
        %1141 = vmatprep.subr.bf16.mxu0 0
        %1142 = vmatpush1.bf16.msra.mxu0 %v1079
        %1143 = vmatprep.subr.bf16.mxu0 0
        %1144 = vmatpush1.bf16.msra.mxu0 %v1080
        %1145 = vmatprep.mubr.bf16.mxu0 %v596
        %1146 = vmatmul.mubr.bf16.gmra.mrb[0].mxu0 %v493
        %v1147 = vpop.f32.mrb[0].mxu0
        %v1148 = vadd.f32 0.0, %v1147
        %v1149 = vpop.f32.mrb[0].mxu0
        %v1150 = vpop.f32.mrb[0].mxu0
        %v1151 = vadd.f32 0.0, %v1150
        %v1152 = vpop.f32.mrb[0].mxu0
        %1153 = vmatprep.mubr.bf16.mxu0 %v608
        %1154 = vmatmul.mubr.bf16.gmra.mrb[0].mxu0 %v494
        %v1155 = vpop.f32.mrb[0].mxu0
        %v1156 = vadd.f32 0.0, %v1155
        %v1157 = vpop.f32.mrb[0].mxu0
        %v1158 = vpop.f32.mrb[0].mxu0
        %v1159 = vadd.f32 0.0, %v1158
        %v1160 = vpop.f32.mrb[0].mxu0
        %1161 = vmatprep.mubr.bf16.mxu0 %v620
        %1162 = vmatmul.mubr.bf16.gmra.mrb[0].mxu0 %v495
        %v1163 = vpop.f32.mrb[0].mxu0
        %v1164 = vadd.f32 0.0, %v1163
        %v1165 = vpop.f32.mrb[0].mxu0
        %v1166 = vpop.f32.mrb[0].mxu0
        %v1167 = vadd.f32 0.0, %v1166
        %v1168 = vpop.f32.mrb[0].mxu0
        %1169 = vmatprep.mubr.bf16.mxu0 %v632
        %1170 = vmatmul.mubr.bf16.gmra.mrb[0].mxu0 %v496
        %v1171 = vpop.f32.mrb[0].mxu0
        %v1172 = vadd.f32 0.0, %v1171
        %v1173 = vpop.f32.mrb[0].mxu0
        %v1174 = vpop.f32.mrb[0].mxu0
        %v1175 = vadd.f32 0.0, %v1174
        %v1176 = vpop.f32.mrb[0].mxu0
        %1177 = vmatprep.mubr.bf16.mxu0 %v644
        %1178 = vmatmul.mubr.bf16.gmra.mrb[0].mxu0 %v497
        %v1179 = vpop.f32.mrb[0].mxu0
        %v1180 = vadd.f32 0.0, %v1179
        %v1181 = vpop.f32.mrb[0].mxu0
        %v1182 = vpop.f32.mrb[0].mxu0
        %v1183 = vadd.f32 0.0, %v1182
        %v1184 = vpop.f32.mrb[0].mxu0
        %1185 = vmatprep.mubr.bf16.mxu0 %v656
        %1186 = vmatmul.mubr.bf16.gmra.mrb[0].mxu0 %v498
        %v1187 = vpop.f32.mrb[0].mxu0
        %v1188 = vadd.f32 0.0, %v1187
        %v1189 = vpop.f32.mrb[0].mxu0
        %v1190 = vpop.f32.mrb[0].mxu0
        %v1191 = vadd.f32 0.0, %v1190
        %v1192 = vpop.f32.mrb[0].mxu0
        %1193 = vmatprep.mubr.bf16.mxu0 %v668
        %1194 = vmatmul.mubr.bf16.gmra.mrb[0].mxu0 %v499
        %v1195 = vpop.f32.mrb[0].mxu0
        %v1196 = vadd.f32 0.0, %v1195
        %v1197 = vpop.f32.mrb[0].mxu0
        %v1198 = vpop.f32.mrb[0].mxu0
        %v1199 = vadd.f32 0.0, %v1198
        %v1200 = vpop.f32.mrb[0].mxu0
        %1201 = vmatprep.mubr.bf16.mxu0 %v680
        %1202 = vmatmul.mubr.bf16.gmra.mrb[0].mxu0 %v500
        %v1203 = vpop.f32.mrb[0].mxu0
        %v1204 = vadd.f32 0.0, %v1203
        %v1205 = vpop.f32.mrb[0].mxu0
        %v1206 = vpop.f32.mrb[0].mxu0
        %v1207 = vadd.f32 0.0, %v1206
        %v1208 = vpop.f32.mrb[0].mxu0
        %1209 = vmatprep.mubr.bf16.mxu0 %v692
        %1210 = vmatmul.mubr.bf16.gmra.mrb[0].mxu0 %v501
        %v1211 = vpop.f32.mrb[0].mxu0
        %v1212 = vadd.f32 0.0, %v1211
        %v1213 = vpop.f32.mrb[0].mxu0
        %v1214 = vpop.f32.mrb[0].mxu0
        %v1215 = vadd.f32 0.0, %v1214
        %v1216 = vpop.f32.mrb[0].mxu0
        %1217 = vmatprep.mubr.bf16.mxu0 %v704
        %1218 = vmatmul.mubr.bf16.gmra.mrb[0].mxu0 %v502
        %v1219 = vpop.f32.mrb[0].mxu0
        %v1220 = vadd.f32 0.0, %v1219
        %v1221 = vpop.f32.mrb[0].mxu0
        %v1222 = vpop.f32.mrb[0].mxu0
        %v1223 = vadd.f32 0.0, %v1222
        %v1224 = vpop.f32.mrb[0].mxu0
        %1225 = vmatprep.mubr.bf16.mxu0 %v716
        %1226 = vmatmul.mubr.bf16.gmra.mrb[0].mxu0 %v503
        %v1227 = vpop.f32.mrb[0].mxu0
        %v1228 = vadd.f32 0.0, %v1227
        %v1229 = vpop.f32.mrb[0].mxu0
        %v1230 = vpop.f32.mrb[0].mxu0
        %v1231 = vadd.f32 0.0, %v1230
        %v1232 = vpop.f32.mrb[0].mxu0
        %1233 = vmatprep.mubr.bf16.mxu0 %v728
        %1234 = vmatmul.mubr.bf16.gmra.mrb[0].mxu0 %v504
        %v1235 = vpop.f32.mrb[0].mxu0
        %v1236 = vadd.f32 0.0, %v1235
        %v1237 = vpop.f32.mrb[0].mxu0
        %v1238 = vpop.f32.mrb[0].mxu0
        %v1239 = vadd.f32 0.0, %v1238
        %v1240 = vpop.f32.mrb[0].mxu0
        %1241 = vmatprep.mubr.bf16.mxu0 %v740
        %1242 = vmatmul.mubr.bf16.gmra.mrb[0].mxu0 %v505
        %v1243 = vpop.f32.mrb[0].mxu0
        %v1244 = vadd.f32 0.0, %v1243
        %v1245 = vpop.f32.mrb[0].mxu0
        %v1246 = vpop.f32.mrb[0].mxu0
        %v1247 = vadd.f32 0.0, %v1246
        %v1248 = vpop.f32.mrb[0].mxu0
        %1249 = vmatprep.mubr.bf16.mxu0 %v752
        %1250 = vmatmul.mubr.bf16.gmra.mrb[0].mxu0 %v506
        %v1251 = vpop.f32.mrb[0].mxu0
        %v1252 = vadd.f32 0.0, %v1251
        %v1253 = vpop.f32.mrb[0].mxu0
        %v1254 = vpop.f32.mrb[0].mxu0
        %v1255 = vadd.f32 0.0, %v1254
        %v1256 = vpop.f32.mrb[0].mxu0
        %1257 = vmatprep.mubr.bf16.mxu0 %v764
        %1258 = vmatmul.mubr.bf16.gmra.mrb[0].mxu0 %v507
        %v1259 = vpop.f32.mrb[0].mxu0
        %v1260 = vadd.f32 0.0, %v1259
        %v1261 = vpop.f32.mrb[0].mxu0
        %v1262 = vpop.f32.mrb[0].mxu0
        %v1263 = vadd.f32 0.0, %v1262
        %v1264 = vpop.f32.mrb[0].mxu0
        %1265 = vmatprep.mubr.bf16.mxu0 %v914
        %1266 = vmatmul.mubr.bf16.gmra.mrb[0].mxu0 %v898
        %v1267 = vpop.f32.mrb[0].mxu0
        %v1268 = vadd.f32 0.0, %v1267
        %v1269 = vpop.f32.mrb[0].mxu0
        %v1270 = vpop.f32.mrb[0].mxu0
        %v1271 = vadd.f32 0.0, %v1270
        %v1272 = vpop.f32.mrb[0].mxu0
        %1273 = vdwg.mxu0
        %1274 = vmatprep.subr.bf16.mxu0 0
        %1275 = vmatpush1.bf16.msra.mxu0 %v1081
        %1276 = vmatprep.subr.bf16.mxu0 0
        %1277 = vmatpush1.bf16.msra.mxu0 %v1082
        %1278 = vmatprep.subr.bf16.mxu0 0
        %1279 = vmatpush1.bf16.msra.mxu0 %v1083
        %1280 = vmatprep.subr.bf16.mxu0 0
        %1281 = vmatpush1.bf16.msra.mxu0 %v1084
        %1282 = vmatprep.subr.bf16.mxu0 0
        %1283 = vmatpush1.bf16.msra.mxu0 %v1085
        %1284 = vmatprep.subr.bf16.mxu0 0
        %1285 = vmatpush1.bf16.msra.mxu0 %v1086
        %1286 = vmatprep.subr.bf16.mxu0 0
        %1287 = vmatpush1.bf16.msra.mxu0 %v1087
        %1288 = vmatprep.subr.bf16.mxu0 0
        %1289 = vmatpush1.bf16.msra.mxu0 %v1088
        %1290 = vmatprep.subr.bf16.mxu0 0
        %1291 = vmatpush1.bf16.msra.mxu0 0
        %1292 = vmatprep.subr.bf16.mxu0 0
        %1293 = vmatpush1.bf16.msra.mxu0 0
        %1294 = vmatprep.subr.bf16.mxu0 0
        %1295 = vmatpush1.bf16.msra.mxu0 0
        %1296 = vmatprep.subr.bf16.mxu0 0
        %1297 = vmatpush1.bf16.msra.mxu0 0
        %1298 = vmatprep.subr.bf16.mxu0 0
        %1299 = vmatpush1.bf16.msra.mxu0 0
        %1300 = vmatprep.subr.bf16.mxu0 0
        %1301 = vmatpush1.bf16.msra.mxu0 0
        %1302 = vmatprep.subr.bf16.mxu0 0
        %1303 = vmatpush1.bf16.msra.mxu0 0
        %1304 = vmatprep.subr.bf16.mxu0 0
        %1305 = vmatpush1.bf16.msra.mxu0 0
        %1306 = vmatprep.mubr.bf16.mxu0 0
        %1307 = vmatmul.mubr.bf16.gmra.mrb[0].mxu0 %v787
        %v1308 = vpop.f32.mrb[0].mxu0
        %v1309 = vadd.f32 %v1148, %v1308
        %v1310 = vpop.f32.mrb[0].mxu0
        %v1311 = vpop.f32.mrb[0].mxu0
        %v1312 = vadd.f32 %v1151, %v1311
        %v1313 = vpop.f32.mrb[0].mxu0
        %1314 = vmatprep.mubr.bf16.mxu0 0
        %1315 = vmatmul.mubr.bf16.gmra.mrb[0].mxu0 %v790
        %v1316 = vpop.f32.mrb[0].mxu0
        %v1317 = vadd.f32 %v1156, %v1316
        %v1318 = vpop.f32.mrb[0].mxu0
        %v1319 = vpop.f32.mrb[0].mxu0
        %v1320 = vadd.f32 %v1159, %v1319
        %v1321 = vpop.f32.mrb[0].mxu0
        %1322 = vmatprep.mubr.bf16.mxu0 0
        %1323 = vmatmul.mubr.bf16.gmra.mrb[0].mxu0 %v793
        %v1324 = vpop.f32.mrb[0].mxu0
        %v1325 = vadd.f32 %v1164, %v1324
        %v1326 = vpop.f32.mrb[0].mxu0
        %v1327 = vpop.f32.mrb[0].mxu0
        %v1328 = vadd.f32 %v1167, %v1327
        %v1329 = vpop.f32.mrb[0].mxu0
        %1330 = vmatprep.mubr.bf16.mxu0 0
        %1331 = vmatmul.mubr.bf16.gmra.mrb[0].mxu0 %v796
        %v1332 = vpop.f32.mrb[0].mxu0
        %v1333 = vadd.f32 %v1172, %v1332
        %v1334 = vpop.f32.mrb[0].mxu0
        %v1335 = vpop.f32.mrb[0].mxu0
        %v1336 = vadd.f32 %v1175, %v1335
        %v1337 = vpop.f32.mrb[0].mxu0
        %1338 = vmatprep.mubr.bf16.mxu0 0
        %1339 = vmatmul.mubr.bf16.gmra.mrb[0].mxu0 %v799
        %v1340 = vpop.f32.mrb[0].mxu0
        %v1341 = vadd.f32 %v1180, %v1340
        %v1342 = vpop.f32.mrb[0].mxu0
        %v1343 = vpop.f32.mrb[0].mxu0
        %v1344 = vadd.f32 %v1183, %v1343
        %v1345 = vpop.f32.mrb[0].mxu0
        %1346 = vmatprep.mubr.bf16.mxu0 0
        %1347 = vmatmul.mubr.bf16.gmra.mrb[0].mxu0 %v802
        %v1348 = vpop.f32.mrb[0].mxu0
        %v1349 = vadd.f32 %v1188, %v1348
        %v1350 = vpop.f32.mrb[0].mxu0
        %v1351 = vpop.f32.mrb[0].mxu0
        %v1352 = vadd.f32 %v1191, %v1351
        %v1353 = vpop.f32.mrb[0].mxu0
        %1354 = vmatprep.mubr.bf16.mxu0 0
        %1355 = vmatmul.mubr.bf16.gmra.mrb[0].mxu0 %v805
        %v1356 = vpop.f32.mrb[0].mxu0
        %v1357 = vadd.f32 %v1196, %v1356
        %v1358 = vpop.f32.mrb[0].mxu0
        %v1359 = vpop.f32.mrb[0].mxu0
        %v1360 = vadd.f32 %v1199, %v1359
        %v1361 = vpop.f32.mrb[0].mxu0
        %1362 = vmatprep.mubr.bf16.mxu0 0
        %1363 = vmatmul.mubr.bf16.gmra.mrb[0].mxu0 %v808
        %v1364 = vpop.f32.mrb[0].mxu0
        %v1365 = vadd.f32 %v1204, %v1364
        %v1366 = vpop.f32.mrb[0].mxu0
        %v1367 = vpop.f32.mrb[0].mxu0
        %v1368 = vadd.f32 %v1207, %v1367
        %v1369 = vpop.f32.mrb[0].mxu0
        %1370 = vmatprep.mubr.bf16.mxu0 0
        %1371 = vmatmul.mubr.bf16.gmra.mrb[0].mxu0 %v811
        %v1372 = vpop.f32.mrb[0].mxu0
        %v1373 = vadd.f32 %v1212, %v1372
        %v1374 = vpop.f32.mrb[0].mxu0
        %v1375 = vpop.f32.mrb[0].mxu0
        %v1376 = vadd.f32 %v1215, %v1375
        %v1377 = vpop.f32.mrb[0].mxu0
        %1378 = vmatprep.mubr.bf16.mxu0 0
        %1379 = vmatmul.mubr.bf16.gmra.mrb[0].mxu0 %v814
        %v1380 = vpop.f32.mrb[0].mxu0
        %v1381 = vadd.f32 %v1220, %v1380
        %v1382 = vpop.f32.mrb[0].mxu0
        %v1383 = vpop.f32.mrb[0].mxu0
        %v1384 = vadd.f32 %v1223, %v1383
        %v1385 = vpop.f32.mrb[0].mxu0
        %1386 = vmatprep.mubr.bf16.mxu0 0
        %1387 = vmatmul.mubr.bf16.gmra.mrb[0].mxu0 %v817
        %v1388 = vpop.f32.mrb[0].mxu0
        %v1389 = vadd.f32 %v1228, %v1388
        %v1390 = vpop.f32.mrb[0].mxu0
        %v1391 = vpop.f32.mrb[0].mxu0
        %v1392 = vadd.f32 %v1231, %v1391
        %v1393 = vpop.f32.mrb[0].mxu0
        %1394 = vmatprep.mubr.bf16.mxu0 0
        %1395 = vmatmul.mubr.bf16.gmra.mrb[0].mxu0 %v820
        %v1396 = vpop.f32.mrb[0].mxu0
        %v1397 = vadd.f32 %v1236, %v1396
        %v1398 = vpop.f32.mrb[0].mxu0
        %v1399 = vpop.f32.mrb[0].mxu0
        %v1400 = vadd.f32 %v1239, %v1399
        %v1401 = vpop.f32.mrb[0].mxu0
        %1402 = vmatprep.mubr.bf16.mxu0 0
        %1403 = vmatmul.mubr.bf16.gmra.mrb[0].mxu0 %v823
        %v1404 = vpop.f32.mrb[0].mxu0
        %v1405 = vadd.f32 %v1244, %v1404
        %v1406 = vpop.f32.mrb[0].mxu0
        %v1407 = vpop.f32.mrb[0].mxu0
        %v1408 = vadd.f32 %v1247, %v1407
        %v1409 = vpop.f32.mrb[0].mxu0
        %1410 = vmatprep.mubr.bf16.mxu0 0
        %1411 = vmatmul.mubr.bf16.gmra.mrb[0].mxu0 %v826
        %v1412 = vpop.f32.mrb[0].mxu0
        %v1413 = vadd.f32 %v1252, %v1412
        %v1414 = vpop.f32.mrb[0].mxu0
        %v1415 = vpop.f32.mrb[0].mxu0
        %v1416 = vadd.f32 %v1255, %v1415
        %v1417 = vpop.f32.mrb[0].mxu0
        %1418 = vmatprep.mubr.bf16.mxu0 0
        %1419 = vmatmul.mubr.bf16.gmra.mrb[0].mxu0 %v829
        %v1420 = vpop.f32.mrb[0].mxu0
        %v1421 = vadd.f32 %v1260, %v1420
        %v1422 = vpop.f32.mrb[0].mxu0
        %v1423 = vpop.f32.mrb[0].mxu0
        %v1424 = vadd.f32 %v1263, %v1423
        %v1425 = vpop.f32.mrb[0].mxu0
        %1426 = vmatprep.mubr.bf16.mxu0 0
        %1427 = vmatmul.mubr.bf16.gmra.mrb[0].mxu0 %v918
        %v1428 = vpop.f32.mrb[0].mxu0
        %v1429 = vadd.f32 %v1268, %v1428
        %v1430 = vpop.f32.mrb[0].mxu0
        %v1431 = vpop.f32.mrb[0].mxu0
        %v1432 = vadd.f32 %v1271, %v1431
        %v1433 = vpop.f32.mrb[0].mxu0
        %1434 = vdwg.mxu0
        %v1483 = vunpack.c.l.b16 %v846
        %v1484 = vunpack.c.l.b16 %v847
        %v1485 = vunpack.c.l.b16 %v848
        %v1486 = vunpack.c.l.b16 %v849
        %v1487 = vunpack.c.l.b16 %v850
        %v1488 = vunpack.c.l.b16 %v851
        %v1489 = vunpack.c.l.b16 %v852
        %v1490 = vunpack.c.l.b16 %v853
        %v1491 = vunpack.c.l.b16 %v854
        %v1492 = vunpack.c.l.b16 %v855
        %v1493 = vunpack.c.l.b16 %v856
        %v1494 = vunpack.c.l.b16 %v857
        %v1495 = vunpack.c.l.b16 %v858
        %v1496 = vunpack.c.l.b16 %v859
        %v1497 = vunpack.c.l.b16 %v860
        %v1498 = vunpack.c.l.b16 %v861
        %v1499 = vunpack.c.l.b16 %v862
        %v1500 = vunpack.c.l.b16 %v863
        %v1501 = vunpack.c.l.b16 %v864
        %v1502 = vunpack.c.l.b16 %v865
        %v1503 = vunpack.c.l.b16 %v866
        %v1504 = vunpack.c.l.b16 %v867
        %v1505 = vunpack.c.l.b16 %v868
        %v1506 = vunpack.c.l.b16 %v869
        %v1507 = vunpack.c.l.b16 %v870
        %v1508 = vunpack.c.l.b16 %v871
        %v1509 = vunpack.c.l.b16 %v872
        %v1510 = vunpack.c.l.b16 %v873
        %v1511 = vunpack.c.l.b16 %v874
        %v1512 = vunpack.c.l.b16 %v875
        %v1513 = vunpack.c.l.b16 %v876
        %v1514 = vunpack.c.l.b16 %v877
        %v1515 = vunpack.c.l.b16 %v878
        %v1516 = vunpack.c.l.b16 %v879
        %v1517 = vunpack.c.l.b16 %v880
        %v1518 = vunpack.c.l.b16 %v881
        %v1519 = vunpack.c.l.b16 %v882
        %v1520 = vunpack.c.l.b16 %v883
        %v1521 = vunpack.c.l.b16 %v884
        %v1522 = vunpack.c.l.b16 %v885
        %v1523 = vunpack.c.l.b16 %v886
        %v1524 = vunpack.c.l.b16 %v887
        %v1525 = vunpack.c.l.b16 %v888
        %v1526 = vunpack.c.l.b16 %v889
        %v1527 = vunpack.c.l.b16 %v890
        %v1528 = vunpack.c.l.b16 %v891
        %v1529 = vunpack.c.l.b16 %v892
        %v1530 = vunpack.c.l.b16 %v893
        %v1531 = vpack.c.b16 %v1484, %v1483
        %v1532 = vpack.c.b16 %v1486, %v1485
        %v1533 = vpack.c.b16 %v1488, %v1487
        %v1534 = vpack.c.b16 %v1490, %v1489
        %v1535 = vpack.c.b16 %v1492, %v1491
        %v1536 = vpack.c.b16 %v1494, %v1493
        %v1537 = vpack.c.b16 %v1496, %v1495
        %v1538 = vpack.c.b16 %v1498, %v1497
        %v1539 = vpack.c.b16 %v1500, %v1499
        %v1540 = vpack.c.b16 %v1502, %v1501
        %v1541 = vpack.c.b16 %v1504, %v1503
        %v1542 = vpack.c.b16 %v1506, %v1505
        %v1543 = vpack.c.b16 %v1508, %v1507
        %v1544 = vpack.c.b16 %v1510, %v1509
        %v1545 = vpack.c.b16 %v1512, %v1511
        %v1546 = vpack.c.b16 %v1514, %v1513
        %v1547 = vpack.c.b16 %v1516, %v1515
        %v1548 = vpack.c.b16 %v1518, %v1517
        %v1549 = vpack.c.b16 %v1520, %v1519
        %v1550 = vpack.c.b16 %v1522, %v1521
        %v1551 = vpack.c.b16 %v1524, %v1523
        %v1552 = vpack.c.b16 %v1526, %v1525
        %v1553 = vpack.c.b16 %v1528, %v1527
        %v1554 = vpack.c.b16 %v1530, %v1529
        %1579 = vmatprep.subr.bf16.mxu0 0
        %1580 = vmatpush1.bf16.msra.mxu0 %v1531
        %1581 = vmatprep.subr.bf16.mxu0 0
        %1582 = vmatpush1.bf16.msra.mxu0 %v1532
        %1583 = vmatprep.subr.bf16.mxu0 0
        %1584 = vmatpush1.bf16.msra.mxu0 %v1533
        %1585 = vmatprep.subr.bf16.mxu0 0
        %1586 = vmatpush1.bf16.msra.mxu0 %v1534
        %1587 = vmatprep.subr.bf16.mxu0 0
        %1588 = vmatpush1.bf16.msra.mxu0 %v1535
        %1589 = vmatprep.subr.bf16.mxu0 0
        %1590 = vmatpush1.bf16.msra.mxu0 %v1536
        %1591 = vmatprep.subr.bf16.mxu0 0
        %1592 = vmatpush1.bf16.msra.mxu0 %v1537
        %1593 = vmatprep.subr.bf16.mxu0 0
        %1594 = vmatpush1.bf16.msra.mxu0 %v1538
        %1595 = vmatprep.subr.bf16.mxu0 0
        %1596 = vmatpush1.bf16.msra.mxu0 %v1539
        %1597 = vmatprep.subr.bf16.mxu0 0
        %1598 = vmatpush1.bf16.msra.mxu0 %v1540
        %1599 = vmatprep.subr.bf16.mxu0 0
        %1600 = vmatpush1.bf16.msra.mxu0 %v1541
        %1601 = vmatprep.subr.bf16.mxu0 0
        %1602 = vmatpush1.bf16.msra.mxu0 %v1542
        %1603 = vmatprep.subr.bf16.mxu0 0
        %1604 = vmatpush1.bf16.msra.mxu0 %v1543
        %1605 = vmatprep.subr.bf16.mxu0 0
        %1606 = vmatpush1.bf16.msra.mxu0 %v1544
        %1607 = vmatprep.subr.bf16.mxu0 0
        %1608 = vmatpush1.bf16.msra.mxu0 %v1545
        %1609 = vmatprep.subr.bf16.mxu0 0
        %1610 = vmatpush1.bf16.msra.mxu0 %v1546
        %1611 = vmatprep.mubr.bf16.mxu0 %v584
        %1612 = vmatmul.mubr.bf16.gmra.mrb[0].mxu0 %v492
        %v1613 = vpop.f32.mrb[0].mxu0
        %v1614 = vadd.f32 %v1309, %v1613
        %v1615 = vpop.f32.mrb[0].mxu0
        %v1616 = vpop.f32.mrb[0].mxu0
        %v1617 = vadd.f32 %v1312, %v1616
        %v1618 = vpop.f32.mrb[0].mxu0
        %1619 = vmatprep.mubr.bf16.mxu0 %v596
        %1620 = vmatmul.mubr.bf16.gmra.mrb[0].mxu0 %v493
        %v1621 = vpop.f32.mrb[0].mxu0
        %v1622 = vadd.f32 %v1317, %v1621
        %v1623 = vpop.f32.mrb[0].mxu0
        %v1624 = vpop.f32.mrb[0].mxu0
        %v1625 = vadd.f32 %v1320, %v1624
        %v1626 = vpop.f32.mrb[0].mxu0
        %1627 = vmatprep.mubr.bf16.mxu0 %v608
        %1628 = vmatmul.mubr.bf16.gmra.mrb[0].mxu0 %v494
        %v1629 = vpop.f32.mrb[0].mxu0
        %v1630 = vadd.f32 %v1325, %v1629
        %v1631 = vpop.f32.mrb[0].mxu0
        %v1632 = vpop.f32.mrb[0].mxu0
        %v1633 = vadd.f32 %v1328, %v1632
        %v1634 = vpop.f32.mrb[0].mxu0
        %1635 = vmatprep.mubr.bf16.mxu0 %v620
        %1636 = vmatmul.mubr.bf16.gmra.mrb[0].mxu0 %v495
        %v1637 = vpop.f32.mrb[0].mxu0
        %v1638 = vadd.f32 %v1333, %v1637
        %v1639 = vpop.f32.mrb[0].mxu0
        %v1640 = vpop.f32.mrb[0].mxu0
        %v1641 = vadd.f32 %v1336, %v1640
        %v1642 = vpop.f32.mrb[0].mxu0
        %1643 = vmatprep.mubr.bf16.mxu0 %v632
        %1644 = vmatmul.mubr.bf16.gmra.mrb[0].mxu0 %v496
        %v1645 = vpop.f32.mrb[0].mxu0
        %v1646 = vadd.f32 %v1341, %v1645
        %v1647 = vpop.f32.mrb[0].mxu0
        %v1648 = vpop.f32.mrb[0].mxu0
        %v1649 = vadd.f32 %v1344, %v1648
        %v1650 = vpop.f32.mrb[0].mxu0
        %1651 = vmatprep.mubr.bf16.mxu0 %v644
        %1652 = vmatmul.mubr.bf16.gmra.mrb[0].mxu0 %v497
        %v1653 = vpop.f32.mrb[0].mxu0
        %v1654 = vadd.f32 %v1349, %v1653
        %v1655 = vpop.f32.mrb[0].mxu0
        %v1656 = vpop.f32.mrb[0].mxu0
        %v1657 = vadd.f32 %v1352, %v1656
        %v1658 = vpop.f32.mrb[0].mxu0
        %1659 = vmatprep.mubr.bf16.mxu0 %v656
        %1660 = vmatmul.mubr.bf16.gmra.mrb[0].mxu0 %v498
        %v1661 = vpop.f32.mrb[0].mxu0
        %v1662 = vadd.f32 %v1357, %v1661
        %v1663 = vpop.f32.mrb[0].mxu0
        %v1664 = vpop.f32.mrb[0].mxu0
        %v1665 = vadd.f32 %v1360, %v1664
        %v1666 = vpop.f32.mrb[0].mxu0
        %1667 = vmatprep.mubr.bf16.mxu0 %v668
        %1668 = vmatmul.mubr.bf16.gmra.mrb[0].mxu0 %v499
        %v1669 = vpop.f32.mrb[0].mxu0
        %v1670 = vadd.f32 %v1365, %v1669
        %v1671 = vpop.f32.mrb[0].mxu0
        %v1672 = vpop.f32.mrb[0].mxu0
        %v1673 = vadd.f32 %v1368, %v1672
        %v1674 = vpop.f32.mrb[0].mxu0
        %1675 = vmatprep.mubr.bf16.mxu0 %v680
        %1676 = vmatmul.mubr.bf16.gmra.mrb[0].mxu0 %v500
        %v1677 = vpop.f32.mrb[0].mxu0
        %v1678 = vadd.f32 %v1373, %v1677
        %v1679 = vpop.f32.mrb[0].mxu0
        %v1680 = vpop.f32.mrb[0].mxu0
        %v1681 = vadd.f32 %v1376, %v1680
        %v1682 = vpop.f32.mrb[0].mxu0
        %1683 = vmatprep.mubr.bf16.mxu0 %v692
        %1684 = vmatmul.mubr.bf16.gmra.mrb[0].mxu0 %v501
        %v1685 = vpop.f32.mrb[0].mxu0
        %v1686 = vadd.f32 %v1381, %v1685
        %v1687 = vpop.f32.mrb[0].mxu0
        %v1688 = vpop.f32.mrb[0].mxu0
        %v1689 = vadd.f32 %v1384, %v1688
        %v1690 = vpop.f32.mrb[0].mxu0
        %1691 = vmatprep.mubr.bf16.mxu0 %v704
        %1692 = vmatmul.mubr.bf16.gmra.mrb[0].mxu0 %v502
        %v1693 = vpop.f32.mrb[0].mxu0
        %v1694 = vadd.f32 %v1389, %v1693
        %v1695 = vpop.f32.mrb[0].mxu0
        %v1696 = vpop.f32.mrb[0].mxu0
        %v1697 = vadd.f32 %v1392, %v1696
        %v1698 = vpop.f32.mrb[0].mxu0
        %1699 = vmatprep.mubr.bf16.mxu0 %v716
        %1700 = vmatmul.mubr.bf16.gmra.mrb[0].mxu0 %v503
        %v1701 = vpop.f32.mrb[0].mxu0
        %v1702 = vadd.f32 %v1397, %v1701
        %v1703 = vpop.f32.mrb[0].mxu0
        %v1704 = vpop.f32.mrb[0].mxu0
        %v1705 = vadd.f32 %v1400, %v1704
        %v1706 = vpop.f32.mrb[0].mxu0
        %1707 = vmatprep.mubr.bf16.mxu0 %v728
        %1708 = vmatmul.mubr.bf16.gmra.mrb[0].mxu0 %v504
        %v1709 = vpop.f32.mrb[0].mxu0
        %v1710 = vadd.f32 %v1405, %v1709
        %v1711 = vpop.f32.mrb[0].mxu0
        %v1712 = vpop.f32.mrb[0].mxu0
        %v1713 = vadd.f32 %v1408, %v1712
        %v1714 = vpop.f32.mrb[0].mxu0
        %1715 = vmatprep.mubr.bf16.mxu0 %v740
        %1716 = vmatmul.mubr.bf16.gmra.mrb[0].mxu0 %v505
        %v1717 = vpop.f32.mrb[0].mxu0
        %v1718 = vadd.f32 %v1413, %v1717
        %v1719 = vpop.f32.mrb[0].mxu0
        %v1720 = vpop.f32.mrb[0].mxu0
        %v1721 = vadd.f32 %v1416, %v1720
        %v1722 = vpop.f32.mrb[0].mxu0
        %1723 = vmatprep.mubr.bf16.mxu0 %v752
        %1724 = vmatmul.mubr.bf16.gmra.mrb[0].mxu0 %v506
        %v1725 = vpop.f32.mrb[0].mxu0
        %v1726 = vadd.f32 %v1421, %v1725
        %v1727 = vpop.f32.mrb[0].mxu0
        %v1728 = vpop.f32.mrb[0].mxu0
        %v1729 = vadd.f32 %v1424, %v1728
        %v1730 = vpop.f32.mrb[0].mxu0
        %1731 = vmatprep.mubr.bf16.mxu0 %v764
        %1732 = vmatmul.mubr.bf16.gmra.mrb[0].mxu0 %v507
        %v1733 = vpop.f32.mrb[0].mxu0
        %v1734 = vadd.f32 %v1429, %v1733
        %v1735 = vpop.f32.mrb[0].mxu0
        %v1736 = vpop.f32.mrb[0].mxu0
        %v1737 = vadd.f32 %v1432, %v1736
        %v1738 = vpop.f32.mrb[0].mxu0
        %1739 = vdwg.mxu0
        %1740 = vmatprep.subr.bf16.mxu0 0
        %1741 = vmatpush1.bf16.msra.mxu0 %v1547
        %1742 = vmatprep.subr.bf16.mxu0 0
        %1743 = vmatpush1.bf16.msra.mxu0 %v1548
        %1744 = vmatprep.subr.bf16.mxu0 0
        %1745 = vmatpush1.bf16.msra.mxu0 %v1549
        %1746 = vmatprep.subr.bf16.mxu0 0
        %1747 = vmatpush1.bf16.msra.mxu0 %v1550
        %1748 = vmatprep.subr.bf16.mxu0 0
        %1749 = vmatpush1.bf16.msra.mxu0 %v1551
        %1750 = vmatprep.subr.bf16.mxu0 0
        %1751 = vmatpush1.bf16.msra.mxu0 %v1552
        %1752 = vmatprep.subr.bf16.mxu0 0
        %1753 = vmatpush1.bf16.msra.mxu0 %v1553
        %1754 = vmatprep.subr.bf16.mxu0 0
        %1755 = vmatpush1.bf16.msra.mxu0 %v1554
        %1756 = vmatprep.subr.bf16.mxu0 0
        %1757 = vmatpush1.bf16.msra.mxu0 0
        %1758 = vmatprep.subr.bf16.mxu0 0
        %1759 = vmatpush1.bf16.msra.mxu0 0
        %1760 = vmatprep.subr.bf16.mxu0 0
        %1761 = vmatpush1.bf16.msra.mxu0 0
        %1762 = vmatprep.subr.bf16.mxu0 0
        %1763 = vmatpush1.bf16.msra.mxu0 0
        %1764 = vmatprep.subr.bf16.mxu0 0
        %1765 = vmatpush1.bf16.msra.mxu0 0
        %1766 = vmatprep.subr.bf16.mxu0 0
        %1767 = vmatpush1.bf16.msra.mxu0 0
        %1768 = vmatprep.subr.bf16.mxu0 0
        %1769 = vmatpush1.bf16.msra.mxu0 0
        %1770 = vmatprep.subr.bf16.mxu0 0
        %1771 = vmatpush1.bf16.msra.mxu0 0
        %1772 = vmatprep.mubr.bf16.mxu0 0
        %1773 = vmatmul.mubr.bf16.gmra.mrb[0].mxu0 %v784
        %v1774 = vpop.f32.mrb[0].mxu0
        %v1775 = vadd.f32 %v1614, %v1774
        %v1776 = vpop.f32.mrb[0].mxu0
        %v1777 = vpop.f32.mrb[0].mxu0
        %v1778 = vadd.f32 %v1617, %v1777
        %v1779 = vpop.f32.mrb[0].mxu0
        %1780 = vmatprep.mubr.bf16.mxu0 0
        %1781 = vmatmul.mubr.bf16.gmra.mrb[0].mxu0 %v787
        %v1782 = vpop.f32.mrb[0].mxu0
        %v1783 = vadd.f32 %v1622, %v1782
        %v1784 = vpop.f32.mrb[0].mxu0
        %v1785 = vpop.f32.mrb[0].mxu0
        %v1786 = vadd.f32 %v1625, %v1785
        %v1787 = vpop.f32.mrb[0].mxu0
        %1788 = vmatprep.mubr.bf16.mxu0 0
        %1789 = vmatmul.mubr.bf16.gmra.mrb[0].mxu0 %v790
        %v1790 = vpop.f32.mrb[0].mxu0
        %v1791 = vadd.f32 %v1630, %v1790
        %v1792 = vpop.f32.mrb[0].mxu0
        %v1793 = vpop.f32.mrb[0].mxu0
        %v1794 = vadd.f32 %v1633, %v1793
        %v1795 = vpop.f32.mrb[0].mxu0
        %1796 = vmatprep.mubr.bf16.mxu0 0
        %1797 = vmatmul.mubr.bf16.gmra.mrb[0].mxu0 %v793
        %v1798 = vpop.f32.mrb[0].mxu0
        %v1799 = vadd.f32 %v1638, %v1798
        %v1800 = vpop.f32.mrb[0].mxu0
        %v1801 = vpop.f32.mrb[0].mxu0
        %v1802 = vadd.f32 %v1641, %v1801
        %v1803 = vpop.f32.mrb[0].mxu0
        %1804 = vmatprep.mubr.bf16.mxu0 0
        %1805 = vmatmul.mubr.bf16.gmra.mrb[0].mxu0 %v796
        %v1806 = vpop.f32.mrb[0].mxu0
        %v1807 = vadd.f32 %v1646, %v1806
        %v1808 = vpop.f32.mrb[0].mxu0
        %v1809 = vpop.f32.mrb[0].mxu0
        %v1810 = vadd.f32 %v1649, %v1809
        %v1811 = vpop.f32.mrb[0].mxu0
        %1812 = vmatprep.mubr.bf16.mxu0 0
        %1813 = vmatmul.mubr.bf16.gmra.mrb[0].mxu0 %v799
        %v1814 = vpop.f32.mrb[0].mxu0
        %v1815 = vadd.f32 %v1654, %v1814
        %v1816 = vpop.f32.mrb[0].mxu0
        %v1817 = vpop.f32.mrb[0].mxu0
        %v1818 = vadd.f32 %v1657, %v1817
        %v1819 = vpop.f32.mrb[0].mxu0
        %1820 = vmatprep.mubr.bf16.mxu0 0
        %1821 = vmatmul.mubr.bf16.gmra.mrb[0].mxu0 %v802
        %v1822 = vpop.f32.mrb[0].mxu0
        %v1823 = vadd.f32 %v1662, %v1822
        %v1824 = vpop.f32.mrb[0].mxu0
        %v1825 = vpop.f32.mrb[0].mxu0
        %v1826 = vadd.f32 %v1665, %v1825
        %v1827 = vpop.f32.mrb[0].mxu0
        %1828 = vmatprep.mubr.bf16.mxu0 0
        %1829 = vmatmul.mubr.bf16.gmra.mrb[0].mxu0 %v805
        %v1830 = vpop.f32.mrb[0].mxu0
        %v1831 = vadd.f32 %v1670, %v1830
        %v1832 = vpop.f32.mrb[0].mxu0
        %v1833 = vpop.f32.mrb[0].mxu0
        %v1834 = vadd.f32 %v1673, %v1833
        %v1835 = vpop.f32.mrb[0].mxu0
        %1836 = vmatprep.mubr.bf16.mxu0 0
        %1837 = vmatmul.mubr.bf16.gmra.mrb[0].mxu0 %v808
        %v1838 = vpop.f32.mrb[0].mxu0
        %v1839 = vadd.f32 %v1678, %v1838
        %v1840 = vpop.f32.mrb[0].mxu0
        %v1841 = vpop.f32.mrb[0].mxu0
        %v1842 = vadd.f32 %v1681, %v1841
        %v1843 = vpop.f32.mrb[0].mxu0
        %1844 = vmatprep.mubr.bf16.mxu0 0
        %1845 = vmatmul.mubr.bf16.gmra.mrb[0].mxu0 %v811
        %v1846 = vpop.f32.mrb[0].mxu0
        %v1847 = vadd.f32 %v1686, %v1846
        %v1848 = vpop.f32.mrb[0].mxu0
        %v1849 = vpop.f32.mrb[0].mxu0
        %v1850 = vadd.f32 %v1689, %v1849
        %v1851 = vpop.f32.mrb[0].mxu0
        %1852 = vmatprep.mubr.bf16.mxu0 0
        %1853 = vmatmul.mubr.bf16.gmra.mrb[0].mxu0 %v814
        %v1854 = vpop.f32.mrb[0].mxu0
        %v1855 = vadd.f32 %v1694, %v1854
        %v1856 = vpop.f32.mrb[0].mxu0
        %v1857 = vpop.f32.mrb[0].mxu0
        %v1858 = vadd.f32 %v1697, %v1857
        %v1859 = vpop.f32.mrb[0].mxu0
        %1860 = vmatprep.mubr.bf16.mxu0 0
        %1861 = vmatmul.mubr.bf16.gmra.mrb[0].mxu0 %v817
        %v1862 = vpop.f32.mrb[0].mxu0
        %v1863 = vadd.f32 %v1702, %v1862
        %v1864 = vpop.f32.mrb[0].mxu0
        %v1865 = vpop.f32.mrb[0].mxu0
        %v1866 = vadd.f32 %v1705, %v1865
        %v1867 = vpop.f32.mrb[0].mxu0
        %1868 = vmatprep.mubr.bf16.mxu0 0
        %1869 = vmatmul.mubr.bf16.gmra.mrb[0].mxu0 %v820
        %v1870 = vpop.f32.mrb[0].mxu0
        %v1871 = vadd.f32 %v1710, %v1870
        %v1872 = vpop.f32.mrb[0].mxu0
        %v1873 = vpop.f32.mrb[0].mxu0
        %v1874 = vadd.f32 %v1713, %v1873
        %v1875 = vpop.f32.mrb[0].mxu0
        %1876 = vmatprep.mubr.bf16.mxu0 0
        %1877 = vmatmul.mubr.bf16.gmra.mrb[0].mxu0 %v823
        %v1878 = vpop.f32.mrb[0].mxu0
        %v1879 = vadd.f32 %v1718, %v1878
        %v1880 = vpop.f32.mrb[0].mxu0
        %v1881 = vpop.f32.mrb[0].mxu0
        %v1882 = vadd.f32 %v1721, %v1881
        %v1883 = vpop.f32.mrb[0].mxu0
        %1884 = vmatprep.mubr.bf16.mxu0 0
        %1885 = vmatmul.mubr.bf16.gmra.mrb[0].mxu0 %v826
        %v1886 = vpop.f32.mrb[0].mxu0
        %v1887 = vadd.f32 %v1726, %v1886
        %v1888 = vpop.f32.mrb[0].mxu0
        %v1889 = vpop.f32.mrb[0].mxu0
        %v1890 = vadd.f32 %v1729, %v1889
        %v1891 = vpop.f32.mrb[0].mxu0
        %1892 = vmatprep.mubr.bf16.mxu0 0
        %1893 = vmatmul.mubr.bf16.gmra.mrb[0].mxu0 %v829
        %v1894 = vpop.f32.mrb[0].mxu0
        %v1895 = vadd.f32 %v1734, %v1894
        %v1896 = vpop.f32.mrb[0].mxu0
        %v1897 = vpop.f32.mrb[0].mxu0
        %v1898 = vadd.f32 %v1737, %v1897
        %v1899 = vpop.f32.mrb[0].mxu0
        %1900 = vdwg.mxu0
        %v1903 = vunpack.c.l.b16 %v425
        %v1904 = vunpack.c.l.b16 %v426
        %v1905 = vpack.c.b16 %v1904, %v1903
        %v1908 = vunpack.c.l.b16 %v427
        %v1909 = vpack.c.b16 %v1908, %v1908
        %v1911 = vshrl.u32 %v1905, 16
        %v1913 = vshll.u32 %v1905, 16
        %v1915 = vrot.slane %v1913, 1
        %v1916 = vor.u32 %v1911, %v1915
        %v1918 = vshll.u32 %v1909, 16
        %v1920 = vrot.slane %v1918, 1
        %v1921 = vsel %vm572, %v1916, %v1920
        %v1923 = vrot.slane %v1905, 1
        %v1924 = vrot.slane %v1909, 1
        %v1925 = vsel %vm781, %v1923, %v1924
        %s1927 = scalar_lea.vmem %s1, 384
        %v1928 = vld [vmem:[%s1927] sm:$0xf]
        %v1929 = vld [vmem:[%s1927 + $0x4] sm:$0xf]
        %v1930 = vld [vmem:[%s1927 + $0x8] sm:$0xf]
        %v1931 = vld [vmem:[%s1927 + $0xc] sm:$0xf]
        %v1932 = vld [vmem:[%s1927 + $0x10] sm:$0xf]
        %v1933 = vld [vmem:[%s1927 + $0x14] sm:$0xf]
        %v1934 = vld [vmem:[%s1927 + $0x18] sm:$0xf]
        %v1935 = vld [vmem:[%s1927 + $0x1c] sm:$0xf]
        %v1936 = vld [vmem:[%s1927 + $0x20] sm:$0xf]
        %v1937 = vld [vmem:[%s1927 + $0x24] sm:$0xf]
        %v1938 = vld [vmem:[%s1927 + $0x28] sm:$0xf]
        %v1939 = vld [vmem:[%s1927 + $0x2c] sm:$0xf]
        %v1940 = vld [vmem:[%s1927 + $0x30] sm:$0xf]
        %v1941 = vld [vmem:[%s1927 + $0x34] sm:$0xf]
        %v1942 = vld [vmem:[%s1927 + $0x38] sm:$0xf]
        %v1943 = vld [vmem:[%s1927 + $0x3c] sm:$0xf]
        %v1944 = vld [vmem:[%s1927 + $0x40] sm:$0xf]
        %v1945 = vld [vmem:[%s1927 + $0x44] sm:$0xf]
        %v1946 = vld [vmem:[%s1927 + $0x48] sm:$0xf]
        %v1947 = vld [vmem:[%s1927 + $0x4c] sm:$0xf]
        %v1948 = vld [vmem:[%s1927 + $0x50] sm:$0xf]
        %v1949 = vld [vmem:[%s1927 + $0x54] sm:$0xf]
        %v1950 = vld [vmem:[%s1927 + $0x58] sm:$0xf]
        %v1951 = vld [vmem:[%s1927 + $0x5c] sm:$0xf]
        %v1952 = vld [vmem:[%s1927 + $0x60] sm:$0xf]
        %v1953 = vld [vmem:[%s1927 + $0x64] sm:$0xf]
        %v1954 = vld [vmem:[%s1927 + $0x68] sm:$0xf]
        %v1955 = vld [vmem:[%s1927 + $0x6c] sm:$0xf]
        %v1956 = vld [vmem:[%s1927 + $0x70] sm:$0xf]
        %v1957 = vld [vmem:[%s1927 + $0x74] sm:$0xf]
        %v1958 = vld [vmem:[%s1927 + $0x78] sm:$0xf]
        %v1959 = vld [vmem:[%s1927 + $0x7c] sm:$0xf]
        %v1960 = vld [vmem:[%s1927 + $0x80] sm:$0xf]
        %v1961 = vld [vmem:[%s1927 + $0x84] sm:$0xf]
        %v1962 = vld [vmem:[%s1927 + $0x88] sm:$0xf]
        %v1963 = vld [vmem:[%s1927 + $0x8c] sm:$0xf]
        %v1964 = vld [vmem:[%s1927 + $0x90] sm:$0xf]
        %v1965 = vld [vmem:[%s1927 + $0x94] sm:$0xf]
        %v1966 = vld [vmem:[%s1927 + $0x98] sm:$0xf]
        %v1967 = vld [vmem:[%s1927 + $0x9c] sm:$0xf]
        %v1968 = vld [vmem:[%s1927 + $0xa0] sm:$0xf]
        %v1969 = vld [vmem:[%s1927 + $0xa4] sm:$0xf]
        %v1970 = vld [vmem:[%s1927 + $0xa8] sm:$0xf]
        %v1971 = vld [vmem:[%s1927 + $0xac] sm:$0xf]
        %v1972 = vld [vmem:[%s1927 + $0xb0] sm:$0xf]
        %v1973 = vld [vmem:[%s1927 + $0xb4] sm:$0xf]
        %v1974 = vld [vmem:[%s1927 + $0xb8] sm:$0xf]
        %v1975 = vld [vmem:[%s1927 + $0xbc] sm:$0xf]
        %v2024 = vunpack.c.l.b16 %v1928
        %v2025 = vunpack.c.l.b16 %v1929
        %v2026 = vunpack.c.l.b16 %v1930
        %v2027 = vunpack.c.l.b16 %v1931
        %v2028 = vunpack.c.l.b16 %v1932
        %v2029 = vunpack.c.l.b16 %v1933
        %v2030 = vunpack.c.l.b16 %v1934
        %v2031 = vunpack.c.l.b16 %v1935
        %v2032 = vunpack.c.l.b16 %v1936
        %v2033 = vunpack.c.l.b16 %v1937
        %v2034 = vunpack.c.l.b16 %v1938
        %v2035 = vunpack.c.l.b16 %v1939
        %v2036 = vunpack.c.l.b16 %v1940
        %v2037 = vunpack.c.l.b16 %v1941
        %v2038 = vunpack.c.l.b16 %v1942
        %v2039 = vunpack.c.l.b16 %v1943
        %v2040 = vunpack.c.l.b16 %v1944
        %v2041 = vunpack.c.l.b16 %v1945
        %v2042 = vunpack.c.l.b16 %v1946
        %v2043 = vunpack.c.l.b16 %v1947
        %v2044 = vunpack.c.l.b16 %v1948
        %v2045 = vunpack.c.l.b16 %v1949
        %v2046 = vunpack.c.l.b16 %v1950
        %v2047 = vunpack.c.l.b16 %v1951
        %v2048 = vunpack.c.l.b16 %v1952
        %v2049 = vunpack.c.l.b16 %v1953
        %v2050 = vunpack.c.l.b16 %v1954
        %v2051 = vunpack.c.l.b16 %v1955
        %v2052 = vunpack.c.l.b16 %v1956
        %v2053 = vunpack.c.l.b16 %v1957
        %v2054 = vunpack.c.l.b16 %v1958
        %v2055 = vunpack.c.l.b16 %v1959
        %v2056 = vunpack.c.l.b16 %v1960
        %v2057 = vunpack.c.l.b16 %v1961
        %v2058 = vunpack.c.l.b16 %v1962
        %v2059 = vunpack.c.l.b16 %v1963
        %v2060 = vunpack.c.l.b16 %v1964
        %v2061 = vunpack.c.l.b16 %v1965
        %v2062 = vunpack.c.l.b16 %v1966
        %v2063 = vunpack.c.l.b16 %v1967
        %v2064 = vunpack.c.l.b16 %v1968
        %v2065 = vunpack.c.l.b16 %v1969
        %v2066 = vunpack.c.l.b16 %v1970
        %v2067 = vunpack.c.l.b16 %v1971
        %v2068 = vunpack.c.l.b16 %v1972
        %v2069 = vunpack.c.l.b16 %v1973
        %v2070 = vunpack.c.l.b16 %v1974
        %v2071 = vunpack.c.l.b16 %v1975
        %v2072 = vpack.c.b16 %v2025, %v2024
        %v2073 = vpack.c.b16 %v2027, %v2026
        %v2074 = vpack.c.b16 %v2029, %v2028
        %v2075 = vpack.c.b16 %v2031, %v2030
        %v2076 = vpack.c.b16 %v2033, %v2032
        %v2077 = vpack.c.b16 %v2035, %v2034
        %v2078 = vpack.c.b16 %v2037, %v2036
        %v2079 = vpack.c.b16 %v2039, %v2038
        %v2080 = vpack.c.b16 %v2041, %v2040
        %v2081 = vpack.c.b16 %v2043, %v2042
        %v2082 = vpack.c.b16 %v2045, %v2044
        %v2083 = vpack.c.b16 %v2047, %v2046
        %v2084 = vpack.c.b16 %v2049, %v2048
        %v2085 = vpack.c.b16 %v2051, %v2050
        %v2086 = vpack.c.b16 %v2053, %v2052
        %v2087 = vpack.c.b16 %v2055, %v2054
        %v2088 = vpack.c.b16 %v2057, %v2056
        %v2089 = vpack.c.b16 %v2059, %v2058
        %v2090 = vpack.c.b16 %v2061, %v2060
        %v2091 = vpack.c.b16 %v2063, %v2062
        %v2092 = vpack.c.b16 %v2065, %v2064
        %v2093 = vpack.c.b16 %v2067, %v2066
        %v2094 = vpack.c.b16 %v2069, %v2068
        %v2095 = vpack.c.b16 %v2071, %v2070
        %2120 = vmatprep.subr.bf16.mxu0 0
        %2121 = vmatpush1.bf16.msra.mxu0 %v2072
        %2122 = vmatprep.subr.bf16.mxu0 0
        %2123 = vmatpush1.bf16.msra.mxu0 %v2073
        %2124 = vmatprep.subr.bf16.mxu0 0
        %2125 = vmatpush1.bf16.msra.mxu0 %v2074
        %2126 = vmatprep.subr.bf16.mxu0 0
        %2127 = vmatpush1.bf16.msra.mxu0 %v2075
        %2128 = vmatprep.subr.bf16.mxu0 0
        %2129 = vmatpush1.bf16.msra.mxu0 %v2076
        %2130 = vmatprep.subr.bf16.mxu0 0
        %2131 = vmatpush1.bf16.msra.mxu0 %v2077
        %2132 = vmatprep.subr.bf16.mxu0 0
        %2133 = vmatpush1.bf16.msra.mxu0 %v2078
        %2134 = vmatprep.subr.bf16.mxu0 0
        %2135 = vmatpush1.bf16.msra.mxu0 %v2079
        %2136 = vmatprep.subr.bf16.mxu0 0
        %2137 = vmatpush1.bf16.msra.mxu0 %v2080
        %2138 = vmatprep.subr.bf16.mxu0 0
        %2139 = vmatpush1.bf16.msra.mxu0 %v2081
        %2140 = vmatprep.subr.bf16.mxu0 0
        %2141 = vmatpush1.bf16.msra.mxu0 %v2082
        %2142 = vmatprep.subr.bf16.mxu0 0
        %2143 = vmatpush1.bf16.msra.mxu0 %v2083
        %2144 = vmatprep.subr.bf16.mxu0 0
        %2145 = vmatpush1.bf16.msra.mxu0 %v2084
        %2146 = vmatprep.subr.bf16.mxu0 0
        %2147 = vmatpush1.bf16.msra.mxu0 %v2085
        %2148 = vmatprep.subr.bf16.mxu0 0
        %2149 = vmatpush1.bf16.msra.mxu0 %v2086
        %2150 = vmatprep.subr.bf16.mxu0 0
        %2151 = vmatpush1.bf16.msra.mxu0 %v2087
        %2152 = vmatprep.mubr.bf16.mxu0 %v608
        %2153 = vmatmul.mubr.bf16.gmra.mrb[0].mxu0 %v494
        %v2154 = vpop.f32.mrb[0].mxu0
        %v2155 = vadd.f32 0.0, %v2154
        %v2156 = vpop.f32.mrb[0].mxu0
        %v2157 = vpop.f32.mrb[0].mxu0
        %v2158 = vadd.f32 0.0, %v2157
        %v2159 = vpop.f32.mrb[0].mxu0
        %2160 = vmatprep.mubr.bf16.mxu0 %v620
        %2161 = vmatmul.mubr.bf16.gmra.mrb[0].mxu0 %v495
        %v2162 = vpop.f32.mrb[0].mxu0
        %v2163 = vadd.f32 0.0, %v2162
        %v2164 = vpop.f32.mrb[0].mxu0
        %v2165 = vpop.f32.mrb[0].mxu0
        %v2166 = vadd.f32 0.0, %v2165
        %v2167 = vpop.f32.mrb[0].mxu0
        %2168 = vmatprep.mubr.bf16.mxu0 %v632
        %2169 = vmatmul.mubr.bf16.gmra.mrb[0].mxu0 %v496
        %v2170 = vpop.f32.mrb[0].mxu0
        %v2171 = vadd.f32 0.0, %v2170
        %v2172 = vpop.f32.mrb[0].mxu0
        %v2173 = vpop.f32.mrb[0].mxu0
        %v2174 = vadd.f32 0.0, %v2173
        %v2175 = vpop.f32.mrb[0].mxu0
        %2176 = vmatprep.mubr.bf16.mxu0 %v644
        %2177 = vmatmul.mubr.bf16.gmra.mrb[0].mxu0 %v497
        %v2178 = vpop.f32.mrb[0].mxu0
        %v2179 = vadd.f32 0.0, %v2178
        %v2180 = vpop.f32.mrb[0].mxu0
        %v2181 = vpop.f32.mrb[0].mxu0
        %v2182 = vadd.f32 0.0, %v2181
        %v2183 = vpop.f32.mrb[0].mxu0
        %2184 = vmatprep.mubr.bf16.mxu0 %v656
        %2185 = vmatmul.mubr.bf16.gmra.mrb[0].mxu0 %v498
        %v2186 = vpop.f32.mrb[0].mxu0
        %v2187 = vadd.f32 0.0, %v2186
        %v2188 = vpop.f32.mrb[0].mxu0
        %v2189 = vpop.f32.mrb[0].mxu0
        %v2190 = vadd.f32 0.0, %v2189
        %v2191 = vpop.f32.mrb[0].mxu0
        %2192 = vmatprep.mubr.bf16.mxu0 %v668
        %2193 = vmatmul.mubr.bf16.gmra.mrb[0].mxu0 %v499
        %v2194 = vpop.f32.mrb[0].mxu0
        %v2195 = vadd.f32 0.0, %v2194
        %v2196 = vpop.f32.mrb[0].mxu0
        %v2197 = vpop.f32.mrb[0].mxu0
        %v2198 = vadd.f32 0.0, %v2197
        %v2199 = vpop.f32.mrb[0].mxu0
        %2200 = vmatprep.mubr.bf16.mxu0 %v680
        %2201 = vmatmul.mubr.bf16.gmra.mrb[0].mxu0 %v500
        %v2202 = vpop.f32.mrb[0].mxu0
        %v2203 = vadd.f32 0.0, %v2202
        %v2204 = vpop.f32.mrb[0].mxu0
        %v2205 = vpop.f32.mrb[0].mxu0
        %v2206 = vadd.f32 0.0, %v2205
        %v2207 = vpop.f32.mrb[0].mxu0
        %2208 = vmatprep.mubr.bf16.mxu0 %v692
        %2209 = vmatmul.mubr.bf16.gmra.mrb[0].mxu0 %v501
        %v2210 = vpop.f32.mrb[0].mxu0
        %v2211 = vadd.f32 0.0, %v2210
        %v2212 = vpop.f32.mrb[0].mxu0
        %v2213 = vpop.f32.mrb[0].mxu0
        %v2214 = vadd.f32 0.0, %v2213
        %v2215 = vpop.f32.mrb[0].mxu0
        %2216 = vmatprep.mubr.bf16.mxu0 %v704
        %2217 = vmatmul.mubr.bf16.gmra.mrb[0].mxu0 %v502
        %v2218 = vpop.f32.mrb[0].mxu0
        %v2219 = vadd.f32 0.0, %v2218
        %v2220 = vpop.f32.mrb[0].mxu0
        %v2221 = vpop.f32.mrb[0].mxu0
        %v2222 = vadd.f32 0.0, %v2221
        %v2223 = vpop.f32.mrb[0].mxu0
        %2224 = vmatprep.mubr.bf16.mxu0 %v716
        %2225 = vmatmul.mubr.bf16.gmra.mrb[0].mxu0 %v503
        %v2226 = vpop.f32.mrb[0].mxu0
        %v2227 = vadd.f32 0.0, %v2226
        %v2228 = vpop.f32.mrb[0].mxu0
        %v2229 = vpop.f32.mrb[0].mxu0
        %v2230 = vadd.f32 0.0, %v2229
        %v2231 = vpop.f32.mrb[0].mxu0
        %2232 = vmatprep.mubr.bf16.mxu0 %v728
        %2233 = vmatmul.mubr.bf16.gmra.mrb[0].mxu0 %v504
        %v2234 = vpop.f32.mrb[0].mxu0
        %v2235 = vadd.f32 0.0, %v2234
        %v2236 = vpop.f32.mrb[0].mxu0
        %v2237 = vpop.f32.mrb[0].mxu0
        %v2238 = vadd.f32 0.0, %v2237
        %v2239 = vpop.f32.mrb[0].mxu0
        %2240 = vmatprep.mubr.bf16.mxu0 %v740
        %2241 = vmatmul.mubr.bf16.gmra.mrb[0].mxu0 %v505
        %v2242 = vpop.f32.mrb[0].mxu0
        %v2243 = vadd.f32 0.0, %v2242
        %v2244 = vpop.f32.mrb[0].mxu0
        %v2245 = vpop.f32.mrb[0].mxu0
        %v2246 = vadd.f32 0.0, %v2245
        %v2247 = vpop.f32.mrb[0].mxu0
        %2248 = vmatprep.mubr.bf16.mxu0 %v752
        %2249 = vmatmul.mubr.bf16.gmra.mrb[0].mxu0 %v506
        %v2250 = vpop.f32.mrb[0].mxu0
        %v2251 = vadd.f32 0.0, %v2250
        %v2252 = vpop.f32.mrb[0].mxu0
        %v2253 = vpop.f32.mrb[0].mxu0
        %v2254 = vadd.f32 0.0, %v2253
        %v2255 = vpop.f32.mrb[0].mxu0
        %2256 = vmatprep.mubr.bf16.mxu0 %v764
        %2257 = vmatmul.mubr.bf16.gmra.mrb[0].mxu0 %v507
        %v2258 = vpop.f32.mrb[0].mxu0
        %v2259 = vadd.f32 0.0, %v2258
        %v2260 = vpop.f32.mrb[0].mxu0
        %v2261 = vpop.f32.mrb[0].mxu0
        %v2262 = vadd.f32 0.0, %v2261
        %v2263 = vpop.f32.mrb[0].mxu0
        %2264 = vmatprep.mubr.bf16.mxu0 %v914
        %2265 = vmatmul.mubr.bf16.gmra.mrb[0].mxu0 %v898
        %v2266 = vpop.f32.mrb[0].mxu0
        %v2267 = vadd.f32 0.0, %v2266
        %v2268 = vpop.f32.mrb[0].mxu0
        %v2269 = vpop.f32.mrb[0].mxu0
        %v2270 = vadd.f32 0.0, %v2269
        %v2271 = vpop.f32.mrb[0].mxu0
        %2272 = vmatprep.mubr.bf16.mxu0 %v1921
        %2273 = vmatmul.mubr.bf16.gmra.mrb[0].mxu0 %v1905
        %v2274 = vpop.f32.mrb[0].mxu0
        %v2275 = vadd.f32 0.0, %v2274
        %v2276 = vpop.f32.mrb[0].mxu0
        %v2277 = vpop.f32.mrb[0].mxu0
        %v2278 = vadd.f32 0.0, %v2277
        %v2279 = vpop.f32.mrb[0].mxu0
        %2280 = vdwg.mxu0
        %2281 = vmatprep.subr.bf16.mxu0 0
        %2282 = vmatpush1.bf16.msra.mxu0 %v2088
        %2283 = vmatprep.subr.bf16.mxu0 0
        %2284 = vmatpush1.bf16.msra.mxu0 %v2089
        %2285 = vmatprep.subr.bf16.mxu0 0
        %2286 = vmatpush1.bf16.msra.mxu0 %v2090
        %2287 = vmatprep.subr.bf16.mxu0 0
        %2288 = vmatpush1.bf16.msra.mxu0 %v2091
        %2289 = vmatprep.subr.bf16.mxu0 0
        %2290 = vmatpush1.bf16.msra.mxu0 %v2092
        %2291 = vmatprep.subr.bf16.mxu0 0
        %2292 = vmatpush1.bf16.msra.mxu0 %v2093
        %2293 = vmatprep.subr.bf16.mxu0 0
        %2294 = vmatpush1.bf16.msra.mxu0 %v2094
        %2295 = vmatprep.subr.bf16.mxu0 0
        %2296 = vmatpush1.bf16.msra.mxu0 %v2095
        %2297 = vmatprep.subr.bf16.mxu0 0
        %2298 = vmatpush1.bf16.msra.mxu0 0
        %2299 = vmatprep.subr.bf16.mxu0 0
        %2300 = vmatpush1.bf16.msra.mxu0 0
        %2301 = vmatprep.subr.bf16.mxu0 0
        %2302 = vmatpush1.bf16.msra.mxu0 0
        %2303 = vmatprep.subr.bf16.mxu0 0
        %2304 = vmatpush1.bf16.msra.mxu0 0
        %2305 = vmatprep.subr.bf16.mxu0 0
        %2306 = vmatpush1.bf16.msra.mxu0 0
        %2307 = vmatprep.subr.bf16.mxu0 0
        %2308 = vmatpush1.bf16.msra.mxu0 0
        %2309 = vmatprep.subr.bf16.mxu0 0
        %2310 = vmatpush1.bf16.msra.mxu0 0
        %2311 = vmatprep.subr.bf16.mxu0 0
        %2312 = vmatpush1.bf16.msra.mxu0 0
        %2313 = vmatprep.mubr.bf16.mxu0 0
        %2314 = vmatmul.mubr.bf16.gmra.mrb[0].mxu0 %v790
        %v2315 = vpop.f32.mrb[0].mxu0
        %v2316 = vadd.f32 %v2155, %v2315
        %v2317 = vpop.f32.mrb[0].mxu0
        %v2318 = vpop.f32.mrb[0].mxu0
        %v2319 = vadd.f32 %v2158, %v2318
        %v2320 = vpop.f32.mrb[0].mxu0
        %2321 = vmatprep.mubr.bf16.mxu0 0
        %2322 = vmatmul.mubr.bf16.gmra.mrb[0].mxu0 %v793
        %v2323 = vpop.f32.mrb[0].mxu0
        %v2324 = vadd.f32 %v2163, %v2323
        %v2325 = vpop.f32.mrb[0].mxu0
        %v2326 = vpop.f32.mrb[0].mxu0
        %v2327 = vadd.f32 %v2166, %v2326
        %v2328 = vpop.f32.mrb[0].mxu0
        %2329 = vmatprep.mubr.bf16.mxu0 0
        %2330 = vmatmul.mubr.bf16.gmra.mrb[0].mxu0 %v796
        %v2331 = vpop.f32.mrb[0].mxu0
        %v2332 = vadd.f32 %v2171, %v2331
        %v2333 = vpop.f32.mrb[0].mxu0
        %v2334 = vpop.f32.mrb[0].mxu0
        %v2335 = vadd.f32 %v2174, %v2334
        %v2336 = vpop.f32.mrb[0].mxu0
        %2337 = vmatprep.mubr.bf16.mxu0 0
        %2338 = vmatmul.mubr.bf16.gmra.mrb[0].mxu0 %v799
        %v2339 = vpop.f32.mrb[0].mxu0
        %v2340 = vadd.f32 %v2179, %v2339
        %v2341 = vpop.f32.mrb[0].mxu0
        %v2342 = vpop.f32.mrb[0].mxu0
        %v2343 = vadd.f32 %v2182, %v2342
        %v2344 = vpop.f32.mrb[0].mxu0
        %2345 = vmatprep.mubr.bf16.mxu0 0
        %2346 = vmatmul.mubr.bf16.gmra.mrb[0].mxu0 %v802
        %v2347 = vpop.f32.mrb[0].mxu0
        %v2348 = vadd.f32 %v2187, %v2347
        %v2349 = vpop.f32.mrb[0].mxu0
        %v2350 = vpop.f32.mrb[0].mxu0
        %v2351 = vadd.f32 %v2190, %v2350
        %v2352 = vpop.f32.mrb[0].mxu0
        %2353 = vmatprep.mubr.bf16.mxu0 0
        %2354 = vmatmul.mubr.bf16.gmra.mrb[0].mxu0 %v805
        %v2355 = vpop.f32.mrb[0].mxu0
        %v2356 = vadd.f32 %v2195, %v2355
        %v2357 = vpop.f32.mrb[0].mxu0
        %v2358 = vpop.f32.mrb[0].mxu0
        %v2359 = vadd.f32 %v2198, %v2358
        %v2360 = vpop.f32.mrb[0].mxu0
        %2361 = vmatprep.mubr.bf16.mxu0 0
        %2362 = vmatmul.mubr.bf16.gmra.mrb[0].mxu0 %v808
        %v2363 = vpop.f32.mrb[0].mxu0
        %v2364 = vadd.f32 %v2203, %v2363
        %v2365 = vpop.f32.mrb[0].mxu0
        %v2366 = vpop.f32.mrb[0].mxu0
        %v2367 = vadd.f32 %v2206, %v2366
        %v2368 = vpop.f32.mrb[0].mxu0
        %2369 = vmatprep.mubr.bf16.mxu0 0
        %2370 = vmatmul.mubr.bf16.gmra.mrb[0].mxu0 %v811
        %v2371 = vpop.f32.mrb[0].mxu0
        %v2372 = vadd.f32 %v2211, %v2371
        %v2373 = vpop.f32.mrb[0].mxu0
        %v2374 = vpop.f32.mrb[0].mxu0
        %v2375 = vadd.f32 %v2214, %v2374
        %v2376 = vpop.f32.mrb[0].mxu0
        %2377 = vmatprep.mubr.bf16.mxu0 0
        %2378 = vmatmul.mubr.bf16.gmra.mrb[0].mxu0 %v814
        %v2379 = vpop.f32.mrb[0].mxu0
        %v2380 = vadd.f32 %v2219, %v2379
        %v2381 = vpop.f32.mrb[0].mxu0
        %v2382 = vpop.f32.mrb[0].mxu0
        %v2383 = vadd.f32 %v2222, %v2382
        %v2384 = vpop.f32.mrb[0].mxu0
        %2385 = vmatprep.mubr.bf16.mxu0 0
        %2386 = vmatmul.mubr.bf16.gmra.mrb[0].mxu0 %v817
        %v2387 = vpop.f32.mrb[0].mxu0
        %v2388 = vadd.f32 %v2227, %v2387
        %v2389 = vpop.f32.mrb[0].mxu0
        %v2390 = vpop.f32.mrb[0].mxu0
        %v2391 = vadd.f32 %v2230, %v2390
        %v2392 = vpop.f32.mrb[0].mxu0
        %2393 = vmatprep.mubr.bf16.mxu0 0
        %2394 = vmatmul.mubr.bf16.gmra.mrb[0].mxu0 %v820
        %v2395 = vpop.f32.mrb[0].mxu0
        %v2396 = vadd.f32 %v2235, %v2395
        %v2397 = vpop.f32.mrb[0].mxu0
        %v2398 = vpop.f32.mrb[0].mxu0
        %v2399 = vadd.f32 %v2238, %v2398
        %v2400 = vpop.f32.mrb[0].mxu0
        %2401 = vmatprep.mubr.bf16.mxu0 0
        %2402 = vmatmul.mubr.bf16.gmra.mrb[0].mxu0 %v823
        %v2403 = vpop.f32.mrb[0].mxu0
        %v2404 = vadd.f32 %v2243, %v2403
        %v2405 = vpop.f32.mrb[0].mxu0
        %v2406 = vpop.f32.mrb[0].mxu0
        %v2407 = vadd.f32 %v2246, %v2406
        %v2408 = vpop.f32.mrb[0].mxu0
        %2409 = vmatprep.mubr.bf16.mxu0 0
        %2410 = vmatmul.mubr.bf16.gmra.mrb[0].mxu0 %v826
        %v2411 = vpop.f32.mrb[0].mxu0
        %v2412 = vadd.f32 %v2251, %v2411
        %v2413 = vpop.f32.mrb[0].mxu0
        %v2414 = vpop.f32.mrb[0].mxu0
        %v2415 = vadd.f32 %v2254, %v2414
        %v2416 = vpop.f32.mrb[0].mxu0
        %2417 = vmatprep.mubr.bf16.mxu0 0
        %2418 = vmatmul.mubr.bf16.gmra.mrb[0].mxu0 %v829
        %v2419 = vpop.f32.mrb[0].mxu0
        %v2420 = vadd.f32 %v2259, %v2419
        %v2421 = vpop.f32.mrb[0].mxu0
        %v2422 = vpop.f32.mrb[0].mxu0
        %v2423 = vadd.f32 %v2262, %v2422
        %v2424 = vpop.f32.mrb[0].mxu0
        %2425 = vmatprep.mubr.bf16.mxu0 0
        %2426 = vmatmul.mubr.bf16.gmra.mrb[0].mxu0 %v918
        %v2427 = vpop.f32.mrb[0].mxu0
        %v2428 = vadd.f32 %v2267, %v2427
        %v2429 = vpop.f32.mrb[0].mxu0
        %v2430 = vpop.f32.mrb[0].mxu0
        %v2431 = vadd.f32 %v2270, %v2430
        %v2432 = vpop.f32.mrb[0].mxu0
        %2433 = vmatprep.mubr.bf16.mxu0 0
        %2434 = vmatmul.mubr.bf16.gmra.mrb[0].mxu0 %v1925
        %v2435 = vpop.f32.mrb[0].mxu0
        %v2436 = vadd.f32 %v2275, %v2435
        %v2437 = vpop.f32.mrb[0].mxu0
        %v2438 = vpop.f32.mrb[0].mxu0
        %v2439 = vadd.f32 %v2278, %v2438
        %v2440 = vpop.f32.mrb[0].mxu0
        %2441 = vdwg.mxu0
        %v2442 = vadd.f32 %v1775, %v2316
        %v2443 = vadd.f32 %v1778, %v2319
        %v2444 = vadd.f32 %v1783, %v2324
        %v2445 = vadd.f32 %v1786, %v2327
        %v2446 = vadd.f32 %v1791, %v2332
        %v2447 = vadd.f32 %v1794, %v2335
        %v2448 = vadd.f32 %v1799, %v2340
        %v2449 = vadd.f32 %v1802, %v2343
        %v2450 = vadd.f32 %v1807, %v2348
        %v2451 = vadd.f32 %v1810, %v2351
        %v2452 = vadd.f32 %v1815, %v2356
        %v2453 = vadd.f32 %v1818, %v2359
        %v2454 = vadd.f32 %v1823, %v2364
        %v2455 = vadd.f32 %v1826, %v2367
        %v2456 = vadd.f32 %v1831, %v2372
        %v2457 = vadd.f32 %v1834, %v2375
        %v2458 = vadd.f32 %v1839, %v2380
        %v2459 = vadd.f32 %v1842, %v2383
        %v2460 = vadd.f32 %v1847, %v2388
        %v2461 = vadd.f32 %v1850, %v2391
        %v2462 = vadd.f32 %v1855, %v2396
        %v2463 = vadd.f32 %v1858, %v2399
        %v2464 = vadd.f32 %v1863, %v2404
        %v2465 = vadd.f32 %v1866, %v2407
        %v2466 = vadd.f32 %v1871, %v2412
        %v2467 = vadd.f32 %v1874, %v2415
        %v2468 = vadd.f32 %v1879, %v2420
        %v2469 = vadd.f32 %v1882, %v2423
        %v2470 = vadd.f32 %v1887, %v2428
        %v2471 = vadd.f32 %v1890, %v2431
        %v2472 = vadd.f32 %v1895, %v2436
        %v2473 = vadd.f32 %v1898, %v2439
        %v2474 = vld [vmem:[%s2] sm:$0x1]
        %v2476 = vlaneseq
        %v2477 = vshrl.u32 %v2476, 7
        %v2478 = vsub.s32 0, %v2477
        %v2479 = vrot.slane %v2474, %v2478
        %v2481 = vmul.f32 %v2442, %v2479
        %v2482 = vmul.f32 %v2443, %v2479
        %v2483 = vmul.f32 %v2444, %v2479
        %v2484 = vmul.f32 %v2445, %v2479
        %v2485 = vmul.f32 %v2446, %v2479
        %v2486 = vmul.f32 %v2447, %v2479
        %v2487 = vmul.f32 %v2448, %v2479
        %v2488 = vmul.f32 %v2449, %v2479
        %v2489 = vmul.f32 %v2450, %v2479
        %v2490 = vmul.f32 %v2451, %v2479
        %v2491 = vmul.f32 %v2452, %v2479
        %v2492 = vmul.f32 %v2453, %v2479
        %v2493 = vmul.f32 %v2454, %v2479
        %v2494 = vmul.f32 %v2455, %v2479
        %v2495 = vmul.f32 %v2456, %v2479
        %v2496 = vmul.f32 %v2457, %v2479
        %v2497 = vmul.f32 %v2458, %v2479
        %v2498 = vmul.f32 %v2459, %v2479
        %v2499 = vmul.f32 %v2460, %v2479
        %v2500 = vmul.f32 %v2461, %v2479
        %v2501 = vmul.f32 %v2462, %v2479
        %v2502 = vmul.f32 %v2463, %v2479
        %v2503 = vmul.f32 %v2464, %v2479
        %v2504 = vmul.f32 %v2465, %v2479
        %v2505 = vmul.f32 %v2466, %v2479
        %v2506 = vmul.f32 %v2467, %v2479
        %v2507 = vmul.f32 %v2468, %v2479
        %v2508 = vmul.f32 %v2469, %v2479
        %v2509 = vmul.f32 %v2470, %v2479
        %v2510 = vmul.f32 %v2471, %v2479
        %v2511 = vmul.f32 %v2472, %v2479
        %v2512 = vmul.f32 %v2473, %v2479
        %v2513 = vld [vmem:[%s3] sm:$0x1]
        %v2515 = vlaneseq
        %v2516 = vshrl.u32 %v2515, 7
        %v2517 = vsub.s32 0, %v2516
        %v2518 = vrot.slane %v2513, %v2517
        %v2520 = vadd.f32 %v2481, %v2518
        %v2521 = vadd.f32 %v2482, %v2518
        %v2522 = vadd.f32 %v2483, %v2518
        %v2523 = vadd.f32 %v2484, %v2518
        %v2524 = vadd.f32 %v2485, %v2518
        %v2525 = vadd.f32 %v2486, %v2518
        %v2526 = vadd.f32 %v2487, %v2518
        %v2527 = vadd.f32 %v2488, %v2518
        %v2528 = vadd.f32 %v2489, %v2518
        %v2529 = vadd.f32 %v2490, %v2518
        %v2530 = vadd.f32 %v2491, %v2518
        %v2531 = vadd.f32 %v2492, %v2518
        %v2532 = vadd.f32 %v2493, %v2518
        %v2533 = vadd.f32 %v2494, %v2518
        %v2534 = vadd.f32 %v2495, %v2518
        %v2535 = vadd.f32 %v2496, %v2518
        %v2536 = vadd.f32 %v2497, %v2518
        %v2537 = vadd.f32 %v2498, %v2518
        %v2538 = vadd.f32 %v2499, %v2518
        %v2539 = vadd.f32 %v2500, %v2518
        %v2540 = vadd.f32 %v2501, %v2518
        %v2541 = vadd.f32 %v2502, %v2518
        %v2542 = vadd.f32 %v2503, %v2518
        %v2543 = vadd.f32 %v2504, %v2518
        %v2544 = vadd.f32 %v2505, %v2518
        %v2545 = vadd.f32 %v2506, %v2518
        %v2546 = vadd.f32 %v2507, %v2518
        %v2547 = vadd.f32 %v2508, %v2518
        %v2548 = vadd.f32 %v2509, %v2518
        %v2549 = vadd.f32 %v2510, %v2518
        %v2550 = vadd.f32 %v2511, %v2518
        %v2551 = vadd.f32 %v2512, %v2518
        %v2552 = vmax.f32 %v2520, 0.0
        %v2553 = vmax.f32 %v2521, 0.0
        %v2554 = vmax.f32 %v2522, 0.0
        %v2555 = vmax.f32 %v2523, 0.0
        %v2556 = vmax.f32 %v2524, 0.0
        %v2557 = vmax.f32 %v2525, 0.0
        %v2558 = vmax.f32 %v2526, 0.0
        %v2559 = vmax.f32 %v2527, 0.0
        %v2560 = vmax.f32 %v2528, 0.0
        %v2561 = vmax.f32 %v2529, 0.0
        %v2562 = vmax.f32 %v2530, 0.0
        %v2563 = vmax.f32 %v2531, 0.0
        %v2564 = vmax.f32 %v2532, 0.0
        %v2565 = vmax.f32 %v2533, 0.0
        %v2566 = vmax.f32 %v2534, 0.0
        %v2567 = vmax.f32 %v2535, 0.0
        %v2568 = vmax.f32 %v2536, 0.0
        %v2569 = vmax.f32 %v2537, 0.0
        %v2570 = vmax.f32 %v2538, 0.0
        %v2571 = vmax.f32 %v2539, 0.0
        %v2572 = vmax.f32 %v2540, 0.0
        %v2573 = vmax.f32 %v2541, 0.0
        %v2574 = vmax.f32 %v2542, 0.0
        %v2575 = vmax.f32 %v2543, 0.0
        %v2576 = vmax.f32 %v2544, 0.0
        %v2577 = vmax.f32 %v2545, 0.0
        %v2578 = vmax.f32 %v2546, 0.0
        %v2579 = vmax.f32 %v2547, 0.0
        %v2580 = vmax.f32 %v2548, 0.0
        %v2581 = vmax.f32 %v2549, 0.0
        %v2582 = vmax.f32 %v2550, 0.0
        %v2583 = vmax.f32 %v2551, 0.0
        %2584 = vst [vmem:[#allocation2] sm:$0xf] 0
        %2585 = vst [vmem:[#allocation2 + $0x4] sm:$0xf] 0
        %2586 = vst [vmem:[#allocation2 + $0x8] sm:$0x1] 0
        %s2587 = scalar_lea.vmem [#allocation2], 204
        %2588 = vst [vmem:[%s2587] sm:$0xf] 0
        %2589 = vst [vmem:[%s2587 + $0x4] sm:$0xf] 0
        %2590 = vst [vmem:[%s2587 + $0x8] sm:$0x1] 0
        %s2591 = scalar_lea.vmem [#allocation2], 12
        %vm2592 = vcmask 1040384
        %vm2593 = vsmask.f32 256
        %vm2594 = vmand %vm2592, %vm2593
        %v2595 = vld [vmem:[%s2591] sm:$0x1]
        %v2596 = vsel %vm2594, 0, %v2595
        %2597 = vst [vmem:[%s2591] sm:$0x1] %v2596
        %v2598 = vld [vmem:[%s2591 + $0xc] sm:$0x1]
        %v2599 = vsel %vm2594, 0, %v2598
        %2600 = vst [vmem:[%s2591 + $0xc] sm:$0x1] %v2599
        %v2601 = vld [vmem:[%s2591 + $0x18] sm:$0x1]
        %v2602 = vsel %vm2594, 0, %v2601
        %2603 = vst [vmem:[%s2591 + $0x18] sm:$0x1] %v2602
        %v2604 = vld [vmem:[%s2591 + $0x24] sm:$0x1]
        %v2605 = vsel %vm2594, 0, %v2604
        %2606 = vst [vmem:[%s2591 + $0x24] sm:$0x1] %v2605
        %v2607 = vld [vmem:[%s2591 + $0x30] sm:$0x1]
        %v2608 = vsel %vm2594, 0, %v2607
        %2609 = vst [vmem:[%s2591 + $0x30] sm:$0x1] %v2608
        %v2610 = vld [vmem:[%s2591 + $0x3c] sm:$0x1]
        %v2611 = vsel %vm2594, 0, %v2610
        %2612 = vst [vmem:[%s2591 + $0x3c] sm:$0x1] %v2611
        %v2613 = vld [vmem:[%s2591 + $0x48] sm:$0x1]
        %v2614 = vsel %vm2594, 0, %v2613
        %2615 = vst [vmem:[%s2591 + $0x48] sm:$0x1] %v2614
        %v2616 = vld [vmem:[%s2591 + $0x54] sm:$0x1]
        %v2617 = vsel %vm2594, 0, %v2616
        %2618 = vst [vmem:[%s2591 + $0x54] sm:$0x1] %v2617
        %v2619 = vld [vmem:[%s2591 + $0x60] sm:$0x1]
        %v2620 = vsel %vm2594, 0, %v2619
        %2621 = vst [vmem:[%s2591 + $0x60] sm:$0x1] %v2620
        %v2622 = vld [vmem:[%s2591 + $0x6c] sm:$0x1]
        %v2623 = vsel %vm2594, 0, %v2622
        %2624 = vst [vmem:[%s2591 + $0x6c] sm:$0x1] %v2623
        %v2625 = vld [vmem:[%s2591 + $0x78] sm:$0x1]
        %v2626 = vsel %vm2594, 0, %v2625
        %2627 = vst [vmem:[%s2591 + $0x78] sm:$0x1] %v2626
        %v2628 = vld [vmem:[%s2591 + $0x84] sm:$0x1]
        %v2629 = vsel %vm2594, 0, %v2628
        %2630 = vst [vmem:[%s2591 + $0x84] sm:$0x1] %v2629
        %v2631 = vld [vmem:[%s2591 + $0x90] sm:$0x1]
        %v2632 = vsel %vm2594, 0, %v2631
        %2633 = vst [vmem:[%s2591 + $0x90] sm:$0x1] %v2632
        %v2634 = vld [vmem:[%s2591 + $0x9c] sm:$0x1]
        %v2635 = vsel %vm2594, 0, %v2634
        %2636 = vst [vmem:[%s2591 + $0x9c] sm:$0x1] %v2635
        %v2637 = vld [vmem:[%s2591 + $0xa8] sm:$0x1]
        %v2638 = vsel %vm2594, 0, %v2637
        %2639 = vst [vmem:[%s2591 + $0xa8] sm:$0x1] %v2638
        %v2640 = vld [vmem:[%s2591 + $0xb4] sm:$0x1]
        %v2641 = vsel %vm2594, 0, %v2640
        %2642 = vst [vmem:[%s2591 + $0xb4] sm:$0x1] %v2641
        %vm2643 = vsmask.f32 7938
        %vm2644 = vmand %vm2592, %vm2643
        %v2645 = vld [vmem:[%s2591 + $0x8] sm:$0x1]
        %v2646 = vsel %vm2644, 0, %v2645
        %2647 = vst [vmem:[%s2591 + $0x8] sm:$0x1] %v2646
        %v2648 = vld [vmem:[%s2591 + $0x14] sm:$0x1]
        %v2649 = vsel %vm2644, 0, %v2648
        %2650 = vst [vmem:[%s2591 + $0x14] sm:$0x1] %v2649
        %v2651 = vld [vmem:[%s2591 + $0x20] sm:$0x1]
        %v2652 = vsel %vm2644, 0, %v2651
        %2653 = vst [vmem:[%s2591 + $0x20] sm:$0x1] %v2652
        %v2654 = vld [vmem:[%s2591 + $0x2c] sm:$0x1]
        %v2655 = vsel %vm2644, 0, %v2654
        %2656 = vst [vmem:[%s2591 + $0x2c] sm:$0x1] %v2655
        %v2657 = vld [vmem:[%s2591 + $0x38] sm:$0x1]
        %v2658 = vsel %vm2644, 0, %v2657
        %2659 = vst [vmem:[%s2591 + $0x38] sm:$0x1] %v2658
        %v2660 = vld [vmem:[%s2591 + $0x44] sm:$0x1]
        %v2661 = vsel %vm2644, 0, %v2660
        %2662 = vst [vmem:[%s2591 + $0x44] sm:$0x1] %v2661
        %v2663 = vld [vmem:[%s2591 + $0x50] sm:$0x1]
        %v2664 = vsel %vm2644, 0, %v2663
        %2665 = vst [vmem:[%s2591 + $0x50] sm:$0x1] %v2664
        %v2666 = vld [vmem:[%s2591 + $0x5c] sm:$0x1]
        %v2667 = vsel %vm2644, 0, %v2666
        %2668 = vst [vmem:[%s2591 + $0x5c] sm:$0x1] %v2667
        %v2669 = vld [vmem:[%s2591 + $0x68] sm:$0x1]
        %v2670 = vsel %vm2644, 0, %v2669
        %2671 = vst [vmem:[%s2591 + $0x68] sm:$0x1] %v2670
        %v2672 = vld [vmem:[%s2591 + $0x74] sm:$0x1]
        %v2673 = vsel %vm2644, 0, %v2672
        %2674 = vst [vmem:[%s2591 + $0x74] sm:$0x1] %v2673
        %v2675 = vld [vmem:[%s2591 + $0x80] sm:$0x1]
        %v2676 = vsel %vm2644, 0, %v2675
        %2677 = vst [vmem:[%s2591 + $0x80] sm:$0x1] %v2676
        %v2678 = vld [vmem:[%s2591 + $0x8c] sm:$0x1]
        %v2679 = vsel %vm2644, 0, %v2678
        %2680 = vst [vmem:[%s2591 + $0x8c] sm:$0x1] %v2679
        %v2681 = vld [vmem:[%s2591 + $0x98] sm:$0x1]
        %v2682 = vsel %vm2644, 0, %v2681
        %2683 = vst [vmem:[%s2591 + $0x98] sm:$0x1] %v2682
        %v2684 = vld [vmem:[%s2591 + $0xa4] sm:$0x1]
        %v2685 = vsel %vm2644, 0, %v2684
        %2686 = vst [vmem:[%s2591 + $0xa4] sm:$0x1] %v2685
        %v2687 = vld [vmem:[%s2591 + $0xb0] sm:$0x1]
        %v2688 = vsel %vm2644, 0, %v2687
        %2689 = vst [vmem:[%s2591 + $0xb0] sm:$0x1] %v2688
        %v2690 = vld [vmem:[%s2591 + $0xbc] sm:$0x1]
        %v2691 = vsel %vm2644, 0, %v2690
        %2692 = vst [vmem:[%s2591 + $0xbc] sm:$0x1] %v2691
        %v2693 = vpack.c.bf16 %v2553, %v2552
        %v2694 = vpack.c.bf16 %v2555, %v2554
        %v2695 = vpack.c.bf16 %v2557, %v2556
        %v2696 = vpack.c.bf16 %v2559, %v2558
        %v2697 = vpack.c.bf16 %v2561, %v2560
        %v2698 = vpack.c.bf16 %v2563, %v2562
        %v2699 = vpack.c.bf16 %v2565, %v2564
        %v2700 = vpack.c.bf16 %v2567, %v2566
        %v2701 = vpack.c.bf16 %v2569, %v2568
        %v2702 = vpack.c.bf16 %v2571, %v2570
        %v2703 = vpack.c.bf16 %v2573, %v2572
        %v2704 = vpack.c.bf16 %v2575, %v2574
        %v2705 = vpack.c.bf16 %v2577, %v2576
        %v2706 = vpack.c.bf16 %v2579, %v2578
        %v2707 = vpack.c.bf16 %v2581, %v2580
        %v2708 = vpack.c.bf16 %v2583, %v2582
        %v2725 = vunpack.c.l.b16 %v2693
        %v2726 = vunpack.c.h.b16 %v2693
        %v2727 = vunpack.c.l.b16 %v2694
        %v2728 = vunpack.c.h.b16 %v2694
        %v2729 = vunpack.c.l.b16 %v2695
        %v2730 = vunpack.c.h.b16 %v2695
        %v2731 = vunpack.c.l.b16 %v2696
        %v2732 = vunpack.c.h.b16 %v2696
        %v2733 = vunpack.c.l.b16 %v2697
        %v2734 = vunpack.c.h.b16 %v2697
        %v2735 = vunpack.c.l.b16 %v2698
        %v2736 = vunpack.c.h.b16 %v2698
        %v2737 = vunpack.c.l.b16 %v2699
        %v2738 = vunpack.c.h.b16 %v2699
        %v2739 = vunpack.c.l.b16 %v2700
        %v2740 = vunpack.c.h.b16 %v2700
        %v2741 = vunpack.c.l.b16 %v2701
        %v2742 = vunpack.c.h.b16 %v2701
        %v2743 = vunpack.c.l.b16 %v2702
        %v2744 = vunpack.c.h.b16 %v2702
        %v2745 = vunpack.c.l.b16 %v2703
        %v2746 = vunpack.c.h.b16 %v2703
        %v2747 = vunpack.c.l.b16 %v2704
        %v2748 = vunpack.c.h.b16 %v2704
        %v2749 = vunpack.c.l.b16 %v2705
        %v2750 = vunpack.c.h.b16 %v2705
        %v2751 = vunpack.c.l.b16 %v2706
        %v2752 = vunpack.c.h.b16 %v2706
        %v2753 = vunpack.c.l.b16 %v2707
        %v2754 = vunpack.c.h.b16 %v2707
        %v2755 = vunpack.c.l.b16 %v2708
        %v2756 = vunpack.c.h.b16 %v2708
        %v2757 = vpack.c.b16 %v2725, %v2725
        %v2758 = vpack.c.b16 %v2726, %v2726
        %v2759 = vpack.c.b16 %v2727, %v2727
        %v2760 = vpack.c.b16 %v2728, %v2728
        %v2761 = vpack.c.b16 %v2729, %v2729
        %v2762 = vpack.c.b16 %v2730, %v2730
        %v2763 = vpack.c.b16 %v2731, %v2731
        %v2764 = vpack.c.b16 %v2732, %v2732
        %v2765 = vpack.c.b16 %v2733, %v2733
        %v2766 = vpack.c.b16 %v2734, %v2734
        %v2767 = vpack.c.b16 %v2735, %v2735
        %v2768 = vpack.c.b16 %v2736, %v2736
        %v2769 = vpack.c.b16 %v2737, %v2737
        %v2770 = vpack.c.b16 %v2738, %v2738
        %v2771 = vpack.c.b16 %v2739, %v2739
        %v2772 = vpack.c.b16 %v2740, %v2740
        %v2773 = vpack.c.b16 %v2741, %v2741
        %v2774 = vpack.c.b16 %v2742, %v2742
        %v2775 = vpack.c.b16 %v2743, %v2743
        %v2776 = vpack.c.b16 %v2744, %v2744
        %v2777 = vpack.c.b16 %v2745, %v2745
        %v2778 = vpack.c.b16 %v2746, %v2746
        %v2779 = vpack.c.b16 %v2747, %v2747
        %v2780 = vpack.c.b16 %v2748, %v2748
        %v2781 = vpack.c.b16 %v2749, %v2749
        %v2782 = vpack.c.b16 %v2750, %v2750
        %v2783 = vpack.c.b16 %v2751, %v2751
        %v2784 = vpack.c.b16 %v2752, %v2752
        %v2785 = vpack.c.b16 %v2753, %v2753
        %v2786 = vpack.c.b16 %v2754, %v2754
        %v2787 = vpack.c.b16 %v2755, %v2755
        %v2788 = vpack.c.b16 %v2756, %v2756
        %vm2789 = vsmask.f32 4368
        %vm2790 = vmor %vm2593, %vm2789
        %v2792 = vshrl.u32 %v2757, 16
        %v2794 = vrot.slane %v2792, 7
        %v2795 = vshll.u32 %v2757, 16
        %v2797 = vor.u32 %v2794, %v2795
        %v2798 = vrot.slane %v2794, 4
        %v2800 = vshrl.u32 %v2758, 16
        %v2802 = vrot.slane %v2800, 7
        %v2803 = vshll.u32 %v2758, 16
        %v2805 = vor.u32 %v2802, %v2803
        %v2806 = vsel %vm2790, %v2798, %v2805
        %v2807 = vrot.slane %v2802, 4
        %v2809 = vshrl.u32 %v2759, 16
        %v2811 = vrot.slane %v2809, 7
        %v2812 = vshll.u32 %v2759, 16
        %v2814 = vor.u32 %v2811, %v2812
        %v2815 = vrot.slane %v2811, 4
        %v2817 = vshrl.u32 %v2760, 16
        %v2819 = vrot.slane %v2817, 7
        %v2820 = vshll.u32 %v2760, 16
        %v2822 = vor.u32 %v2819, %v2820
        %v2823 = vsel %vm2790, %v2815, %v2822
        %v2824 = vrot.slane %v2819, 4
        %v2826 = vshrl.u32 %v2761, 16
        %v2828 = vrot.slane %v2826, 7
        %v2829 = vshll.u32 %v2761, 16
        %v2831 = vor.u32 %v2828, %v2829
        %v2832 = vrot.slane %v2828, 4
        %v2834 = vshrl.u32 %v2762, 16
        %v2836 = vrot.slane %v2834, 7
        %v2837 = vshll.u32 %v2762, 16
        %v2839 = vor.u32 %v2836, %v2837
        %v2840 = vsel %vm2790, %v2832, %v2839
        %v2841 = vrot.slane %v2836, 4
        %v2843 = vshrl.u32 %v2763, 16
        %v2845 = vrot.slane %v2843, 7
        %v2846 = vshll.u32 %v2763, 16
        %v2848 = vor.u32 %v2845, %v2846
        %v2849 = vrot.slane %v2845, 4
        %v2851 = vshrl.u32 %v2764, 16
        %v2853 = vrot.slane %v2851, 7
        %v2854 = vshll.u32 %v2764, 16
        %v2856 = vor.u32 %v2853, %v2854
        %v2857 = vsel %vm2790, %v2849, %v2856
        %v2858 = vrot.slane %v2853, 4
        %v2860 = vshrl.u32 %v2765, 16
        %v2862 = vrot.slane %v2860, 7
        %v2863 = vshll.u32 %v2765, 16
        %v2865 = vor.u32 %v2862, %v2863
        %v2866 = vrot.slane %v2862, 4
        %v2868 = vshrl.u32 %v2766, 16
        %v2870 = vrot.slane %v2868, 7
        %v2871 = vshll.u32 %v2766, 16
        %v2873 = vor.u32 %v2870, %v2871
        %v2874 = vsel %vm2790, %v2866, %v2873
        %v2875 = vrot.slane %v2870, 4
        %v2877 = vshrl.u32 %v2767, 16
        %v2879 = vrot.slane %v2877, 7
        %v2880 = vshll.u32 %v2767, 16
        %v2882 = vor.u32 %v2879, %v2880
        %v2883 = vrot.slane %v2879, 4
        %v2885 = vshrl.u32 %v2768, 16
        %v2887 = vrot.slane %v2885, 7
        %v2888 = vshll.u32 %v2768, 16
        %v2890 = vor.u32 %v2887, %v2888
        %v2891 = vsel %vm2790, %v2883, %v2890
        %v2892 = vrot.slane %v2887, 4
        %v2894 = vshrl.u32 %v2769, 16
        %v2896 = vrot.slane %v2894, 7
        %v2897 = vshll.u32 %v2769, 16
        %v2899 = vor.u32 %v2896, %v2897
        %v2900 = vrot.slane %v2896, 4
        %v2902 = vshrl.u32 %v2770, 16
        %v2904 = vrot.slane %v2902, 7
        %v2905 = vshll.u32 %v2770, 16
        %v2907 = vor.u32 %v2904, %v2905
        %v2908 = vsel %vm2790, %v2900, %v2907
        %v2909 = vrot.slane %v2904, 4
        %v2911 = vshrl.u32 %v2771, 16
        %v2913 = vrot.slane %v2911, 7
        %v2914 = vshll.u32 %v2771, 16
        %v2916 = vor.u32 %v2913, %v2914
        %v2917 = vrot.slane %v2913, 4
        %v2919 = vshrl.u32 %v2772, 16
        %v2921 = vrot.slane %v2919, 7
        %v2922 = vshll.u32 %v2772, 16
        %v2924 = vor.u32 %v2921, %v2922
        %v2925 = vsel %vm2790, %v2917, %v2924
        %v2926 = vrot.slane %v2921, 4
        %v2928 = vshrl.u32 %v2773, 16
        %v2930 = vrot.slane %v2928, 7
        %v2931 = vshll.u32 %v2773, 16
        %v2933 = vor.u32 %v2930, %v2931
        %v2934 = vrot.slane %v2930, 4
        %v2936 = vshrl.u32 %v2774, 16
        %v2938 = vrot.slane %v2936, 7
        %v2939 = vshll.u32 %v2774, 16
        %v2941 = vor.u32 %v2938, %v2939
        %v2942 = vsel %vm2790, %v2934, %v2941
        %v2943 = vrot.slane %v2938, 4
        %v2945 = vshrl.u32 %v2775, 16
        %v2947 = vrot.slane %v2945, 7
        %v2948 = vshll.u32 %v2775, 16
        %v2950 = vor.u32 %v2947, %v2948
        %v2951 = vrot.slane %v2947, 4
        %v2953 = vshrl.u32 %v2776, 16
        %v2955 = vrot.slane %v2953, 7
        %v2956 = vshll.u32 %v2776, 16
        %v2958 = vor.u32 %v2955, %v2956
        %v2959 = vsel %vm2790, %v2951, %v2958
        %v2960 = vrot.slane %v2955, 4
        %v2962 = vshrl.u32 %v2777, 16
        %v2964 = vrot.slane %v2962, 7
        %v2965 = vshll.u32 %v2777, 16
        %v2967 = vor.u32 %v2964, %v2965
        %v2968 = vrot.slane %v2964, 4
        %v2970 = vshrl.u32 %v2778, 16
        %v2972 = vrot.slane %v2970, 7
        %v2973 = vshll.u32 %v2778, 16
        %v2975 = vor.u32 %v2972, %v2973
        %v2976 = vsel %vm2790, %v2968, %v2975
        %v2977 = vrot.slane %v2972, 4
        %v2979 = vshrl.u32 %v2779, 16
        %v2981 = vrot.slane %v2979, 7
        %v2982 = vshll.u32 %v2779, 16
        %v2984 = vor.u32 %v2981, %v2982
        %v2985 = vrot.slane %v2981, 4
        %v2987 = vshrl.u32 %v2780, 16
        %v2989 = vrot.slane %v2987, 7
        %v2990 = vshll.u32 %v2780, 16
        %v2992 = vor.u32 %v2989, %v2990
        %v2993 = vsel %vm2790, %v2985, %v2992
        %v2994 = vrot.slane %v2989, 4
        %v2996 = vshrl.u32 %v2781, 16
        %v2998 = vrot.slane %v2996, 7
        %v2999 = vshll.u32 %v2781, 16
        %v3001 = vor.u32 %v2998, %v2999
        %v3002 = vrot.slane %v2998, 4
        %v3004 = vshrl.u32 %v2782, 16
        %v3006 = vrot.slane %v3004, 7
        %v3007 = vshll.u32 %v2782, 16
        %v3009 = vor.u32 %v3006, %v3007
        %v3010 = vsel %vm2790, %v3002, %v3009
        %v3011 = vrot.slane %v3006, 4
        %v3013 = vshrl.u32 %v2783, 16
        %v3015 = vrot.slane %v3013, 7
        %v3016 = vshll.u32 %v2783, 16
        %v3018 = vor.u32 %v3015, %v3016
        %v3019 = vrot.slane %v3015, 4
        %v3021 = vshrl.u32 %v2784, 16
        %v3023 = vrot.slane %v3021, 7
        %v3024 = vshll.u32 %v2784, 16
        %v3026 = vor.u32 %v3023, %v3024
        %v3027 = vsel %vm2790, %v3019, %v3026
        %v3028 = vrot.slane %v3023, 4
        %v3030 = vshrl.u32 %v2785, 16
        %v3032 = vrot.slane %v3030, 7
        %v3033 = vshll.u32 %v2785, 16
        %v3035 = vor.u32 %v3032, %v3033
        %v3036 = vrot.slane %v3032, 4
        %v3038 = vshrl.u32 %v2786, 16
        %v3040 = vrot.slane %v3038, 7
        %v3041 = vshll.u32 %v2786, 16
        %v3043 = vor.u32 %v3040, %v3041
        %v3044 = vsel %vm2790, %v3036, %v3043
        %v3045 = vrot.slane %v3040, 4
        %v3047 = vshrl.u32 %v2787, 16
        %v3049 = vrot.slane %v3047, 7
        %v3050 = vshll.u32 %v2787, 16
        %v3052 = vor.u32 %v3049, %v3050
        %v3053 = vrot.slane %v3049, 4
        %v3055 = vshrl.u32 %v2788, 16
        %v3057 = vrot.slane %v3055, 7
        %v3058 = vshll.u32 %v2788, 16
        %v3060 = vor.u32 %v3057, %v3058
        %v3061 = vsel %vm2790, %v3053, %v3060
        %v3062 = vrot.slane %v3057, 4
        %vm3111 = vcmask 1043456
        %vm3112 = vmand %vm3111, %vm2643
        %v3113 = vld [vmem:[%s2591] sm:$0xf]
        %v3114 = vsel %vm3112, %v2797, %v3113
        %3115 = vst [vmem:[%s2591] sm:$0xf] %v3114
        %3116 = vst [vmem:[%s2591 + $0x4] sm:$0xf] %v2806
        %v3117 = vld [vmem:[%s2591 + $0x8] sm:$0x1]
        %v3118 = vsel %vm2594, %v2807, %v3117
        %3119 = vst [vmem:[%s2591 + $0x8] sm:$0x1] %v3118
        %v3120 = vld [vmem:[%s2591 + $0xc] sm:$0xf]
        %v3121 = vsel %vm3112, %v2814, %v3120
        %3122 = vst [vmem:[%s2591 + $0xc] sm:$0xf] %v3121
        %3123 = vst [vmem:[%s2591 + $0x10] sm:$0xf] %v2823
        %v3124 = vld [vmem:[%s2591 + $0x14] sm:$0x1]
        %v3125 = vsel %vm2594, %v2824, %v3124
        %3126 = vst [vmem:[%s2591 + $0x14] sm:$0x1] %v3125
        %v3127 = vld [vmem:[%s2591 + $0x18] sm:$0xf]
        %v3128 = vsel %vm3112, %v2831, %v3127
        %3129 = vst [vmem:[%s2591 + $0x18] sm:$0xf] %v3128
        %3130 = vst [vmem:[%s2591 + $0x1c] sm:$0xf] %v2840
        %v3131 = vld [vmem:[%s2591 + $0x20] sm:$0x1]
        %v3132 = vsel %vm2594, %v2841, %v3131
        %3133 = vst [vmem:[%s2591 + $0x20] sm:$0x1] %v3132
        %v3134 = vld [vmem:[%s2591 + $0x24] sm:$0xf]
        %v3135 = vsel %vm3112, %v2848, %v3134
        %3136 = vst [vmem:[%s2591 + $0x24] sm:$0xf] %v3135
        %3137 = vst [vmem:[%s2591 + $0x28] sm:$0xf] %v2857
        %v3138 = vld [vmem:[%s2591 + $0x2c] sm:$0x1]
        %v3139 = vsel %vm2594, %v2858, %v3138
        %3140 = vst [vmem:[%s2591 + $0x2c] sm:$0x1] %v3139
        %v3141 = vld [vmem:[%s2591 + $0x30] sm:$0xf]
        %v3142 = vsel %vm3112, %v2865, %v3141
        %3143 = vst [vmem:[%s2591 + $0x30] sm:$0xf] %v3142
        %3144 = vst [vmem:[%s2591 + $0x34] sm:$0xf] %v2874
        %v3145 = vld [vmem:[%s2591 + $0x38] sm:$0x1]
        %v3146 = vsel %vm2594, %v2875, %v3145
        %3147 = vst [vmem:[%s2591 + $0x38] sm:$0x1] %v3146
        %v3148 = vld [vmem:[%s2591 + $0x3c] sm:$0xf]
        %v3149 = vsel %vm3112, %v2882, %v3148
        %3150 = vst [vmem:[%s2591 + $0x3c] sm:$0xf] %v3149
        %3151 = vst [vmem:[%s2591 + $0x40] sm:$0xf] %v2891
        %v3152 = vld [vmem:[%s2591 + $0x44] sm:$0x1]
        %v3153 = vsel %vm2594, %v2892, %v3152
        %3154 = vst [vmem:[%s2591 + $0x44] sm:$0x1] %v3153
        %v3155 = vld [vmem:[%s2591 + $0x48] sm:$0xf]
        %v3156 = vsel %vm3112, %v2899, %v3155
        %3157 = vst [vmem:[%s2591 + $0x48] sm:$0xf] %v3156
        %3158 = vst [vmem:[%s2591 + $0x4c] sm:$0xf] %v2908
        %v3159 = vld [vmem:[%s2591 + $0x50] sm:$0x1]
        %v3160 = vsel %vm2594, %v2909, %v3159
        %3161 = vst [vmem:[%s2591 + $0x50] sm:$0x1] %v3160
        %v3162 = vld [vmem:[%s2591 + $0x54] sm:$0xf]
        %v3163 = vsel %vm3112, %v2916, %v3162
        %3164 = vst [vmem:[%s2591 + $0x54] sm:$0xf] %v3163
        %3165 = vst [vmem:[%s2591 + $0x58] sm:$0xf] %v2925
        %v3166 = vld [vmem:[%s2591 + $0x5c] sm:$0x1]
        %v3167 = vsel %vm2594, %v2926, %v3166
        %3168 = vst [vmem:[%s2591 + $0x5c] sm:$0x1] %v3167
        %v3169 = vld [vmem:[%s2591 + $0x60] sm:$0xf]
        %v3170 = vsel %vm3112, %v2933, %v3169
        %3171 = vst [vmem:[%s2591 + $0x60] sm:$0xf] %v3170
        %3172 = vst [vmem:[%s2591 + $0x64] sm:$0xf] %v2942
        %v3173 = vld [vmem:[%s2591 + $0x68] sm:$0x1]
        %v3174 = vsel %vm2594, %v2943, %v3173
        %3175 = vst [vmem:[%s2591 + $0x68] sm:$0x1] %v3174
        %v3176 = vld [vmem:[%s2591 + $0x6c] sm:$0xf]
        %v3177 = vsel %vm3112, %v2950, %v3176
        %3178 = vst [vmem:[%s2591 + $0x6c] sm:$0xf] %v3177
        %3179 = vst [vmem:[%s2591 + $0x70] sm:$0xf] %v2959
        %v3180 = vld [vmem:[%s2591 + $0x74] sm:$0x1]
        %v3181 = vsel %vm2594, %v2960, %v3180
        %3182 = vst [vmem:[%s2591 + $0x74] sm:$0x1] %v3181
        %v3183 = vld [vmem:[%s2591 + $0x78] sm:$0xf]
        %v3184 = vsel %vm3112, %v2967, %v3183
        %3185 = vst [vmem:[%s2591 + $0x78] sm:$0xf] %v3184
        %3186 = vst [vmem:[%s2591 + $0x7c] sm:$0xf] %v2976
        %v3187 = vld [vmem:[%s2591 + $0x80] sm:$0x1]
        %v3188 = vsel %vm2594, %v2977, %v3187
        %3189 = vst [vmem:[%s2591 + $0x80] sm:$0x1] %v3188
        %v3190 = vld [vmem:[%s2591 + $0x84] sm:$0xf]
        %v3191 = vsel %vm3112, %v2984, %v3190
        %3192 = vst [vmem:[%s2591 + $0x84] sm:$0xf] %v3191
        %3193 = vst [vmem:[%s2591 + $0x88] sm:$0xf] %v2993
        %v3194 = vld [vmem:[%s2591 + $0x8c] sm:$0x1]
        %v3195 = vsel %vm2594, %v2994, %v3194
        %3196 = vst [vmem:[%s2591 + $0x8c] sm:$0x1] %v3195
        %v3197 = vld [vmem:[%s2591 + $0x90] sm:$0xf]
        %v3198 = vsel %vm3112, %v3001, %v3197
        %3199 = vst [vmem:[%s2591 + $0x90] sm:$0xf] %v3198
        %3200 = vst [vmem:[%s2591 + $0x94] sm:$0xf] %v3010
        %v3201 = vld [vmem:[%s2591 + $0x98] sm:$0x1]
        %v3202 = vsel %vm2594, %v3011, %v3201
        %3203 = vst [vmem:[%s2591 + $0x98] sm:$0x1] %v3202
        %v3204 = vld [vmem:[%s2591 + $0x9c] sm:$0xf]
        %v3205 = vsel %vm3112, %v3018, %v3204
        %3206 = vst [vmem:[%s2591 + $0x9c] sm:$0xf] %v3205
        %3207 = vst [vmem:[%s2591 + $0xa0] sm:$0xf] %v3027
        %v3208 = vld [vmem:[%s2591 + $0xa4] sm:$0x1]
        %v3209 = vsel %vm2594, %v3028, %v3208
        %3210 = vst [vmem:[%s2591 + $0xa4] sm:$0x1] %v3209
        %v3211 = vld [vmem:[%s2591 + $0xa8] sm:$0xf]
        %v3212 = vsel %vm3112, %v3035, %v3211
        %3213 = vst [vmem:[%s2591 + $0xa8] sm:$0xf] %v3212
        %3214 = vst [vmem:[%s2591 + $0xac] sm:$0xf] %v3044
        %v3215 = vld [vmem:[%s2591 + $0xb0] sm:$0x1]
        %v3216 = vsel %vm2594, %v3045, %v3215
        %3217 = vst [vmem:[%s2591 + $0xb0] sm:$0x1] %v3216
        %v3218 = vld [vmem:[%s2591 + $0xb4] sm:$0xf]
        %v3219 = vsel %vm3112, %v3052, %v3218
        %3220 = vst [vmem:[%s2591 + $0xb4] sm:$0xf] %v3219
        %3221 = vst [vmem:[%s2591 + $0xb8] sm:$0xf] %v3061
        %v3222 = vld [vmem:[%s2591 + $0xbc] sm:$0x1]
        %v3223 = vsel %vm2594, %v3062, %v3222
        %3224 = vst [vmem:[%s2591 + $0xbc] sm:$0x1] %v3223
        %v3225 = vld [vmem:[#allocation2] sm:$0xf]
        %v3226 = vld [vmem:[#allocation2 + $0x4] sm:$0xf]
        %v3227 = vld [vmem:[#allocation2 + $0x8] sm:$0x1]
        %v3228 = vld [vmem:[#allocation2 + $0xc] sm:$0xf]
        %v3229 = vld [vmem:[#allocation2 + $0x10] sm:$0xf]
        %v3230 = vld [vmem:[#allocation2 + $0x14] sm:$0x1]
        %v3231 = vld [vmem:[#allocation2 + $0x18] sm:$0xf]
        %v3232 = vld [vmem:[#allocation2 + $0x1c] sm:$0xf]
        %v3233 = vld [vmem:[#allocation2 + $0x20] sm:$0x1]
        %v3234 = vld [vmem:[#allocation2 + $0x24] sm:$0xf]
        %v3235 = vld [vmem:[#allocation2 + $0x28] sm:$0xf]
        %v3236 = vld [vmem:[#allocation2 + $0x2c] sm:$0x1]
        %v3237 = vld [vmem:[#allocation2 + $0x30] sm:$0xf]
        %v3238 = vld [vmem:[#allocation2 + $0x34] sm:$0xf]
        %v3239 = vld [vmem:[#allocation2 + $0x38] sm:$0x1]
        %v3240 = vld [vmem:[#allocation2 + $0x3c] sm:$0xf]
        %v3241 = vld [vmem:[#allocation2 + $0x40] sm:$0xf]
        %v3242 = vld [vmem:[#allocation2 + $0x44] sm:$0x1]
        %v3243 = vld [vmem:[#allocation2 + $0x48] sm:$0xf]
        %v3244 = vld [vmem:[#allocation2 + $0x4c] sm:$0xf]
        %v3245 = vld [vmem:[#allocation2 + $0x50] sm:$0x1]
        %v3246 = vld [vmem:[#allocation2 + $0x54] sm:$0xf]
        %v3247 = vld [vmem:[#allocation2 + $0x58] sm:$0xf]
        %v3248 = vld [vmem:[#allocation2 + $0x5c] sm:$0x1]
        %v3249 = vld [vmem:[#allocation2 + $0x60] sm:$0xf]
        %v3250 = vld [vmem:[#allocation2 + $0x64] sm:$0xf]
        %v3251 = vld [vmem:[#allocation2 + $0x68] sm:$0x1]
        %v3252 = vld [vmem:[#allocation2 + $0x6c] sm:$0xf]
        %v3253 = vld [vmem:[#allocation2 + $0x70] sm:$0xf]
        %v3254 = vld [vmem:[#allocation2 + $0x74] sm:$0x1]
        %v3255 = vld [vmem:[#allocation2 + $0x78] sm:$0xf]
        %v3256 = vld [vmem:[#allocation2 + $0x7c] sm:$0xf]
        %v3257 = vld [vmem:[#allocation2 + $0x80] sm:$0x1]
        %v3258 = vld [vmem:[#allocation2 + $0x84] sm:$0xf]
        %v3259 = vld [vmem:[#allocation2 + $0x88] sm:$0xf]
        %v3260 = vld [vmem:[#allocation2 + $0x8c] sm:$0x1]
        %v3261 = vld [vmem:[#allocation2 + $0x90] sm:$0xf]
        %v3262 = vld [vmem:[#allocation2 + $0x94] sm:$0xf]
        %v3263 = vld [vmem:[#allocation2 + $0x98] sm:$0x1]
        %v3264 = vld [vmem:[#allocation2 + $0x9c] sm:$0xf]
        %v3265 = vld [vmem:[#allocation2 + $0xa0] sm:$0xf]
        %v3266 = vld [vmem:[#allocation2 + $0xa4] sm:$0x1]
        %v3267 = vld [vmem:[#allocation2 + $0xa8] sm:$0xf]
        %v3268 = vld [vmem:[#allocation2 + $0xac] sm:$0xf]
        %v3269 = vld [vmem:[#allocation2 + $0xb0] sm:$0x1]
        %v3270 = vld [vmem:[#allocation2 + $0xb4] sm:$0xf]
        %v3271 = vld [vmem:[#allocation2 + $0xb8] sm:$0xf]
        %v3272 = vld [vmem:[#allocation2 + $0xbc] sm:$0x1]
        %v3273 = vld [vmem:[#allocation2 + $0xc0] sm:$0xf]
        %v3274 = vld [vmem:[#allocation2 + $0xc4] sm:$0xf]
        %v3275 = vld [vmem:[#allocation2 + $0xc8] sm:$0x1]
        %v3276 = vld [vmem:[#allocation2 + $0xcc] sm:$0xf]
        %v3277 = vld [vmem:[#allocation2 + $0xd0] sm:$0xf]
        %v3278 = vld [vmem:[#allocation2 + $0xd4] sm:$0x1]
        %v3311 = vunpack.c.l.b16 %v3225
        %v3312 = vunpack.c.l.b16 %v3226
        %v3313 = vunpack.c.l.b16 %v3228
        %v3314 = vunpack.c.l.b16 %v3229
        %v3315 = vunpack.c.l.b16 %v3231
        %v3316 = vunpack.c.l.b16 %v3232
        %v3317 = vunpack.c.l.b16 %v3234
        %v3318 = vunpack.c.l.b16 %v3235
        %v3319 = vunpack.c.l.b16 %v3237
        %v3320 = vunpack.c.l.b16 %v3238
        %v3321 = vunpack.c.l.b16 %v3240
        %v3322 = vunpack.c.l.b16 %v3241
        %v3323 = vunpack.c.l.b16 %v3243
        %v3324 = vunpack.c.l.b16 %v3244
        %v3325 = vunpack.c.l.b16 %v3246
        %v3326 = vunpack.c.l.b16 %v3247
        %v3327 = vunpack.c.l.b16 %v3249
        %v3328 = vunpack.c.l.b16 %v3250
        %v3329 = vunpack.c.l.b16 %v3252
        %v3330 = vunpack.c.l.b16 %v3253
        %v3331 = vunpack.c.l.b16 %v3255
        %v3332 = vunpack.c.l.b16 %v3256
        %v3333 = vunpack.c.l.b16 %v3258
        %v3334 = vunpack.c.l.b16 %v3259
        %v3335 = vunpack.c.l.b16 %v3261
        %v3336 = vunpack.c.l.b16 %v3262
        %v3337 = vunpack.c.l.b16 %v3264
        %v3338 = vunpack.c.l.b16 %v3265
        %v3339 = vunpack.c.l.b16 %v3267
        %v3340 = vunpack.c.l.b16 %v3268
        %v3341 = vunpack.c.l.b16 %v3270
        %v3342 = vunpack.c.l.b16 %v3271
        %v3343 = vpack.c.b16 %v3312, %v3311
        %v3344 = vpack.c.b16 %v3314, %v3313
        %v3345 = vpack.c.b16 %v3316, %v3315
        %v3346 = vpack.c.b16 %v3318, %v3317
        %v3347 = vpack.c.b16 %v3320, %v3319
        %v3348 = vpack.c.b16 %v3322, %v3321
        %v3349 = vpack.c.b16 %v3324, %v3323
        %v3350 = vpack.c.b16 %v3326, %v3325
        %v3351 = vpack.c.b16 %v3328, %v3327
        %v3352 = vpack.c.b16 %v3330, %v3329
        %v3353 = vpack.c.b16 %v3332, %v3331
        %v3354 = vpack.c.b16 %v3334, %v3333
        %v3355 = vpack.c.b16 %v3336, %v3335
        %v3356 = vpack.c.b16 %v3338, %v3337
        %v3357 = vpack.c.b16 %v3340, %v3339
        %v3358 = vpack.c.b16 %v3342, %v3341
        %v3391 = vunpack.c.l.b16 %v3227
        %v3392 = vunpack.c.l.b16 %v3230
        %v3393 = vunpack.c.l.b16 %v3233
        %v3394 = vunpack.c.l.b16 %v3236
        %v3395 = vunpack.c.l.b16 %v3239
        %v3396 = vunpack.c.l.b16 %v3242
        %v3397 = vunpack.c.l.b16 %v3245
        %v3398 = vunpack.c.l.b16 %v3248
        %v3399 = vunpack.c.l.b16 %v3251
        %v3400 = vunpack.c.l.b16 %v3254
        %v3401 = vunpack.c.l.b16 %v3257
        %v3402 = vunpack.c.l.b16 %v3260
        %v3403 = vunpack.c.l.b16 %v3263
        %v3404 = vunpack.c.l.b16 %v3266
        %v3405 = vunpack.c.l.b16 %v3269
        %v3406 = vunpack.c.l.b16 %v3272
        %v3407 = vpack.c.b16 %v3391, %v3391
        %v3408 = vpack.c.b16 %v3392, %v3392
        %v3409 = vpack.c.b16 %v3393, %v3393
        %v3410 = vpack.c.b16 %v3394, %v3394
        %v3411 = vpack.c.b16 %v3395, %v3395
        %v3412 = vpack.c.b16 %v3396, %v3396
        %v3413 = vpack.c.b16 %v3397, %v3397
        %v3414 = vpack.c.b16 %v3398, %v3398
        %v3415 = vpack.c.b16 %v3399, %v3399
        %v3416 = vpack.c.b16 %v3400, %v3400
        %v3417 = vpack.c.b16 %v3401, %v3401
        %v3418 = vpack.c.b16 %v3402, %v3402
        %v3419 = vpack.c.b16 %v3403, %v3403
        %v3420 = vpack.c.b16 %v3404, %v3404
        %v3421 = vpack.c.b16 %v3405, %v3405
        %v3422 = vpack.c.b16 %v3406, %v3406
        %v3424 = vshrl.u32 %v3343, 16
        %v3426 = vshll.u32 %v3343, 16
        %v3428 = vrot.slane %v3426, 1
        %v3429 = vor.u32 %v3424, %v3428
        %v3431 = vshll.u32 %v3407, 16
        %v3433 = vrot.slane %v3431, 1
        %v3434 = vsel %vm572, %v3429, %v3433
        %v3436 = vshrl.u32 %v3344, 16
        %v3438 = vshll.u32 %v3344, 16
        %v3440 = vrot.slane %v3438, 1
        %v3441 = vor.u32 %v3436, %v3440
        %v3443 = vshll.u32 %v3408, 16
        %v3445 = vrot.slane %v3443, 1
        %v3446 = vsel %vm572, %v3441, %v3445
        %v3448 = vshrl.u32 %v3345, 16
        %v3450 = vshll.u32 %v3345, 16
        %v3452 = vrot.slane %v3450, 1
        %v3453 = vor.u32 %v3448, %v3452
        %v3455 = vshll.u32 %v3409, 16
        %v3457 = vrot.slane %v3455, 1
        %v3458 = vsel %vm572, %v3453, %v3457
        %v3460 = vshrl.u32 %v3346, 16
        %v3462 = vshll.u32 %v3346, 16
        %v3464 = vrot.slane %v3462, 1
        %v3465 = vor.u32 %v3460, %v3464
        %v3467 = vshll.u32 %v3410, 16
        %v3469 = vrot.slane %v3467, 1
        %v3470 = vsel %vm572, %v3465, %v3469
        %v3472 = vshrl.u32 %v3347, 16
        %v3474 = vshll.u32 %v3347, 16
        %v3476 = vrot.slane %v3474, 1
        %v3477 = vor.u32 %v3472, %v3476
        %v3479 = vshll.u32 %v3411, 16
        %v3481 = vrot.slane %v3479, 1
        %v3482 = vsel %vm572, %v3477, %v3481
        %v3484 = vshrl.u32 %v3348, 16
        %v3486 = vshll.u32 %v3348, 16
        %v3488 = vrot.slane %v3486, 1
        %v3489 = vor.u32 %v3484, %v3488
        %v3491 = vshll.u32 %v3412, 16
        %v3493 = vrot.slane %v3491, 1
        %v3494 = vsel %vm572, %v3489, %v3493
        %v3496 = vshrl.u32 %v3349, 16
        %v3498 = vshll.u32 %v3349, 16
        %v3500 = vrot.slane %v3498, 1
        %v3501 = vor.u32 %v3496, %v3500
        %v3503 = vshll.u32 %v3413, 16
        %v3505 = vrot.slane %v3503, 1
        %v3506 = vsel %vm572, %v3501, %v3505
        %v3508 = vshrl.u32 %v3350, 16
        %v3510 = vshll.u32 %v3350, 16
        %v3512 = vrot.slane %v3510, 1
        %v3513 = vor.u32 %v3508, %v3512
        %v3515 = vshll.u32 %v3414, 16
        %v3517 = vrot.slane %v3515, 1
        %v3518 = vsel %vm572, %v3513, %v3517
        %v3520 = vshrl.u32 %v3351, 16
        %v3522 = vshll.u32 %v3351, 16
        %v3524 = vrot.slane %v3522, 1
        %v3525 = vor.u32 %v3520, %v3524
        %v3527 = vshll.u32 %v3415, 16
        %v3529 = vrot.slane %v3527, 1
        %v3530 = vsel %vm572, %v3525, %v3529
        %v3532 = vshrl.u32 %v3352, 16
        %v3534 = vshll.u32 %v3352, 16
        %v3536 = vrot.slane %v3534, 1
        %v3537 = vor.u32 %v3532, %v3536
        %v3539 = vshll.u32 %v3416, 16
        %v3541 = vrot.slane %v3539, 1
        %v3542 = vsel %vm572, %v3537, %v3541
        %v3544 = vshrl.u32 %v3353, 16
        %v3546 = vshll.u32 %v3353, 16
        %v3548 = vrot.slane %v3546, 1
        %v3549 = vor.u32 %v3544, %v3548
        %v3551 = vshll.u32 %v3417, 16
        %v3553 = vrot.slane %v3551, 1
        %v3554 = vsel %vm572, %v3549, %v3553
        %v3556 = vshrl.u32 %v3354, 16
        %v3558 = vshll.u32 %v3354, 16
        %v3560 = vrot.slane %v3558, 1
        %v3561 = vor.u32 %v3556, %v3560
        %v3563 = vshll.u32 %v3418, 16
        %v3565 = vrot.slane %v3563, 1
        %v3566 = vsel %vm572, %v3561, %v3565
        %v3568 = vshrl.u32 %v3355, 16
        %v3570 = vshll.u32 %v3355, 16
        %v3572 = vrot.slane %v3570, 1
        %v3573 = vor.u32 %v3568, %v3572
        %v3575 = vshll.u32 %v3419, 16
        %v3577 = vrot.slane %v3575, 1
        %v3578 = vsel %vm572, %v3573, %v3577
        %v3580 = vshrl.u32 %v3356, 16
        %v3582 = vshll.u32 %v3356, 16
        %v3584 = vrot.slane %v3582, 1
        %v3585 = vor.u32 %v3580, %v3584
        %v3587 = vshll.u32 %v3420, 16
        %v3589 = vrot.slane %v3587, 1
        %v3590 = vsel %vm572, %v3585, %v3589
        %v3592 = vshrl.u32 %v3357, 16
        %v3594 = vshll.u32 %v3357, 16
        %v3596 = vrot.slane %v3594, 1
        %v3597 = vor.u32 %v3592, %v3596
        %v3599 = vshll.u32 %v3421, 16
        %v3601 = vrot.slane %v3599, 1
        %v3602 = vsel %vm572, %v3597, %v3601
        %v3604 = vshrl.u32 %v3358, 16
        %v3606 = vshll.u32 %v3358, 16
        %v3608 = vrot.slane %v3606, 1
        %v3609 = vor.u32 %v3604, %v3608
        %v3611 = vshll.u32 %v3422, 16
        %v3613 = vrot.slane %v3611, 1
        %v3614 = vsel %vm572, %v3609, %v3613
        %v3631 = vrot.slane %v3343, 1
        %v3632 = vrot.slane %v3407, 1
        %v3633 = vsel %vm781, %v3631, %v3632
        %v3634 = vrot.slane %v3344, 1
        %v3635 = vrot.slane %v3408, 1
        %v3636 = vsel %vm781, %v3634, %v3635
        %v3637 = vrot.slane %v3345, 1
        %v3638 = vrot.slane %v3409, 1
        %v3639 = vsel %vm781, %v3637, %v3638
        %v3640 = vrot.slane %v3346, 1
        %v3641 = vrot.slane %v3410, 1
        %v3642 = vsel %vm781, %v3640, %v3641
        %v3643 = vrot.slane %v3347, 1
        %v3644 = vrot.slane %v3411, 1
        %v3645 = vsel %vm781, %v3643, %v3644
        %v3646 = vrot.slane %v3348, 1
        %v3647 = vrot.slane %v3412, 1
        %v3648 = vsel %vm781, %v3646, %v3647
        %v3649 = vrot.slane %v3349, 1
        %v3650 = vrot.slane %v3413, 1
        %v3651 = vsel %vm781, %v3649, %v3650
        %v3652 = vrot.slane %v3350, 1
        %v3653 = vrot.slane %v3414, 1
        %v3654 = vsel %vm781, %v3652, %v3653
        %v3655 = vrot.slane %v3351, 1
        %v3656 = vrot.slane %v3415, 1
        %v3657 = vsel %vm781, %v3655, %v3656
        %v3658 = vrot.slane %v3352, 1
        %v3659 = vrot.slane %v3416, 1
        %v3660 = vsel %vm781, %v3658, %v3659
        %v3661 = vrot.slane %v3353, 1
        %v3662 = vrot.slane %v3417, 1
        %v3663 = vsel %vm781, %v3661, %v3662
        %v3664 = vrot.slane %v3354, 1
        %v3665 = vrot.slane %v3418, 1
        %v3666 = vsel %vm781, %v3664, %v3665
        %v3667 = vrot.slane %v3355, 1
        %v3668 = vrot.slane %v3419, 1
        %v3669 = vsel %vm781, %v3667, %v3668
        %v3670 = vrot.slane %v3356, 1
        %v3671 = vrot.slane %v3420, 1
        %v3672 = vsel %vm781, %v3670, %v3671
        %v3673 = vrot.slane %v3357, 1
        %v3674 = vrot.slane %v3421, 1
        %v3675 = vsel %vm781, %v3673, %v3674
        %v3676 = vrot.slane %v3358, 1
        %v3677 = vrot.slane %v3422, 1
        %v3678 = vsel %vm781, %v3676, %v3677
        %v3695 = vld [vmem:[#allocation3] sm:$0xf]
        %v3696 = vld [vmem:[#allocation3 + $0x4] sm:$0xf]
        %v3697 = vld [vmem:[#allocation3 + $0x8] sm:$0xf]
        %v3698 = vld [vmem:[#allocation3 + $0xc] sm:$0xf]
        %v3699 = vld [vmem:[#allocation3 + $0x10] sm:$0xf]
        %v3700 = vld [vmem:[#allocation3 + $0x14] sm:$0xf]
        %v3701 = vld [vmem:[#allocation3 + $0x18] sm:$0xf]
        %v3702 = vld [vmem:[#allocation3 + $0x1c] sm:$0xf]
        %v3703 = vld [vmem:[#allocation3 + $0x20] sm:$0xf]
        %v3704 = vld [vmem:[#allocation3 + $0x24] sm:$0xf]
        %v3705 = vld [vmem:[#allocation3 + $0x28] sm:$0xf]
        %v3706 = vld [vmem:[#allocation3 + $0x2c] sm:$0xf]
        %v3707 = vld [vmem:[#allocation3 + $0x30] sm:$0xf]
        %v3708 = vld [vmem:[#allocation3 + $0x34] sm:$0xf]
        %v3709 = vld [vmem:[#allocation3 + $0x38] sm:$0xf]
        %v3710 = vld [vmem:[#allocation3 + $0x3c] sm:$0xf]
        %v3711 = vld [vmem:[#allocation3 + $0x40] sm:$0xf]
        %v3712 = vld [vmem:[#allocation3 + $0x44] sm:$0xf]
        %v3713 = vld [vmem:[#allocation3 + $0x48] sm:$0xf]
        %v3714 = vld [vmem:[#allocation3 + $0x4c] sm:$0xf]
        %v3715 = vld [vmem:[#allocation3 + $0x50] sm:$0xf]
        %v3716 = vld [vmem:[#allocation3 + $0x54] sm:$0xf]
        %v3717 = vld [vmem:[#allocation3 + $0x58] sm:$0xf]
        %v3718 = vld [vmem:[#allocation3 + $0x5c] sm:$0xf]
        %v3719 = vld [vmem:[#allocation3 + $0x60] sm:$0xf]
        %v3720 = vld [vmem:[#allocation3 + $0x64] sm:$0xf]
        %v3721 = vld [vmem:[#allocation3 + $0x68] sm:$0xf]
        %v3722 = vld [vmem:[#allocation3 + $0x6c] sm:$0xf]
        %v3723 = vld [vmem:[#allocation3 + $0x70] sm:$0xf]
        %v3724 = vld [vmem:[#allocation3 + $0x74] sm:$0xf]
        %v3725 = vld [vmem:[#allocation3 + $0x78] sm:$0xf]
        %v3726 = vld [vmem:[#allocation3 + $0x7c] sm:$0xf]
        %v3727 = vld [vmem:[#allocation3 + $0x80] sm:$0xf]
        %v3728 = vld [vmem:[#allocation3 + $0x84] sm:$0xf]
        %v3729 = vld [vmem:[#allocation3 + $0x88] sm:$0xf]
        %v3730 = vld [vmem:[#allocation3 + $0x8c] sm:$0xf]
        %v3731 = vld [vmem:[#allocation3 + $0x90] sm:$0xf]
        %v3732 = vld [vmem:[#allocation3 + $0x94] sm:$0xf]
        %v3733 = vld [vmem:[#allocation3 + $0x98] sm:$0xf]
        %v3734 = vld [vmem:[#allocation3 + $0x9c] sm:$0xf]
        %v3735 = vld [vmem:[#allocation3 + $0xa0] sm:$0xf]
        %v3736 = vld [vmem:[#allocation3 + $0xa4] sm:$0xf]
        %v3737 = vld [vmem:[#allocation3 + $0xa8] sm:$0xf]
        %v3738 = vld [vmem:[#allocation3 + $0xac] sm:$0xf]
        %v3739 = vld [vmem:[#allocation3 + $0xb0] sm:$0xf]
        %v3740 = vld [vmem:[#allocation3 + $0xb4] sm:$0xf]
        %v3741 = vld [vmem:[#allocation3 + $0xb8] sm:$0xf]
        %v3742 = vld [vmem:[#allocation3 + $0xbc] sm:$0xf]
        %v3745 = vunpack.c.l.b16 %v3273
        %v3746 = vunpack.c.l.b16 %v3274
        %v3747 = vpack.c.b16 %v3746, %v3745
        %v3750 = vunpack.c.l.b16 %v3275
        %v3751 = vpack.c.b16 %v3750, %v3750
        %v3753 = vshrl.u32 %v3747, 16
        %v3755 = vshll.u32 %v3747, 16
        %v3757 = vrot.slane %v3755, 1
        %v3758 = vor.u32 %v3753, %v3757
        %v3760 = vshll.u32 %v3751, 16
        %v3762 = vrot.slane %v3760, 1
        %v3763 = vsel %vm572, %v3758, %v3762
        %v3765 = vrot.slane %v3747, 1
        %v3766 = vrot.slane %v3751, 1
        %v3767 = vsel %vm781, %v3765, %v3766
        %s3769 = scalar_lea.vmem [#allocation3], 192
        %v3770 = vld [vmem:[%s3769] sm:$0xf]
        %v3771 = vld [vmem:[%s3769 + $0x4] sm:$0xf]
        %v3772 = vld [vmem:[%s3769 + $0x8] sm:$0xf]
        %v3773 = vld [vmem:[%s3769 + $0xc] sm:$0xf]
        %v3774 = vld [vmem:[%s3769 + $0x10] sm:$0xf]
        %v3775 = vld [vmem:[%s3769 + $0x14] sm:$0xf]
        %v3776 = vld [vmem:[%s3769 + $0x18] sm:$0xf]
        %v3777 = vld [vmem:[%s3769 + $0x1c] sm:$0xf]
        %v3778 = vld [vmem:[%s3769 + $0x20] sm:$0xf]
        %v3779 = vld [vmem:[%s3769 + $0x24] sm:$0xf]
        %v3780 = vld [vmem:[%s3769 + $0x28] sm:$0xf]
        %v3781 = vld [vmem:[%s3769 + $0x2c] sm:$0xf]
        %v3782 = vld [vmem:[%s3769 + $0x30] sm:$0xf]
        %v3783 = vld [vmem:[%s3769 + $0x34] sm:$0xf]
        %v3784 = vld [vmem:[%s3769 + $0x38] sm:$0xf]
        %v3785 = vld [vmem:[%s3769 + $0x3c] sm:$0xf]
        %v3786 = vld [vmem:[%s3769 + $0x40] sm:$0xf]
        %v3787 = vld [vmem:[%s3769 + $0x44] sm:$0xf]
        %v3788 = vld [vmem:[%s3769 + $0x48] sm:$0xf]
        %v3789 = vld [vmem:[%s3769 + $0x4c] sm:$0xf]
        %v3790 = vld [vmem:[%s3769 + $0x50] sm:$0xf]
        %v3791 = vld [vmem:[%s3769 + $0x54] sm:$0xf]
        %v3792 = vld [vmem:[%s3769 + $0x58] sm:$0xf]
        %v3793 = vld [vmem:[%s3769 + $0x5c] sm:$0xf]
        %v3794 = vld [vmem:[%s3769 + $0x60] sm:$0xf]
        %v3795 = vld [vmem:[%s3769 + $0x64] sm:$0xf]
        %v3796 = vld [vmem:[%s3769 + $0x68] sm:$0xf]
        %v3797 = vld [vmem:[%s3769 + $0x6c] sm:$0xf]
        %v3798 = vld [vmem:[%s3769 + $0x70] sm:$0xf]
        %v3799 = vld [vmem:[%s3769 + $0x74] sm:$0xf]
        %v3800 = vld [vmem:[%s3769 + $0x78] sm:$0xf]
        %v3801 = vld [vmem:[%s3769 + $0x7c] sm:$0xf]
        %v3802 = vld [vmem:[%s3769 + $0x80] sm:$0xf]
        %v3803 = vld [vmem:[%s3769 + $0x84] sm:$0xf]
        %v3804 = vld [vmem:[%s3769 + $0x88] sm:$0xf]
        %v3805 = vld [vmem:[%s3769 + $0x8c] sm:$0xf]
        %v3806 = vld [vmem:[%s3769 + $0x90] sm:$0xf]
        %v3807 = vld [vmem:[%s3769 + $0x94] sm:$0xf]
        %v3808 = vld [vmem:[%s3769 + $0x98] sm:$0xf]
        %v3809 = vld [vmem:[%s3769 + $0x9c] sm:$0xf]
        %v3810 = vld [vmem:[%s3769 + $0xa0] sm:$0xf]
        %v3811 = vld [vmem:[%s3769 + $0xa4] sm:$0xf]
        %v3812 = vld [vmem:[%s3769 + $0xa8] sm:$0xf]
        %v3813 = vld [vmem:[%s3769 + $0xac] sm:$0xf]
        %v3814 = vld [vmem:[%s3769 + $0xb0] sm:$0xf]
        %v3815 = vld [vmem:[%s3769 + $0xb4] sm:$0xf]
        %v3816 = vld [vmem:[%s3769 + $0xb8] sm:$0xf]
        %v3817 = vld [vmem:[%s3769 + $0xbc] sm:$0xf]
        %v3866 = vunpack.c.l.b16 %v3770
        %v3867 = vunpack.c.l.b16 %v3771
        %v3868 = vunpack.c.l.b16 %v3772
        %v3869 = vunpack.c.l.b16 %v3773
        %v3870 = vunpack.c.l.b16 %v3774
        %v3871 = vunpack.c.l.b16 %v3775
        %v3872 = vunpack.c.l.b16 %v3776
        %v3873 = vunpack.c.l.b16 %v3777
        %v3874 = vunpack.c.l.b16 %v3778
        %v3875 = vunpack.c.l.b16 %v3779
        %v3876 = vunpack.c.l.b16 %v3780
        %v3877 = vunpack.c.l.b16 %v3781
        %v3878 = vunpack.c.l.b16 %v3782
        %v3879 = vunpack.c.l.b16 %v3783
        %v3880 = vunpack.c.l.b16 %v3784
        %v3881 = vunpack.c.l.b16 %v3785
        %v3882 = vunpack.c.l.b16 %v3786
        %v3883 = vunpack.c.l.b16 %v3787
        %v3884 = vunpack.c.l.b16 %v3788
        %v3885 = vunpack.c.l.b16 %v3789
        %v3886 = vunpack.c.l.b16 %v3790
        %v3887 = vunpack.c.l.b16 %v3791
        %v3888 = vunpack.c.l.b16 %v3792
        %v3889 = vunpack.c.l.b16 %v3793
        %v3890 = vunpack.c.l.b16 %v3794
        %v3891 = vunpack.c.l.b16 %v3795
        %v3892 = vunpack.c.l.b16 %v3796
        %v3893 = vunpack.c.l.b16 %v3797
        %v3894 = vunpack.c.l.b16 %v3798
        %v3895 = vunpack.c.l.b16 %v3799
        %v3896 = vunpack.c.l.b16 %v3800
        %v3897 = vunpack.c.l.b16 %v3801
        %v3898 = vunpack.c.l.b16 %v3802
        %v3899 = vunpack.c.l.b16 %v3803
        %v3900 = vunpack.c.l.b16 %v3804
        %v3901 = vunpack.c.l.b16 %v3805
        %v3902 = vunpack.c.l.b16 %v3806
        %v3903 = vunpack.c.l.b16 %v3807
        %v3904 = vunpack.c.l.b16 %v3808
        %v3905 = vunpack.c.l.b16 %v3809
        %v3906 = vunpack.c.l.b16 %v3810
        %v3907 = vunpack.c.l.b16 %v3811
        %v3908 = vunpack.c.l.b16 %v3812
        %v3909 = vunpack.c.l.b16 %v3813
        %v3910 = vunpack.c.l.b16 %v3814
        %v3911 = vunpack.c.l.b16 %v3815
        %v3912 = vunpack.c.l.b16 %v3816
        %v3913 = vunpack.c.l.b16 %v3817
        %v3914 = vpack.c.b16 %v3867, %v3866
        %v3915 = vpack.c.b16 %v3869, %v3868
        %v3916 = vpack.c.b16 %v3871, %v3870
        %v3917 = vpack.c.b16 %v3873, %v3872
        %v3918 = vpack.c.b16 %v3875, %v3874
        %v3919 = vpack.c.b16 %v3877, %v3876
        %v3920 = vpack.c.b16 %v3879, %v3878
        %v3921 = vpack.c.b16 %v3881, %v3880
        %v3922 = vpack.c.b16 %v3883, %v3882
        %v3923 = vpack.c.b16 %v3885, %v3884
        %v3924 = vpack.c.b16 %v3887, %v3886
        %v3925 = vpack.c.b16 %v3889, %v3888
        %v3926 = vpack.c.b16 %v3891, %v3890
        %v3927 = vpack.c.b16 %v3893, %v3892
        %v3928 = vpack.c.b16 %v3895, %v3894
        %v3929 = vpack.c.b16 %v3897, %v3896
        %v3930 = vpack.c.b16 %v3899, %v3898
        %v3931 = vpack.c.b16 %v3901, %v3900
        %v3932 = vpack.c.b16 %v3903, %v3902
        %v3933 = vpack.c.b16 %v3905, %v3904
        %v3934 = vpack.c.b16 %v3907, %v3906
        %v3935 = vpack.c.b16 %v3909, %v3908
        %v3936 = vpack.c.b16 %v3911, %v3910
        %v3937 = vpack.c.b16 %v3913, %v3912
        %3962 = vmatprep.subr.bf16.mxu0 0
        %3963 = vmatpush1.bf16.msra.mxu0 %v3914
        %3964 = vmatprep.subr.bf16.mxu0 0
        %3965 = vmatpush1.bf16.msra.mxu0 %v3915
        %3966 = vmatprep.subr.bf16.mxu0 0
        %3967 = vmatpush1.bf16.msra.mxu0 %v3916
        %3968 = vmatprep.subr.bf16.mxu0 0
        %3969 = vmatpush1.bf16.msra.mxu0 %v3917
        %3970 = vmatprep.subr.bf16.mxu0 0
        %3971 = vmatpush1.bf16.msra.mxu0 %v3918
        %3972 = vmatprep.subr.bf16.mxu0 0
        %3973 = vmatpush1.bf16.msra.mxu0 %v3919
        %3974 = vmatprep.subr.bf16.mxu0 0
        %3975 = vmatpush1.bf16.msra.mxu0 %v3920
        %3976 = vmatprep.subr.bf16.mxu0 0
        %3977 = vmatpush1.bf16.msra.mxu0 %v3921
        %3978 = vmatprep.subr.bf16.mxu0 0
        %3979 = vmatpush1.bf16.msra.mxu0 %v3922
        %3980 = vmatprep.subr.bf16.mxu0 0
        %3981 = vmatpush1.bf16.msra.mxu0 %v3923
        %3982 = vmatprep.subr.bf16.mxu0 0
        %3983 = vmatpush1.bf16.msra.mxu0 %v3924
        %3984 = vmatprep.subr.bf16.mxu0 0
        %3985 = vmatpush1.bf16.msra.mxu0 %v3925
        %3986 = vmatprep.subr.bf16.mxu0 0
        %3987 = vmatpush1.bf16.msra.mxu0 %v3926
        %3988 = vmatprep.subr.bf16.mxu0 0
        %3989 = vmatpush1.bf16.msra.mxu0 %v3927
        %3990 = vmatprep.subr.bf16.mxu0 0
        %3991 = vmatpush1.bf16.msra.mxu0 %v3928
        %3992 = vmatprep.subr.bf16.mxu0 0
        %3993 = vmatpush1.bf16.msra.mxu0 %v3929
        %3994 = vmatprep.mubr.bf16.mxu0 %v3446
        %3995 = vmatmul.mubr.bf16.gmra.mrb[0].mxu0 %v3344
        %v3996 = vpop.f32.mrb[0].mxu0
        %v3997 = vadd.f32 0.0, %v3996
        %v3998 = vpop.f32.mrb[0].mxu0
        %v3999 = vpop.f32.mrb[0].mxu0
        %v4000 = vadd.f32 0.0, %v3999
        %v4001 = vpop.f32.mrb[0].mxu0
        %4002 = vmatprep.mubr.bf16.mxu0 %v3458
        %4003 = vmatmul.mubr.bf16.gmra.mrb[0].mxu0 %v3345
        %v4004 = vpop.f32.mrb[0].mxu0
        %v4005 = vadd.f32 0.0, %v4004
        %v4006 = vpop.f32.mrb[0].mxu0
        %v4007 = vpop.f32.mrb[0].mxu0
        %v4008 = vadd.f32 0.0, %v4007
        %v4009 = vpop.f32.mrb[0].mxu0
        %4010 = vmatprep.mubr.bf16.mxu0 %v3470
        %4011 = vmatmul.mubr.bf16.gmra.mrb[0].mxu0 %v3346
        %v4012 = vpop.f32.mrb[0].mxu0
        %v4013 = vadd.f32 0.0, %v4012
        %v4014 = vpop.f32.mrb[0].mxu0
        %v4015 = vpop.f32.mrb[0].mxu0
        %v4016 = vadd.f32 0.0, %v4015
        %v4017 = vpop.f32.mrb[0].mxu0
        %4018 = vmatprep.mubr.bf16.mxu0 %v3482
        %4019 = vmatmul.mubr.bf16.gmra.mrb[0].mxu0 %v3347
        %v4020 = vpop.f32.mrb[0].mxu0
        %v4021 = vadd.f32 0.0, %v4020
        %v4022 = vpop.f32.mrb[0].mxu0
        %v4023 = vpop.f32.mrb[0].mxu0
        %v4024 = vadd.f32 0.0, %v4023
        %v4025 = vpop.f32.mrb[0].mxu0
        %4026 = vmatprep.mubr.bf16.mxu0 %v3494
        %4027 = vmatmul.mubr.bf16.gmra.mrb[0].mxu0 %v3348
        %v4028 = vpop.f32.mrb[0].mxu0
        %v4029 = vadd.f32 0.0, %v4028
        %v4030 = vpop.f32.mrb[0].mxu0
        %v4031 = vpop.f32.mrb[0].mxu0
        %v4032 = vadd.f32 0.0, %v4031
        %v4033 = vpop.f32.mrb[0].mxu0
        %4034 = vmatprep.mubr.bf16.mxu0 %v3506
        %4035 = vmatmul.mubr.bf16.gmra.mrb[0].mxu0 %v3349
        %v4036 = vpop.f32.mrb[0].mxu0
        %v4037 = vadd.f32 0.0, %v4036
        %v4038 = vpop.f32.mrb[0].mxu0
        %v4039 = vpop.f32.mrb[0].mxu0
        %v4040 = vadd.f32 0.0, %v4039
        %v4041 = vpop.f32.mrb[0].mxu0
        %4042 = vmatprep.mubr.bf16.mxu0 %v3518
        %4043 = vmatmul.mubr.bf16.gmra.mrb[0].mxu0 %v3350
        %v4044 = vpop.f32.mrb[0].mxu0
        %v4045 = vadd.f32 0.0, %v4044
        %v4046 = vpop.f32.mrb[0].mxu0
        %v4047 = vpop.f32.mrb[0].mxu0
        %v4048 = vadd.f32 0.0, %v4047
        %v4049 = vpop.f32.mrb[0].mxu0
        %4050 = vmatprep.mubr.bf16.mxu0 %v3530
        %4051 = vmatmul.mubr.bf16.gmra.mrb[0].mxu0 %v3351
        %v4052 = vpop.f32.mrb[0].mxu0
        %v4053 = vadd.f32 0.0, %v4052
        %v4054 = vpop.f32.mrb[0].mxu0
        %v4055 = vpop.f32.mrb[0].mxu0
        %v4056 = vadd.f32 0.0, %v4055
        %v4057 = vpop.f32.mrb[0].mxu0
        %4058 = vmatprep.mubr.bf16.mxu0 %v3542
        %4059 = vmatmul.mubr.bf16.gmra.mrb[0].mxu0 %v3352
        %v4060 = vpop.f32.mrb[0].mxu0
        %v4061 = vadd.f32 0.0, %v4060
        %v4062 = vpop.f32.mrb[0].mxu0
        %v4063 = vpop.f32.mrb[0].mxu0
        %v4064 = vadd.f32 0.0, %v4063
        %v4065 = vpop.f32.mrb[0].mxu0
        %4066 = vmatprep.mubr.bf16.mxu0 %v3554
        %4067 = vmatmul.mubr.bf16.gmra.mrb[0].mxu0 %v3353
        %v4068 = vpop.f32.mrb[0].mxu0
        %v4069 = vadd.f32 0.0, %v4068
        %v4070 = vpop.f32.mrb[0].mxu0
        %v4071 = vpop.f32.mrb[0].mxu0
        %v4072 = vadd.f32 0.0, %v4071
        %v4073 = vpop.f32.mrb[0].mxu0
        %4074 = vmatprep.mubr.bf16.mxu0 %v3566
        %4075 = vmatmul.mubr.bf16.gmra.mrb[0].mxu0 %v3354
        %v4076 = vpop.f32.mrb[0].mxu0
        %v4077 = vadd.f32 0.0, %v4076
        %v4078 = vpop.f32.mrb[0].mxu0
        %v4079 = vpop.f32.mrb[0].mxu0
        %v4080 = vadd.f32 0.0, %v4079
        %v4081 = vpop.f32.mrb[0].mxu0
        %4082 = vmatprep.mubr.bf16.mxu0 %v3578
        %4083 = vmatmul.mubr.bf16.gmra.mrb[0].mxu0 %v3355
        %v4084 = vpop.f32.mrb[0].mxu0
        %v4085 = vadd.f32 0.0, %v4084
        %v4086 = vpop.f32.mrb[0].mxu0
        %v4087 = vpop.f32.mrb[0].mxu0
        %v4088 = vadd.f32 0.0, %v4087
        %v4089 = vpop.f32.mrb[0].mxu0
        %4090 = vmatprep.mubr.bf16.mxu0 %v3590
        %4091 = vmatmul.mubr.bf16.gmra.mrb[0].mxu0 %v3356
        %v4092 = vpop.f32.mrb[0].mxu0
        %v4093 = vadd.f32 0.0, %v4092
        %v4094 = vpop.f32.mrb[0].mxu0
        %v4095 = vpop.f32.mrb[0].mxu0
        %v4096 = vadd.f32 0.0, %v4095
        %v4097 = vpop.f32.mrb[0].mxu0
        %4098 = vmatprep.mubr.bf16.mxu0 %v3602
        %4099 = vmatmul.mubr.bf16.gmra.mrb[0].mxu0 %v3357
        %v4100 = vpop.f32.mrb[0].mxu0
        %v4101 = vadd.f32 0.0, %v4100
        %v4102 = vpop.f32.mrb[0].mxu0
        %v4103 = vpop.f32.mrb[0].mxu0
        %v4104 = vadd.f32 0.0, %v4103
        %v4105 = vpop.f32.mrb[0].mxu0
        %4106 = vmatprep.mubr.bf16.mxu0 %v3614
        %4107 = vmatmul.mubr.bf16.gmra.mrb[0].mxu0 %v3358
        %v4108 = vpop.f32.mrb[0].mxu0
        %v4109 = vadd.f32 0.0, %v4108
        %v4110 = vpop.f32.mrb[0].mxu0
        %v4111 = vpop.f32.mrb[0].mxu0
        %v4112 = vadd.f32 0.0, %v4111
        %v4113 = vpop.f32.mrb[0].mxu0
        %4114 = vmatprep.mubr.bf16.mxu0 %v3763
        %4115 = vmatmul.mubr.bf16.gmra.mrb[0].mxu0 %v3747
        %v4116 = vpop.f32.mrb[0].mxu0
        %v4117 = vadd.f32 0.0, %v4116
        %v4118 = vpop.f32.mrb[0].mxu0
        %v4119 = vpop.f32.mrb[0].mxu0
        %v4120 = vadd.f32 0.0, %v4119
        %v4121 = vpop.f32.mrb[0].mxu0
        %4122 = vdwg.mxu0
        %4123 = vmatprep.subr.bf16.mxu0 0
        %4124 = vmatpush1.bf16.msra.mxu0 %v3930
        %4125 = vmatprep.subr.bf16.mxu0 0
        %4126 = vmatpush1.bf16.msra.mxu0 %v3931
        %4127 = vmatprep.subr.bf16.mxu0 0
        %4128 = vmatpush1.bf16.msra.mxu0 %v3932
        %4129 = vmatprep.subr.bf16.mxu0 0
        %4130 = vmatpush1.bf16.msra.mxu0 %v3933
        %4131 = vmatprep.subr.bf16.mxu0 0
        %4132 = vmatpush1.bf16.msra.mxu0 %v3934
        %4133 = vmatprep.subr.bf16.mxu0 0
        %4134 = vmatpush1.bf16.msra.mxu0 %v3935
        %4135 = vmatprep.subr.bf16.mxu0 0
        %4136 = vmatpush1.bf16.msra.mxu0 %v3936
        %4137 = vmatprep.subr.bf16.mxu0 0
        %4138 = vmatpush1.bf16.msra.mxu0 %v3937
        %4139 = vmatprep.subr.bf16.mxu0 0
        %4140 = vmatpush1.bf16.msra.mxu0 0
        %4141 = vmatprep.subr.bf16.mxu0 0
        %4142 = vmatpush1.bf16.msra.mxu0 0
        %4143 = vmatprep.subr.bf16.mxu0 0
        %4144 = vmatpush1.bf16.msra.mxu0 0
        %4145 = vmatprep.subr.bf16.mxu0 0
        %4146 = vmatpush1.bf16.msra.mxu0 0
        %4147 = vmatprep.subr.bf16.mxu0 0
        %4148 = vmatpush1.bf16.msra.mxu0 0
        %4149 = vmatprep.subr.bf16.mxu0 0
        %4150 = vmatpush1.bf16.msra.mxu0 0
        %4151 = vmatprep.subr.bf16.mxu0 0
        %4152 = vmatpush1.bf16.msra.mxu0 0
        %4153 = vmatprep.subr.bf16.mxu0 0
        %4154 = vmatpush1.bf16.msra.mxu0 0
        %4155 = vmatprep.mubr.bf16.mxu0 0
        %4156 = vmatmul.mubr.bf16.gmra.mrb[0].mxu0 %v3636
        %v4157 = vpop.f32.mrb[0].mxu0
        %v4158 = vadd.f32 %v3997, %v4157
        %v4159 = vpop.f32.mrb[0].mxu0
        %v4160 = vpop.f32.mrb[0].mxu0
        %v4161 = vadd.f32 %v4000, %v4160
        %v4162 = vpop.f32.mrb[0].mxu0
        %4163 = vmatprep.mubr.bf16.mxu0 0
        %4164 = vmatmul.mubr.bf16.gmra.mrb[0].mxu0 %v3639
        %v4165 = vpop.f32.mrb[0].mxu0
        %v4166 = vadd.f32 %v4005, %v4165
        %v4167 = vpop.f32.mrb[0].mxu0
        %v4168 = vpop.f32.mrb[0].mxu0
        %v4169 = vadd.f32 %v4008, %v4168
        %v4170 = vpop.f32.mrb[0].mxu0
        %4171 = vmatprep.mubr.bf16.mxu0 0
        %4172 = vmatmul.mubr.bf16.gmra.mrb[0].mxu0 %v3642
        %v4173 = vpop.f32.mrb[0].mxu0
        %v4174 = vadd.f32 %v4013, %v4173
        %v4175 = vpop.f32.mrb[0].mxu0
        %v4176 = vpop.f32.mrb[0].mxu0
        %v4177 = vadd.f32 %v4016, %v4176
        %v4178 = vpop.f32.mrb[0].mxu0
        %4179 = vmatprep.mubr.bf16.mxu0 0
        %4180 = vmatmul.mubr.bf16.gmra.mrb[0].mxu0 %v3645
        %v4181 = vpop.f32.mrb[0].mxu0
        %v4182 = vadd.f32 %v4021, %v4181
        %v4183 = vpop.f32.mrb[0].mxu0
        %v4184 = vpop.f32.mrb[0].mxu0
        %v4185 = vadd.f32 %v4024, %v4184
        %v4186 = vpop.f32.mrb[0].mxu0
        %4187 = vmatprep.mubr.bf16.mxu0 0
        %4188 = vmatmul.mubr.bf16.gmra.mrb[0].mxu0 %v3648
        %v4189 = vpop.f32.mrb[0].mxu0
        %v4190 = vadd.f32 %v4029, %v4189
        %v4191 = vpop.f32.mrb[0].mxu0
        %v4192 = vpop.f32.mrb[0].mxu0
        %v4193 = vadd.f32 %v4032, %v4192
        %v4194 = vpop.f32.mrb[0].mxu0
        %4195 = vmatprep.mubr.bf16.mxu0 0
        %4196 = vmatmul.mubr.bf16.gmra.mrb[0].mxu0 %v3651
        %v4197 = vpop.f32.mrb[0].mxu0
        %v4198 = vadd.f32 %v4037, %v4197
        %v4199 = vpop.f32.mrb[0].mxu0
        %v4200 = vpop.f32.mrb[0].mxu0
        %v4201 = vadd.f32 %v4040, %v4200
        %v4202 = vpop.f32.mrb[0].mxu0
        %4203 = vmatprep.mubr.bf16.mxu0 0
        %4204 = vmatmul.mubr.bf16.gmra.mrb[0].mxu0 %v3654
        %v4205 = vpop.f32.mrb[0].mxu0
        %v4206 = vadd.f32 %v4045, %v4205
        %v4207 = vpop.f32.mrb[0].mxu0
        %v4208 = vpop.f32.mrb[0].mxu0
        %v4209 = vadd.f32 %v4048, %v4208
        %v4210 = vpop.f32.mrb[0].mxu0
        %4211 = vmatprep.mubr.bf16.mxu0 0
        %4212 = vmatmul.mubr.bf16.gmra.mrb[0].mxu0 %v3657
        %v4213 = vpop.f32.mrb[0].mxu0
        %v4214 = vadd.f32 %v4053, %v4213
        %v4215 = vpop.f32.mrb[0].mxu0
        %v4216 = vpop.f32.mrb[0].mxu0
        %v4217 = vadd.f32 %v4056, %v4216
        %v4218 = vpop.f32.mrb[0].mxu0
        %4219 = vmatprep.mubr.bf16.mxu0 0
        %4220 = vmatmul.mubr.bf16.gmra.mrb[0].mxu0 %v3660
        %v4221 = vpop.f32.mrb[0].mxu0
        %v4222 = vadd.f32 %v4061, %v4221
        %v4223 = vpop.f32.mrb[0].mxu0
        %v4224 = vpop.f32.mrb[0].mxu0
        %v4225 = vadd.f32 %v4064, %v4224
        %v4226 = vpop.f32.mrb[0].mxu0
        %4227 = vmatprep.mubr.bf16.mxu0 0
        %4228 = vmatmul.mubr.bf16.gmra.mrb[0].mxu0 %v3663
        %v4229 = vpop.f32.mrb[0].mxu0
        %v4230 = vadd.f32 %v4069, %v4229
        %v4231 = vpop.f32.mrb[0].mxu0
        %v4232 = vpop.f32.mrb[0].mxu0
        %v4233 = vadd.f32 %v4072, %v4232
        %v4234 = vpop.f32.mrb[0].mxu0
        %4235 = vmatprep.mubr.bf16.mxu0 0
        %4236 = vmatmul.mubr.bf16.gmra.mrb[0].mxu0 %v3666
        %v4237 = vpop.f32.mrb[0].mxu0
        %v4238 = vadd.f32 %v4077, %v4237
        %v4239 = vpop.f32.mrb[0].mxu0
        %v4240 = vpop.f32.mrb[0].mxu0
        %v4241 = vadd.f32 %v4080, %v4240
        %v4242 = vpop.f32.mrb[0].mxu0
        %4243 = vmatprep.mubr.bf16.mxu0 0
        %4244 = vmatmul.mubr.bf16.gmra.mrb[0].mxu0 %v3669
        %v4245 = vpop.f32.mrb[0].mxu0
        %v4246 = vadd.f32 %v4085, %v4245
        %v4247 = vpop.f32.mrb[0].mxu0
        %v4248 = vpop.f32.mrb[0].mxu0
        %v4249 = vadd.f32 %v4088, %v4248
        %v4250 = vpop.f32.mrb[0].mxu0
        %4251 = vmatprep.mubr.bf16.mxu0 0
        %4252 = vmatmul.mubr.bf16.gmra.mrb[0].mxu0 %v3672
        %v4253 = vpop.f32.mrb[0].mxu0
        %v4254 = vadd.f32 %v4093, %v4253
        %v4255 = vpop.f32.mrb[0].mxu0
        %v4256 = vpop.f32.mrb[0].mxu0
        %v4257 = vadd.f32 %v4096, %v4256
        %v4258 = vpop.f32.mrb[0].mxu0
        %4259 = vmatprep.mubr.bf16.mxu0 0
        %4260 = vmatmul.mubr.bf16.gmra.mrb[0].mxu0 %v3675
        %v4261 = vpop.f32.mrb[0].mxu0
        %v4262 = vadd.f32 %v4101, %v4261
        %v4263 = vpop.f32.mrb[0].mxu0
        %v4264 = vpop.f32.mrb[0].mxu0
        %v4265 = vadd.f32 %v4104, %v4264
        %v4266 = vpop.f32.mrb[0].mxu0
        %4267 = vmatprep.mubr.bf16.mxu0 0
        %4268 = vmatmul.mubr.bf16.gmra.mrb[0].mxu0 %v3678
        %v4269 = vpop.f32.mrb[0].mxu0
        %v4270 = vadd.f32 %v4109, %v4269
        %v4271 = vpop.f32.mrb[0].mxu0
        %v4272 = vpop.f32.mrb[0].mxu0
        %v4273 = vadd.f32 %v4112, %v4272
        %v4274 = vpop.f32.mrb[0].mxu0
        %4275 = vmatprep.mubr.bf16.mxu0 0
        %4276 = vmatmul.mubr.bf16.gmra.mrb[0].mxu0 %v3767
        %v4277 = vpop.f32.mrb[0].mxu0
        %v4278 = vadd.f32 %v4117, %v4277
        %v4279 = vpop.f32.mrb[0].mxu0
        %v4280 = vpop.f32.mrb[0].mxu0
        %v4281 = vadd.f32 %v4120, %v4280
        %v4282 = vpop.f32.mrb[0].mxu0
        %4283 = vdwg.mxu0
        %v4332 = vunpack.c.l.b16 %v3695
        %v4333 = vunpack.c.l.b16 %v3696
        %v4334 = vunpack.c.l.b16 %v3697
        %v4335 = vunpack.c.l.b16 %v3698
        %v4336 = vunpack.c.l.b16 %v3699
        %v4337 = vunpack.c.l.b16 %v3700
        %v4338 = vunpack.c.l.b16 %v3701
        %v4339 = vunpack.c.l.b16 %v3702
        %v4340 = vunpack.c.l.b16 %v3703
        %v4341 = vunpack.c.l.b16 %v3704
        %v4342 = vunpack.c.l.b16 %v3705
        %v4343 = vunpack.c.l.b16 %v3706
        %v4344 = vunpack.c.l.b16 %v3707
        %v4345 = vunpack.c.l.b16 %v3708
        %v4346 = vunpack.c.l.b16 %v3709
        %v4347 = vunpack.c.l.b16 %v3710
        %v4348 = vunpack.c.l.b16 %v3711
        %v4349 = vunpack.c.l.b16 %v3712
        %v4350 = vunpack.c.l.b16 %v3713
        %v4351 = vunpack.c.l.b16 %v3714
        %v4352 = vunpack.c.l.b16 %v3715
        %v4353 = vunpack.c.l.b16 %v3716
        %v4354 = vunpack.c.l.b16 %v3717
        %v4355 = vunpack.c.l.b16 %v3718
        %v4356 = vunpack.c.l.b16 %v3719
        %v4357 = vunpack.c.l.b16 %v3720
        %v4358 = vunpack.c.l.b16 %v3721
        %v4359 = vunpack.c.l.b16 %v3722
        %v4360 = vunpack.c.l.b16 %v3723
        %v4361 = vunpack.c.l.b16 %v3724
        %v4362 = vunpack.c.l.b16 %v3725
        %v4363 = vunpack.c.l.b16 %v3726
        %v4364 = vunpack.c.l.b16 %v3727
        %v4365 = vunpack.c.l.b16 %v3728
        %v4366 = vunpack.c.l.b16 %v3729
        %v4367 = vunpack.c.l.b16 %v3730
        %v4368 = vunpack.c.l.b16 %v3731
        %v4369 = vunpack.c.l.b16 %v3732
        %v4370 = vunpack.c.l.b16 %v3733
        %v4371 = vunpack.c.l.b16 %v3734
        %v4372 = vunpack.c.l.b16 %v3735
        %v4373 = vunpack.c.l.b16 %v3736
        %v4374 = vunpack.c.l.b16 %v3737
        %v4375 = vunpack.c.l.b16 %v3738
        %v4376 = vunpack.c.l.b16 %v3739
        %v4377 = vunpack.c.l.b16 %v3740
        %v4378 = vunpack.c.l.b16 %v3741
        %v4379 = vunpack.c.l.b16 %v3742
        %v4380 = vpack.c.b16 %v4333, %v4332
        %v4381 = vpack.c.b16 %v4335, %v4334
        %v4382 = vpack.c.b16 %v4337, %v4336
        %v4383 = vpack.c.b16 %v4339, %v4338
        %v4384 = vpack.c.b16 %v4341, %v4340
        %v4385 = vpack.c.b16 %v4343, %v4342
        %v4386 = vpack.c.b16 %v4345, %v4344
        %v4387 = vpack.c.b16 %v4347, %v4346
        %v4388 = vpack.c.b16 %v4349, %v4348
        %v4389 = vpack.c.b16 %v4351, %v4350
        %v4390 = vpack.c.b16 %v4353, %v4352
        %v4391 = vpack.c.b16 %v4355, %v4354
        %v4392 = vpack.c.b16 %v4357, %v4356
        %v4393 = vpack.c.b16 %v4359, %v4358
        %v4394 = vpack.c.b16 %v4361, %v4360
        %v4395 = vpack.c.b16 %v4363, %v4362
        %v4396 = vpack.c.b16 %v4365, %v4364
        %v4397 = vpack.c.b16 %v4367, %v4366
        %v4398 = vpack.c.b16 %v4369, %v4368
        %v4399 = vpack.c.b16 %v4371, %v4370
        %v4400 = vpack.c.b16 %v4373, %v4372
        %v4401 = vpack.c.b16 %v4375, %v4374
        %v4402 = vpack.c.b16 %v4377, %v4376
        %v4403 = vpack.c.b16 %v4379, %v4378
        %4428 = vmatprep.subr.bf16.mxu0 0
        %4429 = vmatpush1.bf16.msra.mxu0 %v4380
        %4430 = vmatprep.subr.bf16.mxu0 0
        %4431 = vmatpush1.bf16.msra.mxu0 %v4381
        %4432 = vmatprep.subr.bf16.mxu0 0
        %4433 = vmatpush1.bf16.msra.mxu0 %v4382
        %4434 = vmatprep.subr.bf16.mxu0 0
        %4435 = vmatpush1.bf16.msra.mxu0 %v4383
        %4436 = vmatprep.subr.bf16.mxu0 0
        %4437 = vmatpush1.bf16.msra.mxu0 %v4384
        %4438 = vmatprep.subr.bf16.mxu0 0
        %4439 = vmatpush1.bf16.msra.mxu0 %v4385
        %4440 = vmatprep.subr.bf16.mxu0 0
        %4441 = vmatpush1.bf16.msra.mxu0 %v4386
        %4442 = vmatprep.subr.bf16.mxu0 0
        %4443 = vmatpush1.bf16.msra.mxu0 %v4387
        %4444 = vmatprep.subr.bf16.mxu0 0
        %4445 = vmatpush1.bf16.msra.mxu0 %v4388
        %4446 = vmatprep.subr.bf16.mxu0 0
        %4447 = vmatpush1.bf16.msra.mxu0 %v4389
        %4448 = vmatprep.subr.bf16.mxu0 0
        %4449 = vmatpush1.bf16.msra.mxu0 %v4390
        %4450 = vmatprep.subr.bf16.mxu0 0
        %4451 = vmatpush1.bf16.msra.mxu0 %v4391
        %4452 = vmatprep.subr.bf16.mxu0 0
        %4453 = vmatpush1.bf16.msra.mxu0 %v4392
        %4454 = vmatprep.subr.bf16.mxu0 0
        %4455 = vmatpush1.bf16.msra.mxu0 %v4393
        %4456 = vmatprep.subr.bf16.mxu0 0
        %4457 = vmatpush1.bf16.msra.mxu0 %v4394
        %4458 = vmatprep.subr.bf16.mxu0 0
        %4459 = vmatpush1.bf16.msra.mxu0 %v4395
        %4460 = vmatprep.mubr.bf16.mxu0 %v3434
        %4461 = vmatmul.mubr.bf16.gmra.mrb[0].mxu0 %v3343
        %v4462 = vpop.f32.mrb[0].mxu0
        %v4463 = vadd.f32 %v4158, %v4462
        %v4464 = vpop.f32.mrb[0].mxu0
        %v4465 = vpop.f32.mrb[0].mxu0
        %v4466 = vadd.f32 %v4161, %v4465
        %v4467 = vpop.f32.mrb[0].mxu0
        %4468 = vmatprep.mubr.bf16.mxu0 %v3446
        %4469 = vmatmul.mubr.bf16.gmra.mrb[0].mxu0 %v3344
        %v4470 = vpop.f32.mrb[0].mxu0
        %v4471 = vadd.f32 %v4166, %v4470
        %v4472 = vpop.f32.mrb[0].mxu0
        %v4473 = vpop.f32.mrb[0].mxu0
        %v4474 = vadd.f32 %v4169, %v4473
        %v4475 = vpop.f32.mrb[0].mxu0
        %4476 = vmatprep.mubr.bf16.mxu0 %v3458
        %4477 = vmatmul.mubr.bf16.gmra.mrb[0].mxu0 %v3345
        %v4478 = vpop.f32.mrb[0].mxu0
        %v4479 = vadd.f32 %v4174, %v4478
        %v4480 = vpop.f32.mrb[0].mxu0
        %v4481 = vpop.f32.mrb[0].mxu0
        %v4482 = vadd.f32 %v4177, %v4481
        %v4483 = vpop.f32.mrb[0].mxu0
        %4484 = vmatprep.mubr.bf16.mxu0 %v3470
        %4485 = vmatmul.mubr.bf16.gmra.mrb[0].mxu0 %v3346
        %v4486 = vpop.f32.mrb[0].mxu0
        %v4487 = vadd.f32 %v4182, %v4486
        %v4488 = vpop.f32.mrb[0].mxu0
        %v4489 = vpop.f32.mrb[0].mxu0
        %v4490 = vadd.f32 %v4185, %v4489
        %v4491 = vpop.f32.mrb[0].mxu0
        %4492 = vmatprep.mubr.bf16.mxu0 %v3482
        %4493 = vmatmul.mubr.bf16.gmra.mrb[0].mxu0 %v3347
        %v4494 = vpop.f32.mrb[0].mxu0
        %v4495 = vadd.f32 %v4190, %v4494
        %v4496 = vpop.f32.mrb[0].mxu0
        %v4497 = vpop.f32.mrb[0].mxu0
        %v4498 = vadd.f32 %v4193, %v4497
        %v4499 = vpop.f32.mrb[0].mxu0
        %4500 = vmatprep.mubr.bf16.mxu0 %v3494
        %4501 = vmatmul.mubr.bf16.gmra.mrb[0].mxu0 %v3348
        %v4502 = vpop.f32.mrb[0].mxu0
        %v4503 = vadd.f32 %v4198, %v4502
        %v4504 = vpop.f32.mrb[0].mxu0
        %v4505 = vpop.f32.mrb[0].mxu0
        %v4506 = vadd.f32 %v4201, %v4505
        %v4507 = vpop.f32.mrb[0].mxu0
        %4508 = vmatprep.mubr.bf16.mxu0 %v3506
        %4509 = vmatmul.mubr.bf16.gmra.mrb[0].mxu0 %v3349
        %v4510 = vpop.f32.mrb[0].mxu0
        %v4511 = vadd.f32 %v4206, %v4510
        %v4512 = vpop.f32.mrb[0].mxu0
        %v4513 = vpop.f32.mrb[0].mxu0
        %v4514 = vadd.f32 %v4209, %v4513
        %v4515 = vpop.f32.mrb[0].mxu0
        %4516 = vmatprep.mubr.bf16.mxu0 %v3518
        %4517 = vmatmul.mubr.bf16.gmra.mrb[0].mxu0 %v3350
        %v4518 = vpop.f32.mrb[0].mxu0
        %v4519 = vadd.f32 %v4214, %v4518
        %v4520 = vpop.f32.mrb[0].mxu0
        %v4521 = vpop.f32.mrb[0].mxu0
        %v4522 = vadd.f32 %v4217, %v4521
        %v4523 = vpop.f32.mrb[0].mxu0
        %4524 = vmatprep.mubr.bf16.mxu0 %v3530
        %4525 = vmatmul.mubr.bf16.gmra.mrb[0].mxu0 %v3351
        %v4526 = vpop.f32.mrb[0].mxu0
        %v4527 = vadd.f32 %v4222, %v4526
        %v4528 = vpop.f32.mrb[0].mxu0
        %v4529 = vpop.f32.mrb[0].mxu0
        %v4530 = vadd.f32 %v4225, %v4529
        %v4531 = vpop.f32.mrb[0].mxu0
        %4532 = vmatprep.mubr.bf16.mxu0 %v3542
        %4533 = vmatmul.mubr.bf16.gmra.mrb[0].mxu0 %v3352
        %v4534 = vpop.f32.mrb[0].mxu0
        %v4535 = vadd.f32 %v4230, %v4534
        %v4536 = vpop.f32.mrb[0].mxu0
        %v4537 = vpop.f32.mrb[0].mxu0
        %v4538 = vadd.f32 %v4233, %v4537
        %v4539 = vpop.f32.mrb[0].mxu0
        %4540 = vmatprep.mubr.bf16.mxu0 %v3554
        %4541 = vmatmul.mubr.bf16.gmra.mrb[0].mxu0 %v3353
        %v4542 = vpop.f32.mrb[0].mxu0
        %v4543 = vadd.f32 %v4238, %v4542
        %v4544 = vpop.f32.mrb[0].mxu0
        %v4545 = vpop.f32.mrb[0].mxu0
        %v4546 = vadd.f32 %v4241, %v4545
        %v4547 = vpop.f32.mrb[0].mxu0
        %4548 = vmatprep.mubr.bf16.mxu0 %v3566
        %4549 = vmatmul.mubr.bf16.gmra.mrb[0].mxu0 %v3354
        %v4550 = vpop.f32.mrb[0].mxu0
        %v4551 = vadd.f32 %v4246, %v4550
        %v4552 = vpop.f32.mrb[0].mxu0
        %v4553 = vpop.f32.mrb[0].mxu0
        %v4554 = vadd.f32 %v4249, %v4553
        %v4555 = vpop.f32.mrb[0].mxu0
        %4556 = vmatprep.mubr.bf16.mxu0 %v3578
        %4557 = vmatmul.mubr.bf16.gmra.mrb[0].mxu0 %v3355
        %v4558 = vpop.f32.mrb[0].mxu0
        %v4559 = vadd.f32 %v4254, %v4558
        %v4560 = vpop.f32.mrb[0].mxu0
        %v4561 = vpop.f32.mrb[0].mxu0
        %v4562 = vadd.f32 %v4257, %v4561
        %v4563 = vpop.f32.mrb[0].mxu0
        %4564 = vmatprep.mubr.bf16.mxu0 %v3590
        %4565 = vmatmul.mubr.bf16.gmra.mrb[0].mxu0 %v3356
        %v4566 = vpop.f32.mrb[0].mxu0
        %v4567 = vadd.f32 %v4262, %v4566
        %v4568 = vpop.f32.mrb[0].mxu0
        %v4569 = vpop.f32.mrb[0].mxu0
        %v4570 = vadd.f32 %v4265, %v4569
        %v4571 = vpop.f32.mrb[0].mxu0
        %4572 = vmatprep.mubr.bf16.mxu0 %v3602
        %4573 = vmatmul.mubr.bf16.gmra.mrb[0].mxu0 %v3357
        %v4574 = vpop.f32.mrb[0].mxu0
        %v4575 = vadd.f32 %v4270, %v4574
        %v4576 = vpop.f32.mrb[0].mxu0
        %v4577 = vpop.f32.mrb[0].mxu0
        %v4578 = vadd.f32 %v4273, %v4577
        %v4579 = vpop.f32.mrb[0].mxu0
        %4580 = vmatprep.mubr.bf16.mxu0 %v3614
        %4581 = vmatmul.mubr.bf16.gmra.mrb[0].mxu0 %v3358
        %v4582 = vpop.f32.mrb[0].mxu0
        %v4583 = vadd.f32 %v4278, %v4582
        %v4584 = vpop.f32.mrb[0].mxu0
        %v4585 = vpop.f32.mrb[0].mxu0
        %v4586 = vadd.f32 %v4281, %v4585
        %v4587 = vpop.f32.mrb[0].mxu0
        %4588 = vdwg.mxu0
        %4589 = vmatprep.subr.bf16.mxu0 0
        %4590 = vmatpush1.bf16.msra.mxu0 %v4396
        %4591 = vmatprep.subr.bf16.mxu0 0
        %4592 = vmatpush1.bf16.msra.mxu0 %v4397
        %4593 = vmatprep.subr.bf16.mxu0 0
        %4594 = vmatpush1.bf16.msra.mxu0 %v4398
        %4595 = vmatprep.subr.bf16.mxu0 0
        %4596 = vmatpush1.bf16.msra.mxu0 %v4399
        %4597 = vmatprep.subr.bf16.mxu0 0
        %4598 = vmatpush1.bf16.msra.mxu0 %v4400
        %4599 = vmatprep.subr.bf16.mxu0 0
        %4600 = vmatpush1.bf16.msra.mxu0 %v4401
        %4601 = vmatprep.subr.bf16.mxu0 0
        %4602 = vmatpush1.bf16.msra.mxu0 %v4402
        %4603 = vmatprep.subr.bf16.mxu0 0
        %4604 = vmatpush1.bf16.msra.mxu0 %v4403
        %4605 = vmatprep.subr.bf16.mxu0 0
        %4606 = vmatpush1.bf16.msra.mxu0 0
        %4607 = vmatprep.subr.bf16.mxu0 0
        %4608 = vmatpush1.bf16.msra.mxu0 0
        %4609 = vmatprep.subr.bf16.mxu0 0
        %4610 = vmatpush1.bf16.msra.mxu0 0
        %4611 = vmatprep.subr.bf16.mxu0 0
        %4612 = vmatpush1.bf16.msra.mxu0 0
        %4613 = vmatprep.subr.bf16.mxu0 0
        %4614 = vmatpush1.bf16.msra.mxu0 0
        %4615 = vmatprep.subr.bf16.mxu0 0
        %4616 = vmatpush1.bf16.msra.mxu0 0
        %4617 = vmatprep.subr.bf16.mxu0 0
        %4618 = vmatpush1.bf16.msra.mxu0 0
        %4619 = vmatprep.subr.bf16.mxu0 0
        %4620 = vmatpush1.bf16.msra.mxu0 0
        %4621 = vmatprep.mubr.bf16.mxu0 0
        %4622 = vmatmul.mubr.bf16.gmra.mrb[0].mxu0 %v3633
        %v4623 = vpop.f32.mrb[0].mxu0
        %v4624 = vadd.f32 %v4463, %v4623
        %v4625 = vpop.f32.mrb[0].mxu0
        %v4626 = vpop.f32.mrb[0].mxu0
        %v4627 = vadd.f32 %v4466, %v4626
        %v4628 = vpop.f32.mrb[0].mxu0
        %4629 = vmatprep.mubr.bf16.mxu0 0
        %4630 = vmatmul.mubr.bf16.gmra.mrb[0].mxu0 %v3636
        %v4631 = vpop.f32.mrb[0].mxu0
        %v4632 = vadd.f32 %v4471, %v4631
        %v4633 = vpop.f32.mrb[0].mxu0
        %v4634 = vpop.f32.mrb[0].mxu0
        %v4635 = vadd.f32 %v4474, %v4634
        %v4636 = vpop.f32.mrb[0].mxu0
        %4637 = vmatprep.mubr.bf16.mxu0 0
        %4638 = vmatmul.mubr.bf16.gmra.mrb[0].mxu0 %v3639
        %v4639 = vpop.f32.mrb[0].mxu0
        %v4640 = vadd.f32 %v4479, %v4639
        %v4641 = vpop.f32.mrb[0].mxu0
        %v4642 = vpop.f32.mrb[0].mxu0
        %v4643 = vadd.f32 %v4482, %v4642
        %v4644 = vpop.f32.mrb[0].mxu0
        %4645 = vmatprep.mubr.bf16.mxu0 0
        %4646 = vmatmul.mubr.bf16.gmra.mrb[0].mxu0 %v3642
        %v4647 = vpop.f32.mrb[0].mxu0
        %v4648 = vadd.f32 %v4487, %v4647
        %v4649 = vpop.f32.mrb[0].mxu0
        %v4650 = vpop.f32.mrb[0].mxu0
        %v4651 = vadd.f32 %v4490, %v4650
        %v4652 = vpop.f32.mrb[0].mxu0
        %4653 = vmatprep.mubr.bf16.mxu0 0
        %4654 = vmatmul.mubr.bf16.gmra.mrb[0].mxu0 %v3645
        %v4655 = vpop.f32.mrb[0].mxu0
        %v4656 = vadd.f32 %v4495, %v4655
        %v4657 = vpop.f32.mrb[0].mxu0
        %v4658 = vpop.f32.mrb[0].mxu0
        %v4659 = vadd.f32 %v4498, %v4658
        %v4660 = vpop.f32.mrb[0].mxu0
        %4661 = vmatprep.mubr.bf16.mxu0 0
        %4662 = vmatmul.mubr.bf16.gmra.mrb[0].mxu0 %v3648
        %v4663 = vpop.f32.mrb[0].mxu0
        %v4664 = vadd.f32 %v4503, %v4663
        %v4665 = vpop.f32.mrb[0].mxu0
        %v4666 = vpop.f32.mrb[0].mxu0
        %v4667 = vadd.f32 %v4506, %v4666
        %v4668 = vpop.f32.mrb[0].mxu0
        %4669 = vmatprep.mubr.bf16.mxu0 0
        %4670 = vmatmul.mubr.bf16.gmra.mrb[0].mxu0 %v3651
        %v4671 = vpop.f32.mrb[0].mxu0
        %v4672 = vadd.f32 %v4511, %v4671
        %v4673 = vpop.f32.mrb[0].mxu0
        %v4674 = vpop.f32.mrb[0].mxu0
        %v4675 = vadd.f32 %v4514, %v4674
        %v4676 = vpop.f32.mrb[0].mxu0
        %4677 = vmatprep.mubr.bf16.mxu0 0
        %4678 = vmatmul.mubr.bf16.gmra.mrb[0].mxu0 %v3654
        %v4679 = vpop.f32.mrb[0].mxu0
        %v4680 = vadd.f32 %v4519, %v4679
        %v4681 = vpop.f32.mrb[0].mxu0
        %v4682 = vpop.f32.mrb[0].mxu0
        %v4683 = vadd.f32 %v4522, %v4682
        %v4684 = vpop.f32.mrb[0].mxu0
        %4685 = vmatprep.mubr.bf16.mxu0 0
        %4686 = vmatmul.mubr.bf16.gmra.mrb[0].mxu0 %v3657
        %v4687 = vpop.f32.mrb[0].mxu0
        %v4688 = vadd.f32 %v4527, %v4687
        %v4689 = vpop.f32.mrb[0].mxu0
        %v4690 = vpop.f32.mrb[0].mxu0
        %v4691 = vadd.f32 %v4530, %v4690
        %v4692 = vpop.f32.mrb[0].mxu0
        %4693 = vmatprep.mubr.bf16.mxu0 0
        %4694 = vmatmul.mubr.bf16.gmra.mrb[0].mxu0 %v3660
        %v4695 = vpop.f32.mrb[0].mxu0
        %v4696 = vadd.f32 %v4535, %v4695
        %v4697 = vpop.f32.mrb[0].mxu0
        %v4698 = vpop.f32.mrb[0].mxu0
        %v4699 = vadd.f32 %v4538, %v4698
        %v4700 = vpop.f32.mrb[0].mxu0
        %4701 = vmatprep.mubr.bf16.mxu0 0
        %4702 = vmatmul.mubr.bf16.gmra.mrb[0].mxu0 %v3663
        %v4703 = vpop.f32.mrb[0].mxu0
        %v4704 = vadd.f32 %v4543, %v4703
        %v4705 = vpop.f32.mrb[0].mxu0
        %v4706 = vpop.f32.mrb[0].mxu0
        %v4707 = vadd.f32 %v4546, %v4706
        %v4708 = vpop.f32.mrb[0].mxu0
        %4709 = vmatprep.mubr.bf16.mxu0 0
        %4710 = vmatmul.mubr.bf16.gmra.mrb[0].mxu0 %v3666
        %v4711 = vpop.f32.mrb[0].mxu0
        %v4712 = vadd.f32 %v4551, %v4711
        %v4713 = vpop.f32.mrb[0].mxu0
        %v4714 = vpop.f32.mrb[0].mxu0
        %v4715 = vadd.f32 %v4554, %v4714
        %v4716 = vpop.f32.mrb[0].mxu0
        %4717 = vmatprep.mubr.bf16.mxu0 0
        %4718 = vmatmul.mubr.bf16.gmra.mrb[0].mxu0 %v3669
        %v4719 = vpop.f32.mrb[0].mxu0
        %v4720 = vadd.f32 %v4559, %v4719
        %v4721 = vpop.f32.mrb[0].mxu0
        %v4722 = vpop.f32.mrb[0].mxu0
        %v4723 = vadd.f32 %v4562, %v4722
        %v4724 = vpop.f32.mrb[0].mxu0
        %4725 = vmatprep.mubr.bf16.mxu0 0
        %4726 = vmatmul.mubr.bf16.gmra.mrb[0].mxu0 %v3672
        %v4727 = vpop.f32.mrb[0].mxu0
        %v4728 = vadd.f32 %v4567, %v4727
        %v4729 = vpop.f32.mrb[0].mxu0
        %v4730 = vpop.f32.mrb[0].mxu0
        %v4731 = vadd.f32 %v4570, %v4730
        %v4732 = vpop.f32.mrb[0].mxu0
        %4733 = vmatprep.mubr.bf16.mxu0 0
        %4734 = vmatmul.mubr.bf16.gmra.mrb[0].mxu0 %v3675
        %v4735 = vpop.f32.mrb[0].mxu0
        %v4736 = vadd.f32 %v4575, %v4735
        %v4737 = vpop.f32.mrb[0].mxu0
        %v4738 = vpop.f32.mrb[0].mxu0
        %v4739 = vadd.f32 %v4578, %v4738
        %v4740 = vpop.f32.mrb[0].mxu0
        %4741 = vmatprep.mubr.bf16.mxu0 0
        %4742 = vmatmul.mubr.bf16.gmra.mrb[0].mxu0 %v3678
        %v4743 = vpop.f32.mrb[0].mxu0
        %v4744 = vadd.f32 %v4583, %v4743
        %v4745 = vpop.f32.mrb[0].mxu0
        %v4746 = vpop.f32.mrb[0].mxu0
        %v4747 = vadd.f32 %v4586, %v4746
        %v4748 = vpop.f32.mrb[0].mxu0
        %4749 = vdwg.mxu0
        %v4752 = vunpack.c.l.b16 %v3276
        %v4753 = vunpack.c.l.b16 %v3277
        %v4754 = vpack.c.b16 %v4753, %v4752
        %v4757 = vunpack.c.l.b16 %v3278
        %v4758 = vpack.c.b16 %v4757, %v4757
        %v4760 = vshrl.u32 %v4754, 16
        %v4762 = vshll.u32 %v4754, 16
        %v4764 = vrot.slane %v4762, 1
        %v4765 = vor.u32 %v4760, %v4764
        %v4767 = vshll.u32 %v4758, 16
        %v4769 = vrot.slane %v4767, 1
        %v4770 = vsel %vm572, %v4765, %v4769
        %v4772 = vrot.slane %v4754, 1
        %v4773 = vrot.slane %v4758, 1
        %v4774 = vsel %vm781, %v4772, %v4773
        %s4776 = scalar_lea.vmem [#allocation3], 384
        %v4777 = vld [vmem:[%s4776] sm:$0xf]
        %v4778 = vld [vmem:[%s4776 + $0x4] sm:$0xf]
        %v4779 = vld [vmem:[%s4776 + $0x8] sm:$0xf]
        %v4780 = vld [vmem:[%s4776 + $0xc] sm:$0xf]
        %v4781 = vld [vmem:[%s4776 + $0x10] sm:$0xf]
        %v4782 = vld [vmem:[%s4776 + $0x14] sm:$0xf]
        %v4783 = vld [vmem:[%s4776 + $0x18] sm:$0xf]
        %v4784 = vld [vmem:[%s4776 + $0x1c] sm:$0xf]
        %v4785 = vld [vmem:[%s4776 + $0x20] sm:$0xf]
        %v4786 = vld [vmem:[%s4776 + $0x24] sm:$0xf]
        %v4787 = vld [vmem:[%s4776 + $0x28] sm:$0xf]
        %v4788 = vld [vmem:[%s4776 + $0x2c] sm:$0xf]
        %v4789 = vld [vmem:[%s4776 + $0x30] sm:$0xf]
        %v4790 = vld [vmem:[%s4776 + $0x34] sm:$0xf]
        %v4791 = vld [vmem:[%s4776 + $0x38] sm:$0xf]
        %v4792 = vld [vmem:[%s4776 + $0x3c] sm:$0xf]
        %v4793 = vld [vmem:[%s4776 + $0x40] sm:$0xf]
        %v4794 = vld [vmem:[%s4776 + $0x44] sm:$0xf]
        %v4795 = vld [vmem:[%s4776 + $0x48] sm:$0xf]
        %v4796 = vld [vmem:[%s4776 + $0x4c] sm:$0xf]
        %v4797 = vld [vmem:[%s4776 + $0x50] sm:$0xf]
        %v4798 = vld [vmem:[%s4776 + $0x54] sm:$0xf]
        %v4799 = vld [vmem:[%s4776 + $0x58] sm:$0xf]
        %v4800 = vld [vmem:[%s4776 + $0x5c] sm:$0xf]
        %v4801 = vld [vmem:[%s4776 + $0x60] sm:$0xf]
        %v4802 = vld [vmem:[%s4776 + $0x64] sm:$0xf]
        %v4803 = vld [vmem:[%s4776 + $0x68] sm:$0xf]
        %v4804 = vld [vmem:[%s4776 + $0x6c] sm:$0xf]
        %v4805 = vld [vmem:[%s4776 + $0x70] sm:$0xf]
        %v4806 = vld [vmem:[%s4776 + $0x74] sm:$0xf]
        %v4807 = vld [vmem:[%s4776 + $0x78] sm:$0xf]
        %v4808 = vld [vmem:[%s4776 + $0x7c] sm:$0xf]
        %v4809 = vld [vmem:[%s4776 + $0x80] sm:$0xf]
        %v4810 = vld [vmem:[%s4776 + $0x84] sm:$0xf]
        %v4811 = vld [vmem:[%s4776 + $0x88] sm:$0xf]
        %v4812 = vld [vmem:[%s4776 + $0x8c] sm:$0xf]
        %v4813 = vld [vmem:[%s4776 + $0x90] sm:$0xf]
        %v4814 = vld [vmem:[%s4776 + $0x94] sm:$0xf]
        %v4815 = vld [vmem:[%s4776 + $0x98] sm:$0xf]
        %v4816 = vld [vmem:[%s4776 + $0x9c] sm:$0xf]
        %v4817 = vld [vmem:[%s4776 + $0xa0] sm:$0xf]
        %v4818 = vld [vmem:[%s4776 + $0xa4] sm:$0xf]
        %v4819 = vld [vmem:[%s4776 + $0xa8] sm:$0xf]
        %v4820 = vld [vmem:[%s4776 + $0xac] sm:$0xf]
        %v4821 = vld [vmem:[%s4776 + $0xb0] sm:$0xf]
        %v4822 = vld [vmem:[%s4776 + $0xb4] sm:$0xf]
        %v4823 = vld [vmem:[%s4776 + $0xb8] sm:$0xf]
        %v4824 = vld [vmem:[%s4776 + $0xbc] sm:$0xf]
        %v4873 = vunpack.c.l.b16 %v4777
        %v4874 = vunpack.c.l.b16 %v4778
        %v4875 = vunpack.c.l.b16 %v4779
        %v4876 = vunpack.c.l.b16 %v4780
        %v4877 = vunpack.c.l.b16 %v4781
        %v4878 = vunpack.c.l.b16 %v4782
        %v4879 = vunpack.c.l.b16 %v4783
        %v4880 = vunpack.c.l.b16 %v4784
        %v4881 = vunpack.c.l.b16 %v4785
        %v4882 = vunpack.c.l.b16 %v4786
        %v4883 = vunpack.c.l.b16 %v4787
        %v4884 = vunpack.c.l.b16 %v4788
        %v4885 = vunpack.c.l.b16 %v4789
        %v4886 = vunpack.c.l.b16 %v4790
        %v4887 = vunpack.c.l.b16 %v4791
        %v4888 = vunpack.c.l.b16 %v4792
        %v4889 = vunpack.c.l.b16 %v4793
        %v4890 = vunpack.c.l.b16 %v4794
        %v4891 = vunpack.c.l.b16 %v4795
        %v4892 = vunpack.c.l.b16 %v4796
        %v4893 = vunpack.c.l.b16 %v4797
        %v4894 = vunpack.c.l.b16 %v4798
        %v4895 = vunpack.c.l.b16 %v4799
        %v4896 = vunpack.c.l.b16 %v4800
        %v4897 = vunpack.c.l.b16 %v4801
        %v4898 = vunpack.c.l.b16 %v4802
        %v4899 = vunpack.c.l.b16 %v4803
        %v4900 = vunpack.c.l.b16 %v4804
        %v4901 = vunpack.c.l.b16 %v4805
        %v4902 = vunpack.c.l.b16 %v4806
        %v4903 = vunpack.c.l.b16 %v4807
        %v4904 = vunpack.c.l.b16 %v4808
        %v4905 = vunpack.c.l.b16 %v4809
        %v4906 = vunpack.c.l.b16 %v4810
        %v4907 = vunpack.c.l.b16 %v4811
        %v4908 = vunpack.c.l.b16 %v4812
        %v4909 = vunpack.c.l.b16 %v4813
        %v4910 = vunpack.c.l.b16 %v4814
        %v4911 = vunpack.c.l.b16 %v4815
        %v4912 = vunpack.c.l.b16 %v4816
        %v4913 = vunpack.c.l.b16 %v4817
        %v4914 = vunpack.c.l.b16 %v4818
        %v4915 = vunpack.c.l.b16 %v4819
        %v4916 = vunpack.c.l.b16 %v4820
        %v4917 = vunpack.c.l.b16 %v4821
        %v4918 = vunpack.c.l.b16 %v4822
        %v4919 = vunpack.c.l.b16 %v4823
        %v4920 = vunpack.c.l.b16 %v4824
        %v4921 = vpack.c.b16 %v4874, %v4873
        %v4922 = vpack.c.b16 %v4876, %v4875
        %v4923 = vpack.c.b16 %v4878, %v4877
        %v4924 = vpack.c.b16 %v4880, %v4879
        %v4925 = vpack.c.b16 %v4882, %v4881
        %v4926 = vpack.c.b16 %v4884, %v4883
        %v4927 = vpack.c.b16 %v4886, %v4885
        %v4928 = vpack.c.b16 %v4888, %v4887
        %v4929 = vpack.c.b16 %v4890, %v4889
        %v4930 = vpack.c.b16 %v4892, %v4891
        %v4931 = vpack.c.b16 %v4894, %v4893
        %v4932 = vpack.c.b16 %v4896, %v4895
        %v4933 = vpack.c.b16 %v4898, %v4897
        %v4934 = vpack.c.b16 %v4900, %v4899
        %v4935 = vpack.c.b16 %v4902, %v4901
        %v4936 = vpack.c.b16 %v4904, %v4903
        %v4937 = vpack.c.b16 %v4906, %v4905
        %v4938 = vpack.c.b16 %v4908, %v4907
        %v4939 = vpack.c.b16 %v4910, %v4909
        %v4940 = vpack.c.b16 %v4912, %v4911
        %v4941 = vpack.c.b16 %v4914, %v4913
        %v4942 = vpack.c.b16 %v4916, %v4915
        %v4943 = vpack.c.b16 %v4918, %v4917
        %v4944 = vpack.c.b16 %v4920, %v4919
        %4969 = vmatprep.subr.bf16.mxu0 0
        %4970 = vmatpush1.bf16.msra.mxu0 %v4921
        %4971 = vmatprep.subr.bf16.mxu0 0
        %4972 = vmatpush1.bf16.msra.mxu0 %v4922
        %4973 = vmatprep.subr.bf16.mxu0 0
        %4974 = vmatpush1.bf16.msra.mxu0 %v4923
        %4975 = vmatprep.subr.bf16.mxu0 0
        %4976 = vmatpush1.bf16.msra.mxu0 %v4924
        %4977 = vmatprep.subr.bf16.mxu0 0
        %4978 = vmatpush1.bf16.msra.mxu0 %v4925
        %4979 = vmatprep.subr.bf16.mxu0 0
        %4980 = vmatpush1.bf16.msra.mxu0 %v4926
        %4981 = vmatprep.subr.bf16.mxu0 0
        %4982 = vmatpush1.bf16.msra.mxu0 %v4927
        %4983 = vmatprep.subr.bf16.mxu0 0
        %4984 = vmatpush1.bf16.msra.mxu0 %v4928
        %4985 = vmatprep.subr.bf16.mxu0 0
        %4986 = vmatpush1.bf16.msra.mxu0 %v4929
        %4987 = vmatprep.subr.bf16.mxu0 0
        %4988 = vmatpush1.bf16.msra.mxu0 %v4930
        %4989 = vmatprep.subr.bf16.mxu0 0
        %4990 = vmatpush1.bf16.msra.mxu0 %v4931
        %4991 = vmatprep.subr.bf16.mxu0 0
        %4992 = vmatpush1.bf16.msra.mxu0 %v4932
        %4993 = vmatprep.subr.bf16.mxu0 0
        %4994 = vmatpush1.bf16.msra.mxu0 %v4933
        %4995 = vmatprep.subr.bf16.mxu0 0
        %4996 = vmatpush1.bf16.msra.mxu0 %v4934
        %4997 = vmatprep.subr.bf16.mxu0 0
        %4998 = vmatpush1.bf16.msra.mxu0 %v4935
        %4999 = vmatprep.subr.bf16.mxu0 0
        %5000 = vmatpush1.bf16.msra.mxu0 %v4936
        %5001 = vmatprep.mubr.bf16.mxu0 %v3458
        %5002 = vmatmul.mubr.bf16.gmra.mrb[0].mxu0 %v3345
        %v5003 = vpop.f32.mrb[0].mxu0
        %v5004 = vadd.f32 0.0, %v5003
        %v5005 = vpop.f32.mrb[0].mxu0
        %v5006 = vpop.f32.mrb[0].mxu0
        %v5007 = vadd.f32 0.0, %v5006
        %v5008 = vpop.f32.mrb[0].mxu0
        %5009 = vmatprep.mubr.bf16.mxu0 %v3470
        %5010 = vmatmul.mubr.bf16.gmra.mrb[0].mxu0 %v3346
        %v5011 = vpop.f32.mrb[0].mxu0
        %v5012 = vadd.f32 0.0, %v5011
        %v5013 = vpop.f32.mrb[0].mxu0
        %v5014 = vpop.f32.mrb[0].mxu0
        %v5015 = vadd.f32 0.0, %v5014
        %v5016 = vpop.f32.mrb[0].mxu0
        %5017 = vmatprep.mubr.bf16.mxu0 %v3482
        %5018 = vmatmul.mubr.bf16.gmra.mrb[0].mxu0 %v3347
        %v5019 = vpop.f32.mrb[0].mxu0
        %v5020 = vadd.f32 0.0, %v5019
        %v5021 = vpop.f32.mrb[0].mxu0
        %v5022 = vpop.f32.mrb[0].mxu0
        %v5023 = vadd.f32 0.0, %v5022
        %v5024 = vpop.f32.mrb[0].mxu0
        %5025 = vmatprep.mubr.bf16.mxu0 %v3494
        %5026 = vmatmul.mubr.bf16.gmra.mrb[0].mxu0 %v3348
        %v5027 = vpop.f32.mrb[0].mxu0
        %v5028 = vadd.f32 0.0, %v5027
        %v5029 = vpop.f32.mrb[0].mxu0
        %v5030 = vpop.f32.mrb[0].mxu0
        %v5031 = vadd.f32 0.0, %v5030
        %v5032 = vpop.f32.mrb[0].mxu0
        %5033 = vmatprep.mubr.bf16.mxu0 %v3506
        %5034 = vmatmul.mubr.bf16.gmra.mrb[0].mxu0 %v3349
        %v5035 = vpop.f32.mrb[0].mxu0
        %v5036 = vadd.f32 0.0, %v5035
        %v5037 = vpop.f32.mrb[0].mxu0
        %v5038 = vpop.f32.mrb[0].mxu0
        %v5039 = vadd.f32 0.0, %v5038
        %v5040 = vpop.f32.mrb[0].mxu0
        %5041 = vmatprep.mubr.bf16.mxu0 %v3518
        %5042 = vmatmul.mubr.bf16.gmra.mrb[0].mxu0 %v3350
        %v5043 = vpop.f32.mrb[0].mxu0
        %v5044 = vadd.f32 0.0, %v5043
        %v5045 = vpop.f32.mrb[0].mxu0
        %v5046 = vpop.f32.mrb[0].mxu0
        %v5047 = vadd.f32 0.0, %v5046
        %v5048 = vpop.f32.mrb[0].mxu0
        %5049 = vmatprep.mubr.bf16.mxu0 %v3530
        %5050 = vmatmul.mubr.bf16.gmra.mrb[0].mxu0 %v3351
        %v5051 = vpop.f32.mrb[0].mxu0
        %v5052 = vadd.f32 0.0, %v5051
        %v5053 = vpop.f32.mrb[0].mxu0
        %v5054 = vpop.f32.mrb[0].mxu0
        %v5055 = vadd.f32 0.0, %v5054
        %v5056 = vpop.f32.mrb[0].mxu0
        %5057 = vmatprep.mubr.bf16.mxu0 %v3542
        %5058 = vmatmul.mubr.bf16.gmra.mrb[0].mxu0 %v3352
        %v5059 = vpop.f32.mrb[0].mxu0
        %v5060 = vadd.f32 0.0, %v5059
        %v5061 = vpop.f32.mrb[0].mxu0
        %v5062 = vpop.f32.mrb[0].mxu0
        %v5063 = vadd.f32 0.0, %v5062
        %v5064 = vpop.f32.mrb[0].mxu0
        %5065 = vmatprep.mubr.bf16.mxu0 %v3554
        %5066 = vmatmul.mubr.bf16.gmra.mrb[0].mxu0 %v3353
        %v5067 = vpop.f32.mrb[0].mxu0
        %v5068 = vadd.f32 0.0, %v5067
        %v5069 = vpop.f32.mrb[0].mxu0
        %v5070 = vpop.f32.mrb[0].mxu0
        %v5071 = vadd.f32 0.0, %v5070
        %v5072 = vpop.f32.mrb[0].mxu0
        %5073 = vmatprep.mubr.bf16.mxu0 %v3566
        %5074 = vmatmul.mubr.bf16.gmra.mrb[0].mxu0 %v3354
        %v5075 = vpop.f32.mrb[0].mxu0
        %v5076 = vadd.f32 0.0, %v5075
        %v5077 = vpop.f32.mrb[0].mxu0
        %v5078 = vpop.f32.mrb[0].mxu0
        %v5079 = vadd.f32 0.0, %v5078
        %v5080 = vpop.f32.mrb[0].mxu0
        %5081 = vmatprep.mubr.bf16.mxu0 %v3578
        %5082 = vmatmul.mubr.bf16.gmra.mrb[0].mxu0 %v3355
        %v5083 = vpop.f32.mrb[0].mxu0
        %v5084 = vadd.f32 0.0, %v5083
        %v5085 = vpop.f32.mrb[0].mxu0
        %v5086 = vpop.f32.mrb[0].mxu0
        %v5087 = vadd.f32 0.0, %v5086
        %v5088 = vpop.f32.mrb[0].mxu0
        %5089 = vmatprep.mubr.bf16.mxu0 %v3590
        %5090 = vmatmul.mubr.bf16.gmra.mrb[0].mxu0 %v3356
        %v5091 = vpop.f32.mrb[0].mxu0
        %v5092 = vadd.f32 0.0, %v5091
        %v5093 = vpop.f32.mrb[0].mxu0
        %v5094 = vpop.f32.mrb[0].mxu0
        %v5095 = vadd.f32 0.0, %v5094
        %v5096 = vpop.f32.mrb[0].mxu0
        %5097 = vmatprep.mubr.bf16.mxu0 %v3602
        %5098 = vmatmul.mubr.bf16.gmra.mrb[0].mxu0 %v3357
        %v5099 = vpop.f32.mrb[0].mxu0
        %v5100 = vadd.f32 0.0, %v5099
        %v5101 = vpop.f32.mrb[0].mxu0
        %v5102 = vpop.f32.mrb[0].mxu0
        %v5103 = vadd.f32 0.0, %v5102
        %v5104 = vpop.f32.mrb[0].mxu0
        %5105 = vmatprep.mubr.bf16.mxu0 %v3614
        %5106 = vmatmul.mubr.bf16.gmra.mrb[0].mxu0 %v3358
        %v5107 = vpop.f32.mrb[0].mxu0
        %v5108 = vadd.f32 0.0, %v5107
        %v5109 = vpop.f32.mrb[0].mxu0
        %v5110 = vpop.f32.mrb[0].mxu0
        %v5111 = vadd.f32 0.0, %v5110
        %v5112 = vpop.f32.mrb[0].mxu0
        %5113 = vmatprep.mubr.bf16.mxu0 %v3763
        %5114 = vmatmul.mubr.bf16.gmra.mrb[0].mxu0 %v3747
        %v5115 = vpop.f32.mrb[0].mxu0
        %v5116 = vadd.f32 0.0, %v5115
        %v5117 = vpop.f32.mrb[0].mxu0
        %v5118 = vpop.f32.mrb[0].mxu0
        %v5119 = vadd.f32 0.0, %v5118
        %v5120 = vpop.f32.mrb[0].mxu0
        %5121 = vmatprep.mubr.bf16.mxu0 %v4770
        %5122 = vmatmul.mubr.bf16.gmra.mrb[0].mxu0 %v4754
        %v5123 = vpop.f32.mrb[0].mxu0
        %v5124 = vadd.f32 0.0, %v5123
        %v5125 = vpop.f32.mrb[0].mxu0
        %v5126 = vpop.f32.mrb[0].mxu0
        %v5127 = vadd.f32 0.0, %v5126
        %v5128 = vpop.f32.mrb[0].mxu0
        %5129 = vdwg.mxu0
        %5130 = vmatprep.subr.bf16.mxu0 0
        %5131 = vmatpush1.bf16.msra.mxu0 %v4937
        %5132 = vmatprep.subr.bf16.mxu0 0
        %5133 = vmatpush1.bf16.msra.mxu0 %v4938
        %5134 = vmatprep.subr.bf16.mxu0 0
        %5135 = vmatpush1.bf16.msra.mxu0 %v4939
        %5136 = vmatprep.subr.bf16.mxu0 0
        %5137 = vmatpush1.bf16.msra.mxu0 %v4940
        %5138 = vmatprep.subr.bf16.mxu0 0
        %5139 = vmatpush1.bf16.msra.mxu0 %v4941
        %5140 = vmatprep.subr.bf16.mxu0 0
        %5141 = vmatpush1.bf16.msra.mxu0 %v4942
        %5142 = vmatprep.subr.bf16.mxu0 0
        %5143 = vmatpush1.bf16.msra.mxu0 %v4943
        %5144 = vmatprep.subr.bf16.mxu0 0
        %5145 = vmatpush1.bf16.msra.mxu0 %v4944
        %5146 = vmatprep.subr.bf16.mxu0 0
        %5147 = vmatpush1.bf16.msra.mxu0 0
        %5148 = vmatprep.subr.bf16.mxu0 0
        %5149 = vmatpush1.bf16.msra.mxu0 0
        %5150 = vmatprep.subr.bf16.mxu0 0
        %5151 = vmatpush1.bf16.msra.mxu0 0
        %5152 = vmatprep.subr.bf16.mxu0 0
        %5153 = vmatpush1.bf16.msra.mxu0 0
        %5154 = vmatprep.subr.bf16.mxu0 0
        %5155 = vmatpush1.bf16.msra.mxu0 0
        %5156 = vmatprep.subr.bf16.mxu0 0
        %5157 = vmatpush1.bf16.msra.mxu0 0
        %5158 = vmatprep.subr.bf16.mxu0 0
        %5159 = vmatpush1.bf16.msra.mxu0 0
        %5160 = vmatprep.subr.bf16.mxu0 0
        %5161 = vmatpush1.bf16.msra.mxu0 0
        %5162 = vmatprep.mubr.bf16.mxu0 0
        %5163 = vmatmul.mubr.bf16.gmra.mrb[0].mxu0 %v3639
        %v5164 = vpop.f32.mrb[0].mxu0
        %v5165 = vadd.f32 %v5004, %v5164
        %v5166 = vpop.f32.mrb[0].mxu0
        %v5167 = vpop.f32.mrb[0].mxu0
        %v5168 = vadd.f32 %v5007, %v5167
        %v5169 = vpop.f32.mrb[0].mxu0
        %5170 = vmatprep.mubr.bf16.mxu0 0
        %5171 = vmatmul.mubr.bf16.gmra.mrb[0].mxu0 %v3642
        %v5172 = vpop.f32.mrb[0].mxu0
        %v5173 = vadd.f32 %v5012, %v5172
        %v5174 = vpop.f32.mrb[0].mxu0
        %v5175 = vpop.f32.mrb[0].mxu0
        %v5176 = vadd.f32 %v5015, %v5175
        %v5177 = vpop.f32.mrb[0].mxu0
        %5178 = vmatprep.mubr.bf16.mxu0 0
        %5179 = vmatmul.mubr.bf16.gmra.mrb[0].mxu0 %v3645
        %v5180 = vpop.f32.mrb[0].mxu0
        %v5181 = vadd.f32 %v5020, %v5180
        %v5182 = vpop.f32.mrb[0].mxu0
        %v5183 = vpop.f32.mrb[0].mxu0
        %v5184 = vadd.f32 %v5023, %v5183
        %v5185 = vpop.f32.mrb[0].mxu0
        %5186 = vmatprep.mubr.bf16.mxu0 0
        %5187 = vmatmul.mubr.bf16.gmra.mrb[0].mxu0 %v3648
        %v5188 = vpop.f32.mrb[0].mxu0
        %v5189 = vadd.f32 %v5028, %v5188
        %v5190 = vpop.f32.mrb[0].mxu0
        %v5191 = vpop.f32.mrb[0].mxu0
        %v5192 = vadd.f32 %v5031, %v5191
        %v5193 = vpop.f32.mrb[0].mxu0
        %5194 = vmatprep.mubr.bf16.mxu0 0
        %5195 = vmatmul.mubr.bf16.gmra.mrb[0].mxu0 %v3651
        %v5196 = vpop.f32.mrb[0].mxu0
        %v5197 = vadd.f32 %v5036, %v5196
        %v5198 = vpop.f32.mrb[0].mxu0
        %v5199 = vpop.f32.mrb[0].mxu0
        %v5200 = vadd.f32 %v5039, %v5199
        %v5201 = vpop.f32.mrb[0].mxu0
        %5202 = vmatprep.mubr.bf16.mxu0 0
        %5203 = vmatmul.mubr.bf16.gmra.mrb[0].mxu0 %v3654
        %v5204 = vpop.f32.mrb[0].mxu0
        %v5205 = vadd.f32 %v5044, %v5204
        %v5206 = vpop.f32.mrb[0].mxu0
        %v5207 = vpop.f32.mrb[0].mxu0
        %v5208 = vadd.f32 %v5047, %v5207
        %v5209 = vpop.f32.mrb[0].mxu0
        %5210 = vmatprep.mubr.bf16.mxu0 0
        %5211 = vmatmul.mubr.bf16.gmra.mrb[0].mxu0 %v3657
        %v5212 = vpop.f32.mrb[0].mxu0
        %v5213 = vadd.f32 %v5052, %v5212
        %v5214 = vpop.f32.mrb[0].mxu0
        %v5215 = vpop.f32.mrb[0].mxu0
        %v5216 = vadd.f32 %v5055, %v5215
        %v5217 = vpop.f32.mrb[0].mxu0
        %5218 = vmatprep.mubr.bf16.mxu0 0
        %5219 = vmatmul.mubr.bf16.gmra.mrb[0].mxu0 %v3660
        %v5220 = vpop.f32.mrb[0].mxu0
        %v5221 = vadd.f32 %v5060, %v5220
        %v5222 = vpop.f32.mrb[0].mxu0
        %v5223 = vpop.f32.mrb[0].mxu0
        %v5224 = vadd.f32 %v5063, %v5223
        %v5225 = vpop.f32.mrb[0].mxu0
        %5226 = vmatprep.mubr.bf16.mxu0 0
        %5227 = vmatmul.mubr.bf16.gmra.mrb[0].mxu0 %v3663
        %v5228 = vpop.f32.mrb[0].mxu0
        %v5229 = vadd.f32 %v5068, %v5228
        %v5230 = vpop.f32.mrb[0].mxu0
        %v5231 = vpop.f32.mrb[0].mxu0
        %v5232 = vadd.f32 %v5071, %v5231
        %v5233 = vpop.f32.mrb[0].mxu0
        %5234 = vmatprep.mubr.bf16.mxu0 0
        %5235 = vmatmul.mubr.bf16.gmra.mrb[0].mxu0 %v3666
        %v5236 = vpop.f32.mrb[0].mxu0
        %v5237 = vadd.f32 %v5076, %v5236
        %v5238 = vpop.f32.mrb[0].mxu0
        %v5239 = vpop.f32.mrb[0].mxu0
        %v5240 = vadd.f32 %v5079, %v5239
        %v5241 = vpop.f32.mrb[0].mxu0
        %5242 = vmatprep.mubr.bf16.mxu0 0
        %5243 = vmatmul.mubr.bf16.gmra.mrb[0].mxu0 %v3669
        %v5244 = vpop.f32.mrb[0].mxu0
        %v5245 = vadd.f32 %v5084, %v5244
        %v5246 = vpop.f32.mrb[0].mxu0
        %v5247 = vpop.f32.mrb[0].mxu0
        %v5248 = vadd.f32 %v5087, %v5247
        %v5249 = vpop.f32.mrb[0].mxu0
        %5250 = vmatprep.mubr.bf16.mxu0 0
        %5251 = vmatmul.mubr.bf16.gmra.mrb[0].mxu0 %v3672
        %v5252 = vpop.f32.mrb[0].mxu0
        %v5253 = vadd.f32 %v5092, %v5252
        %v5254 = vpop.f32.mrb[0].mxu0
        %v5255 = vpop.f32.mrb[0].mxu0
        %v5256 = vadd.f32 %v5095, %v5255
        %v5257 = vpop.f32.mrb[0].mxu0
        %5258 = vmatprep.mubr.bf16.mxu0 0
        %5259 = vmatmul.mubr.bf16.gmra.mrb[0].mxu0 %v3675
        %v5260 = vpop.f32.mrb[0].mxu0
        %v5261 = vadd.f32 %v5100, %v5260
        %v5262 = vpop.f32.mrb[0].mxu0
        %v5263 = vpop.f32.mrb[0].mxu0
        %v5264 = vadd.f32 %v5103, %v5263
        %v5265 = vpop.f32.mrb[0].mxu0
        %5266 = vmatprep.mubr.bf16.mxu0 0
        %5267 = vmatmul.mubr.bf16.gmra.mrb[0].mxu0 %v3678
        %v5268 = vpop.f32.mrb[0].mxu0
        %v5269 = vadd.f32 %v5108, %v5268
        %v5270 = vpop.f32.mrb[0].mxu0
        %v5271 = vpop.f32.mrb[0].mxu0
        %v5272 = vadd.f32 %v5111, %v5271
        %v5273 = vpop.f32.mrb[0].mxu0
        %5274 = vmatprep.mubr.bf16.mxu0 0
        %5275 = vmatmul.mubr.bf16.gmra.mrb[0].mxu0 %v3767
        %v5276 = vpop.f32.mrb[0].mxu0
        %v5277 = vadd.f32 %v5116, %v5276
        %v5278 = vpop.f32.mrb[0].mxu0
        %v5279 = vpop.f32.mrb[0].mxu0
        %v5280 = vadd.f32 %v5119, %v5279
        %v5281 = vpop.f32.mrb[0].mxu0
        %5282 = vmatprep.mubr.bf16.mxu0 0
        %5283 = vmatmul.mubr.bf16.gmra.mrb[0].mxu0 %v4774
        %v5284 = vpop.f32.mrb[0].mxu0
        %v5285 = vadd.f32 %v5124, %v5284
        %v5286 = vpop.f32.mrb[0].mxu0
        %v5287 = vpop.f32.mrb[0].mxu0
        %v5288 = vadd.f32 %v5127, %v5287
        %v5289 = vpop.f32.mrb[0].mxu0
        %5290 = vdwg.mxu0
        %v5291 = vadd.f32 %v4624, %v5165
        %v5292 = vadd.f32 %v4627, %v5168
        %v5293 = vadd.f32 %v4632, %v5173
        %v5294 = vadd.f32 %v4635, %v5176
        %v5295 = vadd.f32 %v4640, %v5181
        %v5296 = vadd.f32 %v4643, %v5184
        %v5297 = vadd.f32 %v4648, %v5189
        %v5298 = vadd.f32 %v4651, %v5192
        %v5299 = vadd.f32 %v4656, %v5197
        %v5300 = vadd.f32 %v4659, %v5200
        %v5301 = vadd.f32 %v4664, %v5205
        %v5302 = vadd.f32 %v4667, %v5208
        %v5303 = vadd.f32 %v4672, %v5213
        %v5304 = vadd.f32 %v4675, %v5216
        %v5305 = vadd.f32 %v4680, %v5221
        %v5306 = vadd.f32 %v4683, %v5224
        %v5307 = vadd.f32 %v4688, %v5229
        %v5308 = vadd.f32 %v4691, %v5232
        %v5309 = vadd.f32 %v4696, %v5237
        %v5310 = vadd.f32 %v4699, %v5240
        %v5311 = vadd.f32 %v4704, %v5245
        %v5312 = vadd.f32 %v4707, %v5248
        %v5313 = vadd.f32 %v4712, %v5253
        %v5314 = vadd.f32 %v4715, %v5256
        %v5315 = vadd.f32 %v4720, %v5261
        %v5316 = vadd.f32 %v4723, %v5264
        %v5317 = vadd.f32 %v4728, %v5269
        %v5318 = vadd.f32 %v4731, %v5272
        %v5319 = vadd.f32 %v4736, %v5277
        %v5320 = vadd.f32 %v4739, %v5280
        %v5321 = vadd.f32 %v4744, %v5285
        %v5322 = vadd.f32 %v4747, %v5288
        %v5323 = vld [vmem:[%s5] sm:$0x1]
        %v5325 = vlaneseq
        %v5326 = vshrl.u32 %v5325, 7
        %v5327 = vsub.s32 0, %v5326
        %v5328 = vrot.slane %v5323, %v5327
        %v5330 = vmul.f32 %v5291, %v5328
        %v5331 = vmul.f32 %v5292, %v5328
        %v5332 = vmul.f32 %v5293, %v5328
        %v5333 = vmul.f32 %v5294, %v5328
        %v5334 = vmul.f32 %v5295, %v5328
        %v5335 = vmul.f32 %v5296, %v5328
        %v5336 = vmul.f32 %v5297, %v5328
        %v5337 = vmul.f32 %v5298, %v5328
        %v5338 = vmul.f32 %v5299, %v5328
        %v5339 = vmul.f32 %v5300, %v5328
        %v5340 = vmul.f32 %v5301, %v5328
        %v5341 = vmul.f32 %v5302, %v5328
        %v5342 = vmul.f32 %v5303, %v5328
        %v5343 = vmul.f32 %v5304, %v5328
        %v5344 = vmul.f32 %v5305, %v5328
        %v5345 = vmul.f32 %v5306, %v5328
        %v5346 = vmul.f32 %v5307, %v5328
        %v5347 = vmul.f32 %v5308, %v5328
        %v5348 = vmul.f32 %v5309, %v5328
        %v5349 = vmul.f32 %v5310, %v5328
        %v5350 = vmul.f32 %v5311, %v5328
        %v5351 = vmul.f32 %v5312, %v5328
        %v5352 = vmul.f32 %v5313, %v5328
        %v5353 = vmul.f32 %v5314, %v5328
        %v5354 = vmul.f32 %v5315, %v5328
        %v5355 = vmul.f32 %v5316, %v5328
        %v5356 = vmul.f32 %v5317, %v5328
        %v5357 = vmul.f32 %v5318, %v5328
        %v5358 = vmul.f32 %v5319, %v5328
        %v5359 = vmul.f32 %v5320, %v5328
        %v5360 = vmul.f32 %v5321, %v5328
        %v5361 = vmul.f32 %v5322, %v5328
        %v5362 = vld [vmem:[%s6] sm:$0x1]
        %v5364 = vlaneseq
        %v5365 = vshrl.u32 %v5364, 7
        %v5366 = vsub.s32 0, %v5365
        %v5367 = vrot.slane %v5362, %v5366
        %v5369 = vadd.f32 %v5330, %v5367
        %v5370 = vadd.f32 %v5331, %v5367
        %v5371 = vadd.f32 %v5332, %v5367
        %v5372 = vadd.f32 %v5333, %v5367
        %v5373 = vadd.f32 %v5334, %v5367
        %v5374 = vadd.f32 %v5335, %v5367
        %v5375 = vadd.f32 %v5336, %v5367
        %v5376 = vadd.f32 %v5337, %v5367
        %v5377 = vadd.f32 %v5338, %v5367
        %v5378 = vadd.f32 %v5339, %v5367
        %v5379 = vadd.f32 %v5340, %v5367
        %v5380 = vadd.f32 %v5341, %v5367
        %v5381 = vadd.f32 %v5342, %v5367
        %v5382 = vadd.f32 %v5343, %v5367
        %v5383 = vadd.f32 %v5344, %v5367
        %v5384 = vadd.f32 %v5345, %v5367
        %v5385 = vadd.f32 %v5346, %v5367
        %v5386 = vadd.f32 %v5347, %v5367
        %v5387 = vadd.f32 %v5348, %v5367
        %v5388 = vadd.f32 %v5349, %v5367
        %v5389 = vadd.f32 %v5350, %v5367
        %v5390 = vadd.f32 %v5351, %v5367
        %v5391 = vadd.f32 %v5352, %v5367
        %v5392 = vadd.f32 %v5353, %v5367
        %v5393 = vadd.f32 %v5354, %v5367
        %v5394 = vadd.f32 %v5355, %v5367
        %v5395 = vadd.f32 %v5356, %v5367
        %v5396 = vadd.f32 %v5357, %v5367
        %v5397 = vadd.f32 %v5358, %v5367
        %v5398 = vadd.f32 %v5359, %v5367
        %v5399 = vadd.f32 %v5360, %v5367
        %v5400 = vadd.f32 %v5361, %v5367
        %vm5401 = vsmask.f32 3328
        %vm5402 = vsmask.f32 7440
        %vm5403 = vmor %vm5401, %vm5402
        %v5405 = vshrl.u32 %v377, 16
        %v5407 = vrot.slane %v5405, 4
        %v5408 = vshll.u32 %v377, 16
        %v5410 = vrot.slane %v5408, 5
        %v5411 = vor.u32 %v5407, %v5410
        %v5412 = vrot.slane %v5411, 4
        %v5414 = vshll.u32 %v378, 16
        %v5416 = vrot.slane %v5414, 5
        %v5417 = vsel %vm5403, %v5412, %v5416
        %v5418 = vshrl.u32 %v378, 16
        %v5420 = vrot.slane %v5418, 4
        %v5421 = vor.u32 %v5420, %v5416
        %v5422 = vrot.slane %v5421, 4
        %v5424 = vshll.u32 %v379, 16
        %v5426 = vrot.slane %v5424, 5
        %v5427 = vsel %vm5403, %v5422, %v5426
        %v5429 = vshrl.u32 %v380, 16
        %v5431 = vrot.slane %v5429, 4
        %v5432 = vshll.u32 %v380, 16
        %v5434 = vrot.slane %v5432, 5
        %v5435 = vor.u32 %v5431, %v5434
        %v5436 = vrot.slane %v5435, 4
        %v5438 = vshll.u32 %v381, 16
        %v5440 = vrot.slane %v5438, 5
        %v5441 = vsel %vm5403, %v5436, %v5440
        %v5442 = vshrl.u32 %v381, 16
        %v5444 = vrot.slane %v5442, 4
        %v5445 = vor.u32 %v5444, %v5440
        %v5446 = vrot.slane %v5445, 4
        %v5448 = vshll.u32 %v382, 16
        %v5450 = vrot.slane %v5448, 5
        %v5451 = vsel %vm5403, %v5446, %v5450
        %v5453 = vshrl.u32 %v383, 16
        %v5455 = vrot.slane %v5453, 4
        %v5456 = vshll.u32 %v383, 16
        %v5458 = vrot.slane %v5456, 5
        %v5459 = vor.u32 %v5455, %v5458
        %v5460 = vrot.slane %v5459, 4
        %v5462 = vshll.u32 %v384, 16
        %v5464 = vrot.slane %v5462, 5
        %v5465 = vsel %vm5403, %v5460, %v5464
        %v5466 = vshrl.u32 %v384, 16
        %v5468 = vrot.slane %v5466, 4
        %v5469 = vor.u32 %v5468, %v5464
        %v5470 = vrot.slane %v5469, 4
        %v5472 = vshll.u32 %v385, 16
        %v5474 = vrot.slane %v5472, 5
        %v5475 = vsel %vm5403, %v5470, %v5474
        %v5477 = vshrl.u32 %v386, 16
        %v5479 = vrot.slane %v5477, 4
        %v5480 = vshll.u32 %v386, 16
        %v5482 = vrot.slane %v5480, 5
        %v5483 = vor.u32 %v5479, %v5482
        %v5484 = vrot.slane %v5483, 4
        %v5486 = vshll.u32 %v387, 16
        %v5488 = vrot.slane %v5486, 5
        %v5489 = vsel %vm5403, %v5484, %v5488
        %v5490 = vshrl.u32 %v387, 16
        %v5492 = vrot.slane %v5490, 4
        %v5493 = vor.u32 %v5492, %v5488
        %v5494 = vrot.slane %v5493, 4
        %v5496 = vshll.u32 %v388, 16
        %v5498 = vrot.slane %v5496, 5
        %v5499 = vsel %vm5403, %v5494, %v5498
        %v5501 = vshrl.u32 %v389, 16
        %v5503 = vrot.slane %v5501, 4
        %v5504 = vshll.u32 %v389, 16
        %v5506 = vrot.slane %v5504, 5
        %v5507 = vor.u32 %v5503, %v5506
        %v5508 = vrot.slane %v5507, 4
        %v5510 = vshll.u32 %v390, 16
        %v5512 = vrot.slane %v5510, 5
        %v5513 = vsel %vm5403, %v5508, %v5512
        %v5514 = vshrl.u32 %v390, 16
        %v5516 = vrot.slane %v5514, 4
        %v5517 = vor.u32 %v5516, %v5512
        %v5518 = vrot.slane %v5517, 4
        %v5520 = vshll.u32 %v391, 16
        %v5522 = vrot.slane %v5520, 5
        %v5523 = vsel %vm5403, %v5518, %v5522
        %v5525 = vshrl.u32 %v392, 16
        %v5527 = vrot.slane %v5525, 4
        %v5528 = vshll.u32 %v392, 16
        %v5530 = vrot.slane %v5528, 5
        %v5531 = vor.u32 %v5527, %v5530
        %v5532 = vrot.slane %v5531, 4
        %v5534 = vshll.u32 %v393, 16
        %v5536 = vrot.slane %v5534, 5
        %v5537 = vsel %vm5403, %v5532, %v5536
        %v5538 = vshrl.u32 %v393, 16
        %v5540 = vrot.slane %v5538, 4
        %v5541 = vor.u32 %v5540, %v5536
        %v5542 = vrot.slane %v5541, 4
        %v5544 = vshll.u32 %v394, 16
        %v5546 = vrot.slane %v5544, 5
        %v5547 = vsel %vm5403, %v5542, %v5546
        %v5549 = vshrl.u32 %v395, 16
        %v5551 = vrot.slane %v5549, 4
        %v5552 = vshll.u32 %v395, 16
        %v5554 = vrot.slane %v5552, 5
        %v5555 = vor.u32 %v5551, %v5554
        %v5556 = vrot.slane %v5555, 4
        %v5558 = vshll.u32 %v396, 16
        %v5560 = vrot.slane %v5558, 5
        %v5561 = vsel %vm5403, %v5556, %v5560
        %v5562 = vshrl.u32 %v396, 16
        %v5564 = vrot.slane %v5562, 4
        %v5565 = vor.u32 %v5564, %v5560
        %v5566 = vrot.slane %v5565, 4
        %v5568 = vshll.u32 %v397, 16
        %v5570 = vrot.slane %v5568, 5
        %v5571 = vsel %vm5403, %v5566, %v5570
        %v5573 = vshrl.u32 %v398, 16
        %v5575 = vrot.slane %v5573, 4
        %v5576 = vshll.u32 %v398, 16
        %v5578 = vrot.slane %v5576, 5
        %v5579 = vor.u32 %v5575, %v5578
        %v5580 = vrot.slane %v5579, 4
        %v5582 = vshll.u32 %v399, 16
        %v5584 = vrot.slane %v5582, 5
        %v5585 = vsel %vm5403, %v5580, %v5584
        %v5586 = vshrl.u32 %v399, 16
        %v5588 = vrot.slane %v5586, 4
        %v5589 = vor.u32 %v5588, %v5584
        %v5590 = vrot.slane %v5589, 4
        %v5592 = vshll.u32 %v400, 16
        %v5594 = vrot.slane %v5592, 5
        %v5595 = vsel %vm5403, %v5590, %v5594
        %v5597 = vshrl.u32 %v401, 16
        %v5599 = vrot.slane %v5597, 4
        %v5600 = vshll.u32 %v401, 16
        %v5602 = vrot.slane %v5600, 5
        %v5603 = vor.u32 %v5599, %v5602
        %v5604 = vrot.slane %v5603, 4
        %v5606 = vshll.u32 %v402, 16
        %v5608 = vrot.slane %v5606, 5
        %v5609 = vsel %vm5403, %v5604, %v5608
        %v5610 = vshrl.u32 %v402, 16
        %v5612 = vrot.slane %v5610, 4
        %v5613 = vor.u32 %v5612, %v5608
        %v5614 = vrot.slane %v5613, 4
        %v5616 = vshll.u32 %v403, 16
        %v5618 = vrot.slane %v5616, 5
        %v5619 = vsel %vm5403, %v5614, %v5618
        %v5621 = vshrl.u32 %v404, 16
        %v5623 = vrot.slane %v5621, 4
        %v5624 = vshll.u32 %v404, 16
        %v5626 = vrot.slane %v5624, 5
        %v5627 = vor.u32 %v5623, %v5626
        %v5628 = vrot.slane %v5627, 4
        %v5630 = vshll.u32 %v405, 16
        %v5632 = vrot.slane %v5630, 5
        %v5633 = vsel %vm5403, %v5628, %v5632
        %v5634 = vshrl.u32 %v405, 16
        %v5636 = vrot.slane %v5634, 4
        %v5637 = vor.u32 %v5636, %v5632
        %v5638 = vrot.slane %v5637, 4
        %v5640 = vshll.u32 %v406, 16
        %v5642 = vrot.slane %v5640, 5
        %v5643 = vsel %vm5403, %v5638, %v5642
        %v5645 = vshrl.u32 %v407, 16
        %v5647 = vrot.slane %v5645, 4
        %v5648 = vshll.u32 %v407, 16
        %v5650 = vrot.slane %v5648, 5
        %v5651 = vor.u32 %v5647, %v5650
        %v5652 = vrot.slane %v5651, 4
        %v5654 = vshll.u32 %v408, 16
        %v5656 = vrot.slane %v5654, 5
        %v5657 = vsel %vm5403, %v5652, %v5656
        %v5658 = vshrl.u32 %v408, 16
        %v5660 = vrot.slane %v5658, 4
        %v5661 = vor.u32 %v5660, %v5656
        %v5662 = vrot.slane %v5661, 4
        %v5664 = vshll.u32 %v409, 16
        %v5666 = vrot.slane %v5664, 5
        %v5667 = vsel %vm5403, %v5662, %v5666
        %v5669 = vshrl.u32 %v410, 16
        %v5671 = vrot.slane %v5669, 4
        %v5672 = vshll.u32 %v410, 16
        %v5674 = vrot.slane %v5672, 5
        %v5675 = vor.u32 %v5671, %v5674
        %v5676 = vrot.slane %v5675, 4
        %v5678 = vshll.u32 %v411, 16
        %v5680 = vrot.slane %v5678, 5
        %v5681 = vsel %vm5403, %v5676, %v5680
        %v5682 = vshrl.u32 %v411, 16
        %v5684 = vrot.slane %v5682, 4
        %v5685 = vor.u32 %v5684, %v5680
        %v5686 = vrot.slane %v5685, 4
        %v5688 = vshll.u32 %v412, 16
        %v5690 = vrot.slane %v5688, 5
        %v5691 = vsel %vm5403, %v5686, %v5690
        %v5693 = vshrl.u32 %v413, 16
        %v5695 = vrot.slane %v5693, 4
        %v5696 = vshll.u32 %v413, 16
        %v5698 = vrot.slane %v5696, 5
        %v5699 = vor.u32 %v5695, %v5698
        %v5700 = vrot.slane %v5699, 4
        %v5702 = vshll.u32 %v414, 16
        %v5704 = vrot.slane %v5702, 5
        %v5705 = vsel %vm5403, %v5700, %v5704
        %v5706 = vshrl.u32 %v414, 16
        %v5708 = vrot.slane %v5706, 4
        %v5709 = vor.u32 %v5708, %v5704
        %v5710 = vrot.slane %v5709, 4
        %v5712 = vshll.u32 %v415, 16
        %v5714 = vrot.slane %v5712, 5
        %v5715 = vsel %vm5403, %v5710, %v5714
        %v5717 = vshrl.u32 %v416, 16
        %v5719 = vrot.slane %v5717, 4
        %v5720 = vshll.u32 %v416, 16
        %v5722 = vrot.slane %v5720, 5
        %v5723 = vor.u32 %v5719, %v5722
        %v5724 = vrot.slane %v5723, 4
        %v5726 = vshll.u32 %v417, 16
        %v5728 = vrot.slane %v5726, 5
        %v5729 = vsel %vm5403, %v5724, %v5728
        %v5730 = vshrl.u32 %v417, 16
        %v5732 = vrot.slane %v5730, 4
        %v5733 = vor.u32 %v5732, %v5728
        %v5734 = vrot.slane %v5733, 4
        %v5736 = vshll.u32 %v418, 16
        %v5738 = vrot.slane %v5736, 5
        %v5739 = vsel %vm5403, %v5734, %v5738
        %v5741 = vshrl.u32 %v419, 16
        %v5743 = vrot.slane %v5741, 4
        %v5744 = vshll.u32 %v419, 16
        %v5746 = vrot.slane %v5744, 5
        %v5747 = vor.u32 %v5743, %v5746
        %v5748 = vrot.slane %v5747, 4
        %v5750 = vshll.u32 %v420, 16
        %v5752 = vrot.slane %v5750, 5
        %v5753 = vsel %vm5403, %v5748, %v5752
        %v5754 = vshrl.u32 %v420, 16
        %v5756 = vrot.slane %v5754, 4
        %v5757 = vor.u32 %v5756, %v5752
        %v5758 = vrot.slane %v5757, 4
        %v5760 = vshll.u32 %v421, 16
        %v5762 = vrot.slane %v5760, 5
        %v5763 = vsel %vm5403, %v5758, %v5762
        %v5765 = vshrl.u32 %v422, 16
        %v5767 = vrot.slane %v5765, 4
        %v5768 = vshll.u32 %v422, 16
        %v5770 = vrot.slane %v5768, 5
        %v5771 = vor.u32 %v5767, %v5770
        %v5772 = vrot.slane %v5771, 4
        %v5774 = vshll.u32 %v423, 16
        %v5776 = vrot.slane %v5774, 5
        %v5777 = vsel %vm5403, %v5772, %v5776
        %v5778 = vshrl.u32 %v423, 16
        %v5780 = vrot.slane %v5778, 4
        %v5781 = vor.u32 %v5780, %v5776
        %v5782 = vrot.slane %v5781, 4
        %v5784 = vshll.u32 %v424, 16
        %v5786 = vrot.slane %v5784, 5
        %v5787 = vsel %vm5403, %v5782, %v5786
        %v5788 = vld [vmem:[%s7] sm:$0xf]
        %v5789 = vld [vmem:[%s7 + $0x4] sm:$0xf]
        %v5790 = vld [vmem:[%s7 + $0x8] sm:$0xf]
        %v5791 = vld [vmem:[%s7 + $0xc] sm:$0xf]
        %v5792 = vld [vmem:[%s7 + $0x10] sm:$0xf]
        %v5793 = vld [vmem:[%s7 + $0x14] sm:$0xf]
        %v5794 = vld [vmem:[%s7 + $0x18] sm:$0xf]
        %v5795 = vld [vmem:[%s7 + $0x1c] sm:$0xf]
        %v5796 = vld [vmem:[%s7 + $0x20] sm:$0xf]
        %v5797 = vld [vmem:[%s7 + $0x24] sm:$0xf]
        %v5798 = vld [vmem:[%s7 + $0x28] sm:$0xf]
        %v5799 = vld [vmem:[%s7 + $0x2c] sm:$0xf]
        %v5800 = vld [vmem:[%s7 + $0x30] sm:$0xf]
        %v5801 = vld [vmem:[%s7 + $0x34] sm:$0xf]
        %v5802 = vld [vmem:[%s7 + $0x38] sm:$0xf]
        %v5803 = vld [vmem:[%s7 + $0x3c] sm:$0xf]
        %v5804 = vunpack.c.l.b16 %v5417
        %v5805 = vunpack.c.l.b16 %v5427
        %v5806 = vunpack.c.l.b16 %v5441
        %v5807 = vunpack.c.l.b16 %v5451
        %v5808 = vunpack.c.l.b16 %v5465
        %v5809 = vunpack.c.l.b16 %v5475
        %v5810 = vunpack.c.l.b16 %v5489
        %v5811 = vunpack.c.l.b16 %v5499
        %v5812 = vunpack.c.l.b16 %v5513
        %v5813 = vunpack.c.l.b16 %v5523
        %v5814 = vunpack.c.l.b16 %v5537
        %v5815 = vunpack.c.l.b16 %v5547
        %v5816 = vunpack.c.l.b16 %v5561
        %v5817 = vunpack.c.l.b16 %v5571
        %v5818 = vunpack.c.l.b16 %v5585
        %v5819 = vunpack.c.l.b16 %v5595
        %v5820 = vunpack.c.l.b16 %v5609
        %v5821 = vunpack.c.l.b16 %v5619
        %v5822 = vunpack.c.l.b16 %v5633
        %v5823 = vunpack.c.l.b16 %v5643
        %v5824 = vunpack.c.l.b16 %v5657
        %v5825 = vunpack.c.l.b16 %v5667
        %v5826 = vunpack.c.l.b16 %v5681
        %v5827 = vunpack.c.l.b16 %v5691
        %v5828 = vunpack.c.l.b16 %v5705
        %v5829 = vunpack.c.l.b16 %v5715
        %v5830 = vunpack.c.l.b16 %v5729
        %v5831 = vunpack.c.l.b16 %v5739
        %v5832 = vunpack.c.l.b16 %v5753
        %v5833 = vunpack.c.l.b16 %v5763
        %v5834 = vunpack.c.l.b16 %v5777
        %v5835 = vunpack.c.l.b16 %v5787
        %v5836 = vpack.c.b16 %v5805, %v5804
        %v5837 = vpack.c.b16 %v5807, %v5806
        %v5838 = vpack.c.b16 %v5809, %v5808
        %v5839 = vpack.c.b16 %v5811, %v5810
        %v5840 = vpack.c.b16 %v5813, %v5812
        %v5841 = vpack.c.b16 %v5815, %v5814
        %v5842 = vpack.c.b16 %v5817, %v5816
        %v5843 = vpack.c.b16 %v5819, %v5818
        %v5844 = vpack.c.b16 %v5821, %v5820
        %v5845 = vpack.c.b16 %v5823, %v5822
        %v5846 = vpack.c.b16 %v5825, %v5824
        %v5847 = vpack.c.b16 %v5827, %v5826
        %v5848 = vpack.c.b16 %v5829, %v5828
        %v5849 = vpack.c.b16 %v5831, %v5830
        %v5850 = vpack.c.b16 %v5833, %v5832
        %v5851 = vpack.c.b16 %v5835, %v5834
        %v5884 = vunpack.c.l.b16 %v5788
        %v5885 = vunpack.c.l.b16 %v5789
        %v5886 = vunpack.c.l.b16 %v5790
        %v5887 = vunpack.c.l.b16 %v5791
        %v5888 = vunpack.c.l.b16 %v5792
        %v5889 = vunpack.c.l.b16 %v5793
        %v5890 = vunpack.c.l.b16 %v5794
        %v5891 = vunpack.c.l.b16 %v5795
        %v5892 = vunpack.c.l.b16 %v5796
        %v5893 = vunpack.c.l.b16 %v5797
        %v5894 = vunpack.c.l.b16 %v5798
        %v5895 = vunpack.c.l.b16 %v5799
        %v5896 = vunpack.c.l.b16 %v5800
        %v5897 = vunpack.c.l.b16 %v5801
        %v5898 = vunpack.c.l.b16 %v5802
        %v5899 = vunpack.c.l.b16 %v5803
        %v5900 = vpack.c.b16 %v5885, %v5884
        %v5901 = vpack.c.b16 %v5887, %v5886
        %v5902 = vpack.c.b16 %v5889, %v5888
        %v5903 = vpack.c.b16 %v5891, %v5890
        %v5904 = vpack.c.b16 %v5893, %v5892
        %v5905 = vpack.c.b16 %v5895, %v5894
        %v5906 = vpack.c.b16 %v5897, %v5896
        %v5907 = vpack.c.b16 %v5899, %v5898
        %5916 = vmatprep.subr.bf16.mxu0 0
        %5917 = vmatpush1.bf16.msra.mxu0 %v5900
        %5918 = vmatprep.subr.bf16.mxu0 0
        %5919 = vmatpush1.bf16.msra.mxu0 %v5901
        %5920 = vmatprep.subr.bf16.mxu0 0
        %5921 = vmatpush1.bf16.msra.mxu0 %v5902
        %5922 = vmatprep.subr.bf16.mxu0 0
        %5923 = vmatpush1.bf16.msra.mxu0 %v5903
        %5924 = vmatprep.subr.bf16.mxu0 0
        %5925 = vmatpush1.bf16.msra.mxu0 %v5904
        %5926 = vmatprep.subr.bf16.mxu0 0
        %5927 = vmatpush1.bf16.msra.mxu0 %v5905
        %5928 = vmatprep.subr.bf16.mxu0 0
        %5929 = vmatpush1.bf16.msra.mxu0 %v5906
        %5930 = vmatprep.subr.bf16.mxu0 0
        %5931 = vmatpush1.bf16.msra.mxu0 %v5907
        %5932 = vmatprep.subr.bf16.mxu0 0
        %5933 = vmatpush1.bf16.msra.mxu0 0
        %5934 = vmatprep.subr.bf16.mxu0 0
        %5935 = vmatpush1.bf16.msra.mxu0 0
        %5936 = vmatprep.subr.bf16.mxu0 0
        %5937 = vmatpush1.bf16.msra.mxu0 0
        %5938 = vmatprep.subr.bf16.mxu0 0
        %5939 = vmatpush1.bf16.msra.mxu0 0
        %5940 = vmatprep.subr.bf16.mxu0 0
        %5941 = vmatpush1.bf16.msra.mxu0 0
        %5942 = vmatprep.subr.bf16.mxu0 0
        %5943 = vmatpush1.bf16.msra.mxu0 0
        %5944 = vmatprep.subr.bf16.mxu0 0
        %5945 = vmatpush1.bf16.msra.mxu0 0
        %5946 = vmatprep.subr.bf16.mxu0 0
        %5947 = vmatpush1.bf16.msra.mxu0 0
        %5948 = vmatprep.mubr.bf16.mxu0 0
        %5949 = vmatmul.mubr.bf16.gmra.mrb[0].mxu0 %v5836
        %v5950 = vpop.f32.mrb[0].mxu0
        %v5951 = vadd.f32 0.0, %v5950
        %v5952 = vpop.f32.mrb[0].mxu0
        %v5953 = vpop.f32.mrb[0].mxu0
        %v5954 = vadd.f32 0.0, %v5953
        %v5955 = vpop.f32.mrb[0].mxu0
        %5956 = vmatprep.mubr.bf16.mxu0 0
        %5957 = vmatmul.mubr.bf16.gmra.mrb[0].mxu0 %v5837
        %v5958 = vpop.f32.mrb[0].mxu0
        %v5959 = vadd.f32 0.0, %v5958
        %v5960 = vpop.f32.mrb[0].mxu0
        %v5961 = vpop.f32.mrb[0].mxu0
        %v5962 = vadd.f32 0.0, %v5961
        %v5963 = vpop.f32.mrb[0].mxu0
        %5964 = vmatprep.mubr.bf16.mxu0 0
        %5965 = vmatmul.mubr.bf16.gmra.mrb[0].mxu0 %v5838
        %v5966 = vpop.f32.mrb[0].mxu0
        %v5967 = vadd.f32 0.0, %v5966
        %v5968 = vpop.f32.mrb[0].mxu0
        %v5969 = vpop.f32.mrb[0].mxu0
        %v5970 = vadd.f32 0.0, %v5969
        %v5971 = vpop.f32.mrb[0].mxu0
        %5972 = vmatprep.mubr.bf16.mxu0 0
        %5973 = vmatmul.mubr.bf16.gmra.mrb[0].mxu0 %v5839
        %v5974 = vpop.f32.mrb[0].mxu0
        %v5975 = vadd.f32 0.0, %v5974
        %v5976 = vpop.f32.mrb[0].mxu0
        %v5977 = vpop.f32.mrb[0].mxu0
        %v5978 = vadd.f32 0.0, %v5977
        %v5979 = vpop.f32.mrb[0].mxu0
        %5980 = vmatprep.mubr.bf16.mxu0 0
        %5981 = vmatmul.mubr.bf16.gmra.mrb[0].mxu0 %v5840
        %v5982 = vpop.f32.mrb[0].mxu0
        %v5983 = vadd.f32 0.0, %v5982
        %v5984 = vpop.f32.mrb[0].mxu0
        %v5985 = vpop.f32.mrb[0].mxu0
        %v5986 = vadd.f32 0.0, %v5985
        %v5987 = vpop.f32.mrb[0].mxu0
        %5988 = vmatprep.mubr.bf16.mxu0 0
        %5989 = vmatmul.mubr.bf16.gmra.mrb[0].mxu0 %v5841
        %v5990 = vpop.f32.mrb[0].mxu0
        %v5991 = vadd.f32 0.0, %v5990
        %v5992 = vpop.f32.mrb[0].mxu0
        %v5993 = vpop.f32.mrb[0].mxu0
        %v5994 = vadd.f32 0.0, %v5993
        %v5995 = vpop.f32.mrb[0].mxu0
        %5996 = vmatprep.mubr.bf16.mxu0 0
        %5997 = vmatmul.mubr.bf16.gmra.mrb[0].mxu0 %v5842
        %v5998 = vpop.f32.mrb[0].mxu0
        %v5999 = vadd.f32 0.0, %v5998
        %v6000 = vpop.f32.mrb[0].mxu0
        %v6001 = vpop.f32.mrb[0].mxu0
        %v6002 = vadd.f32 0.0, %v6001
        %v6003 = vpop.f32.mrb[0].mxu0
        %6004 = vmatprep.mubr.bf16.mxu0 0
        %6005 = vmatmul.mubr.bf16.gmra.mrb[0].mxu0 %v5843
        %v6006 = vpop.f32.mrb[0].mxu0
        %v6007 = vadd.f32 0.0, %v6006
        %v6008 = vpop.f32.mrb[0].mxu0
        %v6009 = vpop.f32.mrb[0].mxu0
        %v6010 = vadd.f32 0.0, %v6009
        %v6011 = vpop.f32.mrb[0].mxu0
        %6012 = vmatprep.mubr.bf16.mxu0 0
        %6013 = vmatmul.mubr.bf16.gmra.mrb[0].mxu0 %v5844
        %v6014 = vpop.f32.mrb[0].mxu0
        %v6015 = vadd.f32 0.0, %v6014
        %v6016 = vpop.f32.mrb[0].mxu0
        %v6017 = vpop.f32.mrb[0].mxu0
        %v6018 = vadd.f32 0.0, %v6017
        %v6019 = vpop.f32.mrb[0].mxu0
        %6020 = vmatprep.mubr.bf16.mxu0 0
        %6021 = vmatmul.mubr.bf16.gmra.mrb[0].mxu0 %v5845
        %v6022 = vpop.f32.mrb[0].mxu0
        %v6023 = vadd.f32 0.0, %v6022
        %v6024 = vpop.f32.mrb[0].mxu0
        %v6025 = vpop.f32.mrb[0].mxu0
        %v6026 = vadd.f32 0.0, %v6025
        %v6027 = vpop.f32.mrb[0].mxu0
        %6028 = vmatprep.mubr.bf16.mxu0 0
        %6029 = vmatmul.mubr.bf16.gmra.mrb[0].mxu0 %v5846
        %v6030 = vpop.f32.mrb[0].mxu0
        %v6031 = vadd.f32 0.0, %v6030
        %v6032 = vpop.f32.mrb[0].mxu0
        %v6033 = vpop.f32.mrb[0].mxu0
        %v6034 = vadd.f32 0.0, %v6033
        %v6035 = vpop.f32.mrb[0].mxu0
        %6036 = vmatprep.mubr.bf16.mxu0 0
        %6037 = vmatmul.mubr.bf16.gmra.mrb[0].mxu0 %v5847
        %v6038 = vpop.f32.mrb[0].mxu0
        %v6039 = vadd.f32 0.0, %v6038
        %v6040 = vpop.f32.mrb[0].mxu0
        %v6041 = vpop.f32.mrb[0].mxu0
        %v6042 = vadd.f32 0.0, %v6041
        %v6043 = vpop.f32.mrb[0].mxu0
        %6044 = vmatprep.mubr.bf16.mxu0 0
        %6045 = vmatmul.mubr.bf16.gmra.mrb[0].mxu0 %v5848
        %v6046 = vpop.f32.mrb[0].mxu0
        %v6047 = vadd.f32 0.0, %v6046
        %v6048 = vpop.f32.mrb[0].mxu0
        %v6049 = vpop.f32.mrb[0].mxu0
        %v6050 = vadd.f32 0.0, %v6049
        %v6051 = vpop.f32.mrb[0].mxu0
        %6052 = vmatprep.mubr.bf16.mxu0 0
        %6053 = vmatmul.mubr.bf16.gmra.mrb[0].mxu0 %v5849
        %v6054 = vpop.f32.mrb[0].mxu0
        %v6055 = vadd.f32 0.0, %v6054
        %v6056 = vpop.f32.mrb[0].mxu0
        %v6057 = vpop.f32.mrb[0].mxu0
        %v6058 = vadd.f32 0.0, %v6057
        %v6059 = vpop.f32.mrb[0].mxu0
        %6060 = vmatprep.mubr.bf16.mxu0 0
        %6061 = vmatmul.mubr.bf16.gmra.mrb[0].mxu0 %v5850
        %v6062 = vpop.f32.mrb[0].mxu0
        %v6063 = vadd.f32 0.0, %v6062
        %v6064 = vpop.f32.mrb[0].mxu0
        %v6065 = vpop.f32.mrb[0].mxu0
        %v6066 = vadd.f32 0.0, %v6065
        %v6067 = vpop.f32.mrb[0].mxu0
        %6068 = vmatprep.mubr.bf16.mxu0 0
        %6069 = vmatmul.mubr.bf16.gmra.mrb[0].mxu0 %v5851
        %v6070 = vpop.f32.mrb[0].mxu0
        %v6071 = vadd.f32 0.0, %v6070
        %v6072 = vpop.f32.mrb[0].mxu0
        %v6073 = vpop.f32.mrb[0].mxu0
        %v6074 = vadd.f32 0.0, %v6073
        %v6075 = vpop.f32.mrb[0].mxu0
        %6076 = vdwg.mxu0
        %v6077 = vld [vmem:[%s8] sm:$0x1]
        %v6079 = vlaneseq
        %v6080 = vshrl.u32 %v6079, 7
        %v6081 = vsub.s32 0, %v6080
        %v6082 = vrot.slane %v6077, %v6081
        %v6084 = vmul.f32 %v5951, %v6082
        %v6085 = vmul.f32 %v5954, %v6082
        %v6086 = vmul.f32 %v5959, %v6082
        %v6087 = vmul.f32 %v5962, %v6082
        %v6088 = vmul.f32 %v5967, %v6082
        %v6089 = vmul.f32 %v5970, %v6082
        %v6090 = vmul.f32 %v5975, %v6082
        %v6091 = vmul.f32 %v5978, %v6082
        %v6092 = vmul.f32 %v5983, %v6082
        %v6093 = vmul.f32 %v5986, %v6082
        %v6094 = vmul.f32 %v5991, %v6082
        %v6095 = vmul.f32 %v5994, %v6082
        %v6096 = vmul.f32 %v5999, %v6082
        %v6097 = vmul.f32 %v6002, %v6082
        %v6098 = vmul.f32 %v6007, %v6082
        %v6099 = vmul.f32 %v6010, %v6082
        %v6100 = vmul.f32 %v6015, %v6082
        %v6101 = vmul.f32 %v6018, %v6082
        %v6102 = vmul.f32 %v6023, %v6082
        %v6103 = vmul.f32 %v6026, %v6082
        %v6104 = vmul.f32 %v6031, %v6082
        %v6105 = vmul.f32 %v6034, %v6082
        %v6106 = vmul.f32 %v6039, %v6082
        %v6107 = vmul.f32 %v6042, %v6082
        %v6108 = vmul.f32 %v6047, %v6082
        %v6109 = vmul.f32 %v6050, %v6082
        %v6110 = vmul.f32 %v6055, %v6082
        %v6111 = vmul.f32 %v6058, %v6082
        %v6112 = vmul.f32 %v6063, %v6082
        %v6113 = vmul.f32 %v6066, %v6082
        %v6114 = vmul.f32 %v6071, %v6082
        %v6115 = vmul.f32 %v6074, %v6082
        %v6116 = vld [vmem:[%s9] sm:$0x1]
        %v6118 = vlaneseq
        %v6119 = vshrl.u32 %v6118, 7
        %v6120 = vsub.s32 0, %v6119
        %v6121 = vrot.slane %v6116, %v6120
        %v6123 = vadd.f32 %v6084, %v6121
        %v6124 = vadd.f32 %v6085, %v6121
        %v6125 = vadd.f32 %v6086, %v6121
        %v6126 = vadd.f32 %v6087, %v6121
        %v6127 = vadd.f32 %v6088, %v6121
        %v6128 = vadd.f32 %v6089, %v6121
        %v6129 = vadd.f32 %v6090, %v6121
        %v6130 = vadd.f32 %v6091, %v6121
        %v6131 = vadd.f32 %v6092, %v6121
        %v6132 = vadd.f32 %v6093, %v6121
        %v6133 = vadd.f32 %v6094, %v6121
        %v6134 = vadd.f32 %v6095, %v6121
        %v6135 = vadd.f32 %v6096, %v6121
        %v6136 = vadd.f32 %v6097, %v6121
        %v6137 = vadd.f32 %v6098, %v6121
        %v6138 = vadd.f32 %v6099, %v6121
        %v6139 = vadd.f32 %v6100, %v6121
        %v6140 = vadd.f32 %v6101, %v6121
        %v6141 = vadd.f32 %v6102, %v6121
        %v6142 = vadd.f32 %v6103, %v6121
        %v6143 = vadd.f32 %v6104, %v6121
        %v6144 = vadd.f32 %v6105, %v6121
        %v6145 = vadd.f32 %v6106, %v6121
        %v6146 = vadd.f32 %v6107, %v6121
        %v6147 = vadd.f32 %v6108, %v6121
        %v6148 = vadd.f32 %v6109, %v6121
        %v6149 = vadd.f32 %v6110, %v6121
        %v6150 = vadd.f32 %v6111, %v6121
        %v6151 = vadd.f32 %v6112, %v6121
        %v6152 = vadd.f32 %v6113, %v6121
        %v6153 = vadd.f32 %v6114, %v6121
        %v6154 = vadd.f32 %v6115, %v6121
        %v6155 = vadd.f32 %v5369, %v6123
        %v6156 = vadd.f32 %v5370, %v6124
        %v6157 = vadd.f32 %v5371, %v6125
        %v6158 = vadd.f32 %v5372, %v6126
        %v6159 = vadd.f32 %v5373, %v6127
        %v6160 = vadd.f32 %v5374, %v6128
        %v6161 = vadd.f32 %v5375, %v6129
        %v6162 = vadd.f32 %v5376, %v6130
        %v6163 = vadd.f32 %v5377, %v6131
        %v6164 = vadd.f32 %v5378, %v6132
        %v6165 = vadd.f32 %v5379, %v6133
        %v6166 = vadd.f32 %v5380, %v6134
        %v6167 = vadd.f32 %v5381, %v6135
        %v6168 = vadd.f32 %v5382, %v6136
        %v6169 = vadd.f32 %v5383, %v6137
        %v6170 = vadd.f32 %v5384, %v6138
        %v6171 = vadd.f32 %v5385, %v6139
        %v6172 = vadd.f32 %v5386, %v6140
        %v6173 = vadd.f32 %v5387, %v6141
        %v6174 = vadd.f32 %v5388, %v6142
        %v6175 = vadd.f32 %v5389, %v6143
        %v6176 = vadd.f32 %v5390, %v6144
        %v6177 = vadd.f32 %v5391, %v6145
        %v6178 = vadd.f32 %v5392, %v6146
        %v6179 = vadd.f32 %v5393, %v6147
        %v6180 = vadd.f32 %v5394, %v6148
        %v6181 = vadd.f32 %v5395, %v6149
        %v6182 = vadd.f32 %v5396, %v6150
        %v6183 = vadd.f32 %v5397, %v6151
        %v6184 = vadd.f32 %v5398, %v6152
        %v6185 = vadd.f32 %v5399, %v6153
        %v6186 = vadd.f32 %v5400, %v6154
        %v6187 = vmax.f32 %v6155, 0.0
        %v6188 = vmax.f32 %v6156, 0.0
        %v6189 = vmax.f32 %v6157, 0.0
        %v6190 = vmax.f32 %v6158, 0.0
        %v6191 = vmax.f32 %v6159, 0.0
        %v6192 = vmax.f32 %v6160, 0.0
        %v6193 = vmax.f32 %v6161, 0.0
        %v6194 = vmax.f32 %v6162, 0.0
        %v6195 = vmax.f32 %v6163, 0.0
        %v6196 = vmax.f32 %v6164, 0.0
        %v6197 = vmax.f32 %v6165, 0.0
        %v6198 = vmax.f32 %v6166, 0.0
        %v6199 = vmax.f32 %v6167, 0.0
        %v6200 = vmax.f32 %v6168, 0.0
        %v6201 = vmax.f32 %v6169, 0.0
        %v6202 = vmax.f32 %v6170, 0.0
        %v6203 = vmax.f32 %v6171, 0.0
        %v6204 = vmax.f32 %v6172, 0.0
        %v6205 = vmax.f32 %v6173, 0.0
        %v6206 = vmax.f32 %v6174, 0.0
        %v6207 = vmax.f32 %v6175, 0.0
        %v6208 = vmax.f32 %v6176, 0.0
        %v6209 = vmax.f32 %v6177, 0.0
        %v6210 = vmax.f32 %v6178, 0.0
        %v6211 = vmax.f32 %v6179, 0.0
        %v6212 = vmax.f32 %v6180, 0.0
        %v6213 = vmax.f32 %v6181, 0.0
        %v6214 = vmax.f32 %v6182, 0.0
        %v6215 = vmax.f32 %v6183, 0.0
        %v6216 = vmax.f32 %v6184, 0.0
        %v6217 = vmax.f32 %v6185, 0.0
        %v6218 = vmax.f32 %v6186, 0.0
        %6219 = vst [vmem:[%s367] sm:$0xff] %v6187
        %6220 = vst [vmem:[%s367 + $0x8] sm:$0xff] %v6188
        %6221 = vst [vmem:[%s367 + $0x10] sm:$0xff] %v6189
        %6222 = vst [vmem:[%s367 + $0x18] sm:$0xff] %v6190
        %6223 = vst [vmem:[%s367 + $0x20] sm:$0xff] %v6191
        %6224 = vst [vmem:[%s367 + $0x28] sm:$0xff] %v6192
        %6225 = vst [vmem:[%s367 + $0x30] sm:$0xff] %v6193
        %6226 = vst [vmem:[%s367 + $0x38] sm:$0xff] %v6194
        %6227 = vst [vmem:[%s367 + $0x40] sm:$0xff] %v6195
        %6228 = vst [vmem:[%s367 + $0x48] sm:$0xff] %v6196
        %6229 = vst [vmem:[%s367 + $0x50] sm:$0xff] %v6197
        %6230 = vst [vmem:[%s367 + $0x58] sm:$0xff] %v6198
        %6231 = vst [vmem:[%s367 + $0x60] sm:$0xff] %v6199
        %6232 = vst [vmem:[%s367 + $0x68] sm:$0xff] %v6200
        %6233 = vst [vmem:[%s367 + $0x70] sm:$0xff] %v6201
        %6234 = vst [vmem:[%s367 + $0x78] sm:$0xff] %v6202
        %6235 = vst [vmem:[%s367 + $0x80] sm:$0xff] %v6203
        %6236 = vst [vmem:[%s367 + $0x88] sm:$0xff] %v6204
        %6237 = vst [vmem:[%s367 + $0x90] sm:$0xff] %v6205
        %6238 = vst [vmem:[%s367 + $0x98] sm:$0xff] %v6206
        %6239 = vst [vmem:[%s367 + $0xa0] sm:$0xff] %v6207
        %6240 = vst [vmem:[%s367 + $0xa8] sm:$0xff] %v6208
        %6241 = vst [vmem:[%s367 + $0xb0] sm:$0xff] %v6209
        %6242 = vst [vmem:[%s367 + $0xb8] sm:$0xff] %v6210
        %6243 = vst [vmem:[%s367 + $0xc0] sm:$0xff] %v6211
        %6244 = vst [vmem:[%s367 + $0xc8] sm:$0xff] %v6212
        %6245 = vst [vmem:[%s367 + $0xd0] sm:$0xff] %v6213
        %6246 = vst [vmem:[%s367 + $0xd8] sm:$0xff] %v6214
        %6247 = vst [vmem:[%s367 + $0xe0] sm:$0xff] %v6215
        %6248 = vst [vmem:[%s367 + $0xe8] sm:$0xff] %v6216
        %6249 = vst [vmem:[%s367 + $0xf0] sm:$0xff] %v6217
        %6250 = vst [vmem:[%s367 + $0xf8] sm:$0xff] %v6218
        %s6251 = sand.u32 %s248, 1
        %s6252 = scalar_lea.sflag [#allocation5], %s6251
        %s6253 = sand.u32 %s248, 1
        %s6254 = smul.addr %s6253, 256
        %s6255 = scalar_lea.vmem [#allocation6], %s6254
        // Predicated region
        $region65: #{tpu_custom_call.1} parent=59 // pred_check
          %p6256 = pneg %p258
        $region66: #{tpu_custom_call.1} parent=59 // pred_check_branch
          %6258 = sbr.rel (%p6256) target = $region68
        $region67: #{tpu_custom_call.1} parent=59 // pred_region
          %s6260 = ssub.s32 4096, 4096
          %6261 = vsyncadd %s6252, %s6260
          %s6262 = smul.addr %s25, 32
          %s6263 = smul.addr %s6262, 128
          %s6264 = scalar_lea.hbm %s10, %s6263
          %s6265 = sshll.u32 %s6255, 4
          %s6266 = int_to_ptr.vmem [resolvable:$true] %s6265
          %6271 = dma.vmem_to_hbm [thread:$0]  %s6266, 4096, %s6264, %s6252, 128, 128, 8
        $region68: #{tpu_custom_call.1} parent=59 // pred_fallthru
          _
      $region60: #{tpu_custom_call.1} parent=5 // pred_fallthru
        _
      %p6272 = scmp.le.s32.totalorder 2, %s20
      // Predicated region
      $region69: #{tpu_custom_call.1} parent=5 // pred_check
        %p6273 = pneg %p6272
      $region70: #{tpu_custom_call.1} parent=5 // pred_check_branch
        %6275 = sbr.rel (%p6273) target = $region72
      $region71: #{tpu_custom_call.1} parent=5 // pred_region
        %s6276 = ssub.s32 %s20, 2
        // Predicated region
        $region73: #{tpu_custom_call.1} parent=71 // pred_check
          %p6277 = pneg %p264
        $region74: #{tpu_custom_call.1} parent=71 // pred_check_branch
          %6279 = sbr.rel (%p6277) target = $region76
        $region75: #{tpu_custom_call.1} parent=71 // pred_region
          %s6280 = sand.u32 %s249, 1
          %s6281 = scalar_lea.sflag [#allocation5], %s6280
          %s6282 = sand.u32 %s249, 1
          %s6283 = smul.addr %s6282, 256
          %s6284 = scalar_lea.vmem [#allocation6], %s6283
          %6285 = dma.done %s6281, 4096
        $region76: #{tpu_custom_call.1} parent=71 // pred_fallthru
          _
      $region72: #{tpu_custom_call.1} parent=5 // pred_fallthru
        _
    $region6: #{tpu_custom_call.1} parent=1 // loop_footer
      %s24 = sadd.s32 1, %s20
    $region7: #{tpu_custom_call.1} parent=1 // loop_footer_branch
      %19 = sbr.rel target = $region3
    $region8: #{tpu_custom_call.1} parent=1 // loop_exit
      _
    %6286 = vsyncpa [#allocation4], 1
    %s6287 = scalar_lea.sflag [#allocation4], 1
    %6288 = vsyncpa %s6287, 1
    %6289 = vsyncpa [#allocation5], 1
    %s6290 = scalar_lea.sflag [#allocation5], 1
    %6291 = vsyncpa %s6290, 1

</llo_original>
